<compile_context>
chip_gen: v7x
topology: tpu7x:2x2x1
jax: 0.10.0
libtpu: 0.0.40
codegen_flags: <defaults>
</compile_context>

<pallas_src>
import numpy as np
import jax
import jax.numpy as jnp
from jax.experimental import pallas as pl
from jax.experimental.pallas import tpu as pltpu

EPS = 1e-5
SQRT_HALF = 0.7071067811865476


# ----------------------------------------------------------------------------
# elementwise helpers (used both in the kernel and in the pure-JAX reference)
# ----------------------------------------------------------------------------
def _erf(x):
    # TODO(synk): a tanh-approx GELU would move ~12 VALU ops/elem to the EUP
    # (biggest win on v5e) but exceeds the 1e-4 check tolerance vs exact GELU;
    # keep the f32-exact Abramowitz&Stegun 7.1.26 polynomial (err ~1.5e-7).
    a1, a2, a3, a4, a5 = (0.254829592, -0.284496736, 1.421413741,
                          -1.453152027, 1.061405429)
    p = 0.3275911
    sgn = jnp.where(x >= 0, 1.0, -1.0)
    ax = jnp.abs(x)
    t = 1.0 / (1.0 + p * ax)
    poly = ((((a5 * t + a4) * t + a3) * t + a2) * t + a1) * t
    return sgn * (1.0 - poly * jnp.exp(-ax * ax))


def _gelu(x):  # nn.GELU() default (exact, erf-based)
    return 0.5 * x * (1.0 + _erf(x * SQRT_HALF))


def _silu(x):  # nn.SiLU()
    return x * jax.nn.sigmoid(x)


# ----------------------------------------------------------------------------
# depthwise-conv tap geometry: static lane shifts + zero-padding boundary masks
# ----------------------------------------------------------------------------
def _tap_geometry(K, dil, H, W):
    """For a KxK depthwise conv ('same' padding, dilation `dil`) on an image
    flattened to H*W lanes, return the static roll shift and the (H*W,) validity
    mask for each of the K*K taps (ki-major, kj-minor order)."""
    half = (K - 1) // 2
    HW = H * W
    hh = np.arange(H)[:, None]
    ww = np.arange(W)[None, :]
    shifts, masks = [], []
    for ki in range(K):
        for kj in range(K):
            di = (ki - half) * dil
            dj = (kj - half) * dil
            shifts.append(int((-(di * W + dj)) % HW))
            m = ((hh + di >= 0) & (hh + di < H) &
                 (ww + dj >= 0) & (ww + dj < W))
            masks.append(m.reshape(HW))
    return shifts, np.stack(masks).astype(np.float32)     # (K*K, HW)


# ----------------------------------------------------------------------------
# fused kernel:  out = MLP_residual( Attn_residual( x ) )   per batch element
# ----------------------------------------------------------------------------
def _make_fused_kernel(shifts0, shifts1, shifts2, shifts_m):
    def _dw(t, wm_ref, shifts):
        # t: (Cdw, HW) lane-dense.  Each tap is a lane rotation (XLU) followed
        # by an FMA against the precombined weight*mask slab (VPU).
        acc = None
        for i, s in enumerate(shifts):
            r = t if s == 0 else pltpu.roll(t, s, axis=1)
            term = r * wm_ref[i]
            acc = term if acc is None else acc + term
        return acc

    def kernel(x_ref,
               a1_ref, c1_ref,
               wp1_ref, bp1_ref, sig_a_ref,
               wg_ref, bg_ref,
               wm0_ref, bd0_ref,
               wm1_ref, wm2_ref,
               m0_ref, bd12_ref,
               wpw_ref, bpw_ref,
               wp2_ref,
               wf1_ref, bf1_ref,
               wmm_ref, bdc_ref,
               wde_ref, bde_ref, sig_m_ref,
               wf2_ref, bf2_ref,
               o_ref):
        x = x_ref[0]                                       # (C, HW) lane-dense

        # ---- attention half:  y = x*a1 + c1 + (ls1*Wp2) @ (silu(g)*silu(v)) ----
        # (BN1, layer_scale_1 and the proj_2 bias are folded into a1/c1/weights)
        xp = jnp.dot(wp1_ref[...], x,
                     preferred_element_type=jnp.float32) + bp1_ref[...]
        x_d = jnp.mean(xp, axis=1, keepdims=True)          # global avg pool
        xp = _silu(xp + sig_a_ref[...] * (xp - x_d))       # feat_decompose

        g = jnp.dot(wg_ref[...], xp,
                    preferred_element_type=jnp.float32) + bg_ref[...]

        # MultiOrderDWConv: 5x5 dil=1 on all C, then 5x5 dil=2 / dil=3 on the
        # channel bands (weights zero-padded to full C), recombined with mask0.
        x0 = _dw(xp, wm0_ref, shifts0) + bd0_ref[...]
        x12 = _dw(x0, wm1_ref, shifts1) + _dw(x0, wm2_ref, shifts2)
        xc = x0 * m0_ref[...] + x12 + bd12_ref[...]
        v = jnp.dot(wpw_ref[...], xc,
                    preferred_element_type=jnp.float32) + bpw_ref[...]

        u = _silu(g) * _silu(v)
        y = x * a1_ref[...] + c1_ref[...] + jnp.dot(
            wp2_ref[...], u, preferred_element_type=jnp.float32)

        # ---- MLP half:  out = y + (ls2*Wf2) @ CA-FFN(BN2(y)) ----
        # (BN2 folded into fc1; layer_scale_2 and fc2 bias folded into wf2/bf2)
        h = jnp.dot(wf1_ref[...], y,
                    preferred_element_type=jnp.float32) + bf1_ref[...]
        h = _gelu(_dw(h, wmm_ref, shifts_m) + bdc_ref[...])          # dwconv+act
        d = jnp.sum(h * wde_ref[...], axis=0, keepdims=True) + bde_ref[...]
        h = h + sig_m_ref[...] * (h - _gelu(d))                      # decompose
        out = jnp.dot(wf2_ref[...], h,
                      preferred_element_type=jnp.float32) + bf2_ref[...]

        o_ref[0] = (y + out).astype(o_ref.dtype)

    return kernel


# ----------------------------------------------------------------------------
# wrapper: trace-time weight folding + pallas_call
# ----------------------------------------------------------------------------
def _const_spec(a):
    z = (0,) * a.ndim
    return pl.BlockSpec(a.shape, lambda b, _z=z: _z)


def _fused_call(x_flat, H, W, p):
    B, C, HW = x_flat.shape
    C1 = p['wd1'].shape[-1]
    C2 = p['wd2'].shape[-1]
    C0 = C - C1 - C2
    f32 = jnp.float32

    def col(v):                                   # per-channel vector -> (N, 1)
        return v.reshape(-1, 1).astype(f32)

    # --- fold BatchNorms + layer scales into the 1x1 convs (runs once in XLA) ---
    s1 = p['g1'] * jax.lax.rsqrt(p['v1'] + EPS)
    t1 = p['be1'] - p['m1'] * s1
    s2 = p['g2'] * jax.lax.rsqrt(p['v2'] + EPS)
    t2 = p['be2'] - p['m2'] * s2

    a1 = col(1.0 + p['ls1'] * s1)                 # residual per-channel scale
    c1 = col(p['ls1'] * (t1 + p['bp2']))          # residual per-channel shift
    wp1f = (p['wp1'] * s1[:, None]).T             # (Cout, Cin), BN1 folded
    bp1f = col(p['bp1'] + t1 @ p['wp1'])
    wgT = p['wg'].T
    bg = col(p['bg'])
    wpwT = p['wpw'].T
    bpw = col(p['bpw'])
    wp2s = p['ls1'][:, None] * p['wp2'].T         # layer_scale_1 folded (bias in c1)

    Hd = p['wf1'].shape[-1]
    wf1f = (p['wf1'] * s2[:, None]).T             # (Hd, C), BN2 folded
    bf1f = col(p['bf1'] + t2 @ p['wf1'])
    wf2s = p['ls2'][:, None] * p['wf2'].T         # (C, Hd), layer_scale_2 folded
    bf2s = col(p['ls2'] * p['bf2'])

    # --- depthwise conv taps: static shifts + (tap, channel, position) slabs ---
    sh0, msk0 = _tap_geometry(5, 1, H, W)
    sh1, msk1 = _tap_geometry(5, 2, H, W)
    sh2, msk2 = _tap_geometry(5, 3, H, W)
    shm, mskm = _tap_geometry(3, 1, H, W)

    wd1_full = jnp.zeros((5, 5, C), f32).at[:, :, C0:C0 + C1].set(p['wd1'])
    wd2_full = jnp.zeros((5, 5, C), f32).at[:, :, C - C2:].set(p['wd2'])
    bd12 = (jnp.zeros((C,), f32).at[C0:C0 + C1].set(p['bd1'])
            .at[C - C2:].set(p['bd2']))
    mask0 = (jnp.arange(C) < C0).astype(f32)

    def tapw(w_kkc, masks):                       # (K,K,Cdw),(K*K,HW)->(K*K,Cdw,HW)
        kk = masks.shape[0]
        return (w_kkc.reshape(kk, -1)[:, :, None]
                * jnp.asarray(masks)[:, None, :]).astype(f32)

    wm0 = tapw(p['wd0'], msk0)
    wm1 = tapw(wd1_full, msk1)
    wm2 = tapw(wd2_full, msk2)
    wmm = tapw(p['wdc'], mskm)

    args = (a1, c1,
            wp1f, bp1f, col(p['sig_a']),
            wgT, bg,
            wm0, col(p['bd0']),
            wm1, wm2,
            col(mask0), col(bd12),
            wpwT, bpw,
            wp2s,
            wf1f, bf1f,
            wmm, col(p['bdc']),
            col(p['wde']), p['bde'].reshape(1, 1).astype(f32), col(p['sig_m']),
            wf2s, bf2s)

    kernel = _make_fused_kernel(sh0, sh1, sh2, shm)
    blk = pl.BlockSpec((1, C, HW), lambda b: (b, 0, 0))
    return pl.pallas_call(
        kernel,
        out_shape=jax.ShapeDtypeStruct((B, C, HW), x_flat.dtype),
        grid_spec=pltpu.PrefetchScalarGridSpec(
            num_scalar_prefetch=0,
            grid=(B,),
            in_specs=[blk] + [_const_spec(a) for a in args],
            out_specs=blk),
        compiler_params=pltpu.CompilerParams(
            dimension_semantics=("parallel",)),
    )(x_flat, *args)


@jax.jit
def moga_sub_block(x_nchw, params):
    B, C, H, W = x_nchw.shape
    # channels-first; H*W (lane-dense) is a free reshape of contiguous NCHW —
    # no HBM transpose on either side of the kernel.
    x_flat = x_nchw.reshape(B, C, H * W)
    out = _fused_call(x_flat, H, W, params)
    return out.reshape(B, C, H, W)


# ----------------------------------------------------------------------------
# pure-JAX reference (ground truth for the Pallas kernel, unfolded parameters)
# ----------------------------------------------------------------------------
def _dwconv_ref(x, w, b, dil, pad):
    k = w.shape[0]
    c = x.shape[-1]
    out = jax.lax.conv_general_dilated(
        x, w.reshape(k, k, 1, c),
        window_strides=(1, 1),
        padding=[(pad, pad), (pad, pad)],
        rhs_dilation=(dil, dil),
        dimension_numbers=('NHWC', 'HWIO', 'NHWC'),
        feature_group_count=c,
        precision=jax.lax.Precision.HIGHEST)
    return out + b


def moga_sub_block_ref(x_nchw, p):
    x = jnp.transpose(x_nchw, (0, 2, 3, 1)).astype(jnp.float32)
    C = x.shape[-1]
    C1 = p['wd1'].shape[-1]
    C2 = p['wd2'].shape[-1]
    C0 = C - C1 - C2

    def bn(t, g, be, m, v):
        return (t - m) * jax.lax.rsqrt(v + EPS) * g + be

    def c1(t, w, b):
        return jnp.einsum('bhwc,cd->bhwd', t, w,
                          precision=jax.lax.Precision.HIGHEST) + b

    # attn branch
    xn = bn(x, p['g1'], p['be1'], p['m1'], p['v1'])
    sc = xn
    xp = c1(xn, p['wp1'], p['bp1'])
    xd = jnp.mean(xp, axis=(1, 2), keepdims=True)
    xp = _silu(xp + p['sig_a'] * (xp - xd))
    g = c1(xp, p['wg'], p['bg'])
    x0 = _dwconv_ref(xp, p['wd0'], p['bd0'], 1, 2)
    x1 = _dwconv_ref(x0[..., C0:C0 + C1], p['wd1'], p['bd1'], 2, 4)
    x2 = _dwconv_ref(x0[..., C - C2:], p['wd2'], p['bd2'], 3, 6)
    v = c1(jnp.concatenate([x0[..., :C0], x1, x2], axis=-1), p['wpw'], p['bpw'])
    attn = c1(_silu(g) * _silu(v), p['wp2'], p['bp2']) + sc
    y = x + p['ls1'] * attn

    # mlp branch
    yn = bn(y, p['g2'], p['be2'], p['m2'], p['v2'])
    h = c1(yn, p['wf1'], p['bf1'])
    h = _dwconv_ref(h, p['wdc'], p['bdc'], 1, 1)
    h = _gelu(h)
    d = jnp.einsum('bhwc,c->bhw', h, p['wde'],
                   precision=jax.lax.Precision.HIGHEST)[..., None] + p['bde']
    h = h + p['sig_m'] * (h - _gelu(d))
    out = c1(h, p['wf2'], p['bf2'])
    z = y + p['ls2'] * out
    return jnp.transpose(z, (0, 3, 1, 2))


# ----------------------------------------------------------------------------
# deterministic synthetic parameters (shapes per MogaSubBlock.__init__)
# ----------------------------------------------------------------------------
def make_params(key, C, Hd, C1, C2):
    keys = iter(jax.random.split(key, 64))

    def nrm(shape, std):
        return (std * jax.random.normal(next(keys), shape)).astype(jnp.float32)

    p = {}
    # BatchNorm2d 1 (affine + running stats, inference)
    p['g1'] = 1.0 + nrm((C,), 0.1)
    p['be1'] = nrm((C,), 0.1)
    p['m1'] = nrm((C,), 0.1)
    p['v1'] = 1.0 + 0.1 * jax.random.uniform(next(keys), (C,), dtype=jnp.float32)
    # MultiOrderGatedAggregation
    std_c = (2.0 / C) ** 0.5
    p['wp1'] = nrm((C, C), std_c); p['bp1'] = nrm((C,), 0.02)      # proj_1
    p['wg'] = nrm((C, C), std_c);  p['bg'] = nrm((C,), 0.02)       # gate
    std_dw5 = (2.0 / 25.0) ** 0.5
    p['wd0'] = nrm((5, 5, C), std_dw5);  p['bd0'] = nrm((C,), 0.02)   # DW_conv0
    p['wd1'] = nrm((5, 5, C1), std_dw5); p['bd1'] = nrm((C1,), 0.02)  # DW_conv1
    p['wd2'] = nrm((5, 5, C2), std_dw5); p['bd2'] = nrm((C2,), 0.02)  # DW_conv2
    p['wpw'] = nrm((C, C), std_c); p['bpw'] = nrm((C,), 0.02)      # PW_conv
    p['wp2'] = nrm((C, C), std_c); p['bp2'] = nrm((C,), 0.02)      # proj_2
    # ElementScale / layer scales (synthetic 0.1 instead of 1e-5 so the
    # branch contributions are numerically visible in the check)
    p['sig_a'] = jnp.full((C,), 0.1, jnp.float32)
    p['ls1'] = jnp.full((C,), 0.1, jnp.float32)
    # BatchNorm2d 2
    p['g2'] = 1.0 + nrm((C,), 0.1)
    p['be2'] = nrm((C,), 0.1)
    p['m2'] = nrm((C,), 0.1)
    p['v2'] = 1.0 + 0.1 * jax.random.uniform(next(keys), (C,), dtype=jnp.float32)
    # ChannelAggregationFFN
    p['wf1'] = nrm((C, Hd), (2.0 / Hd) ** 0.5); p['bf1'] = nrm((Hd,), 0.02)
    p['wdc'] = nrm((3, 3, Hd), (2.0 / 9.0) ** 0.5); p['bdc'] = nrm((Hd,), 0.02)
    p['wde'] = nrm((Hd,), 2.0 ** 0.5); p['bde'] = nrm((1,), 0.02)   # decompose
    p['sig_m'] = jnp.full((Hd,), 0.1, jnp.float32)
    p['wf2'] = nrm((Hd, C), (2.0 / C) ** 0.5); p['bf2'] = nrm((C,), 0.02)
    p['ls2'] = jnp.full((C,), 0.1, jnp.float32)
    return p


if __name__ == "__main__":
    key = jax.random.PRNGKey(0)
    kx, kp = jax.random.split(key)

    B, C, H, W = 2, 8, 16, 16           # embed_dims=8 (divisible by sum([1,3,4]))
    mlp_ratio = 4.0
    Hd = int(C * mlp_ratio)             # 32
    # attn_channel_split = [1, 3, 4]
    C1 = int(3 / 8 * C)                 # 3
    C2 = int(4 / 8 * C)                 # 4

    params = make_params(kp, C, Hd, C1, C2)
    x = jax.random.normal(kx, (B, C, H, W), dtype=jnp.float32)

    out = moga_sub_block(x, params)
    out = jax.block_until_ready(out)

    ref = moga_sub_block_ref(x, params)
    np.testing.assert_allclose(np.asarray(out), np.asarray(ref),
                               atol=2e-4, rtol=2e-4)
    print("KERNEL_OK")
</pallas_src>

<mosaic_0001>
module attributes {stable_mosaic.version = 11 : i64} {
  func.func @kernel(%arg0: i32, %arg1: memref<1x8x256xf32, #tpu.memory_space<vmem>>, %arg2: memref<8x1xf32, #tpu.memory_space<vmem>>, %arg3: memref<8x1xf32, #tpu.memory_space<vmem>>, %arg4: memref<8x8xf32, #tpu.memory_space<vmem>>, %arg5: memref<8x1xf32, #tpu.memory_space<vmem>>, %arg6: memref<8x1xf32, #tpu.memory_space<vmem>>, %arg7: memref<8x8xf32, #tpu.memory_space<vmem>>, %arg8: memref<8x1xf32, #tpu.memory_space<vmem>>, %arg9: memref<25x8x256xf32, #tpu.memory_space<vmem>>, %arg10: memref<8x1xf32, #tpu.memory_space<vmem>>, %arg11: memref<25x8x256xf32, #tpu.memory_space<vmem>>, %arg12: memref<25x8x256xf32, #tpu.memory_space<vmem>>, %arg13: memref<8x1xf32, #tpu.memory_space<vmem>>, %arg14: memref<8x1xf32, #tpu.memory_space<vmem>>, %arg15: memref<8x8xf32, #tpu.memory_space<vmem>>, %arg16: memref<8x1xf32, #tpu.memory_space<vmem>>, %arg17: memref<8x8xf32, #tpu.memory_space<vmem>>, %arg18: memref<32x8xf32, #tpu.memory_space<vmem>>, %arg19: memref<32x1xf32, #tpu.memory_space<vmem>>, %arg20: memref<9x32x256xf32, #tpu.memory_space<vmem>>, %arg21: memref<32x1xf32, #tpu.memory_space<vmem>>, %arg22: memref<32x1xf32, #tpu.memory_space<vmem>>, %arg23: memref<1x1xf32, #tpu.memory_space<vmem>>, %arg24: memref<32x1xf32, #tpu.memory_space<vmem>>, %arg25: memref<8x32xf32, #tpu.memory_space<vmem>>, %arg26: memref<8x1xf32, #tpu.memory_space<vmem>>, %arg27: memref<1x8x256xf32, #tpu.memory_space<vmem>>) attributes {dimension_semantics = [#tpu.dimension_semantics<parallel>], iteration_bounds = array<i64: 2>, scalar_prefetch = 0 : i64, scratch_operands = 0 : i64, tpu.core_type = #tpu.core_type<tc>, window_params = [{transform_indices = @transform_0, window_bounds = array<i64: 1, 8, 256>}, {pipeline_mode = #tpu.pipeline_mode<synchronous>, transform_indices = @transform_1, window_bounds = array<i64: 8, 1>}, {pipeline_mode = #tpu.pipeline_mode<synchronous>, transform_indices = @transform_2, window_bounds = array<i64: 8, 1>}, {pipeline_mode = #tpu.pipeline_mode<synchronous>, transform_indices = @transform_3, window_bounds = array<i64: 8, 8>}, {pipeline_mode = #tpu.pipeline_mode<synchronous>, transform_indices = @transform_4, window_bounds = array<i64: 8, 1>}, {pipeline_mode = #tpu.pipeline_mode<synchronous>, transform_indices = @transform_5, window_bounds = array<i64: 8, 1>}, {pipeline_mode = #tpu.pipeline_mode<synchronous>, transform_indices = @transform_6, window_bounds = array<i64: 8, 8>}, {pipeline_mode = #tpu.pipeline_mode<synchronous>, transform_indices = @transform_7, window_bounds = array<i64: 8, 1>}, {pipeline_mode = #tpu.pipeline_mode<synchronous>, transform_indices = @transform_8, window_bounds = array<i64: 25, 8, 256>}, {pipeline_mode = #tpu.pipeline_mode<synchronous>, transform_indices = @transform_9, window_bounds = array<i64: 8, 1>}, {pipeline_mode = #tpu.pipeline_mode<synchronous>, transform_indices = @transform_10, window_bounds = array<i64: 25, 8, 256>}, {pipeline_mode = #tpu.pipeline_mode<synchronous>, transform_indices = @transform_11, window_bounds = array<i64: 25, 8, 256>}, {pipeline_mode = #tpu.pipeline_mode<synchronous>, transform_indices = @transform_12, window_bounds = array<i64: 8, 1>}, {pipeline_mode = #tpu.pipeline_mode<synchronous>, transform_indices = @transform_13, window_bounds = array<i64: 8, 1>}, {pipeline_mode = #tpu.pipeline_mode<synchronous>, transform_indices = @transform_14, window_bounds = array<i64: 8, 8>}, {pipeline_mode = #tpu.pipeline_mode<synchronous>, transform_indices = @transform_15, window_bounds = array<i64: 8, 1>}, {pipeline_mode = #tpu.pipeline_mode<synchronous>, transform_indices = @transform_16, window_bounds = array<i64: 8, 8>}, {pipeline_mode = #tpu.pipeline_mode<synchronous>, transform_indices = @transform_17, window_bounds = array<i64: 32, 8>}, {pipeline_mode = #tpu.pipeline_mode<synchronous>, transform_indices = @transform_18, window_bounds = array<i64: 32, 1>}, {pipeline_mode = #tpu.pipeline_mode<synchronous>, transform_indices = @transform_19, window_bounds = array<i64: 9, 32, 256>}, {pipeline_mode = #tpu.pipeline_mode<synchronous>, transform_indices = @transform_20, window_bounds = array<i64: 32, 1>}, {pipeline_mode = #tpu.pipeline_mode<synchronous>, transform_indices = @transform_21, window_bounds = array<i64: 32, 1>}, {pipeline_mode = #tpu.pipeline_mode<synchronous>, transform_indices = @transform_22, window_bounds = array<i64: 1, 1>}, {pipeline_mode = #tpu.pipeline_mode<synchronous>, transform_indices = @transform_23, window_bounds = array<i64: 32, 1>}, {pipeline_mode = #tpu.pipeline_mode<synchronous>, transform_indices = @transform_24, window_bounds = array<i64: 8, 32>}, {pipeline_mode = #tpu.pipeline_mode<synchronous>, transform_indices = @transform_25, window_bounds = array<i64: 8, 1>}, {transform_indices = @transform_26, window_bounds = array<i64: 1, 8, 256>}]} {
    %c0 = arith.constant 0 : index
    %c0_0 = arith.constant 0 : index
    %c0_1 = arith.constant 0 : index
    %0 = vector.load %arg1[%c0, %c0_0, %c0_1] : memref<1x8x256xf32, #tpu.memory_space<vmem>>, vector<1x8x256xf32>
    %1 = vector.shape_cast %0 : vector<1x8x256xf32> to vector<8x256xf32>
    %c0_2 = arith.constant 0 : index
    %c0_3 = arith.constant 0 : index
    %2 = vector.load %arg4[%c0_2, %c0_3] : memref<8x8xf32, #tpu.memory_space<vmem>>, vector<8x8xf32>
    %cst = arith.constant dense<0.000000e+00> : vector<8x256xf32>
    %3 = tpu.matmul %2, %1, %cst {dimension_numbers = #tpu.dot_dimension_numbers<[1], [0], [0], [1], [0, 0, 1, 1], [], []>} : vector<8x8xf32>, vector<8x256xf32>, vector<8x256xf32> -> vector<8x256xf32>
    %c0_4 = arith.constant 0 : index
    %c0_5 = arith.constant 0 : index
    %4 = vector.load %arg5[%c0_4, %c0_5] : memref<8x1xf32, #tpu.memory_space<vmem>>, vector<8x1xf32>
    %5 = vector.broadcast %4 : vector<8x1xf32> to vector<8x256xf32>
    %6 = arith.addf %3, %5 : vector<8x256xf32>
    %cst_6 = arith.constant dense<0.000000e+00> : vector<8xf32>
    %7 = vector.multi_reduction <add>, %6, %cst_6 [1] : vector<8x256xf32> to vector<8xf32>
    %8 = vector.shape_cast %7 : vector<8xf32> to vector<8x1xf32>
    %cst_7 = arith.constant 2.560000e+02 : f32
    %9 = vector.broadcast %cst_7 : f32 to vector<8x1xf32>
    %10 = arith.divf %8, %9 : vector<8x1xf32>
    %c0_8 = arith.constant 0 : index
    %c0_9 = arith.constant 0 : index
    %11 = vector.load %arg6[%c0_8, %c0_9] : memref<8x1xf32, #tpu.memory_space<vmem>>, vector<8x1xf32>
    %12 = vector.broadcast %10 : vector<8x1xf32> to vector<8x256xf32>
    %13 = arith.subf %6, %12 : vector<8x256xf32>
    %14 = vector.broadcast %11 : vector<8x1xf32> to vector<8x256xf32>
    %15 = arith.mulf %14, %13 : vector<8x256xf32>
    %16 = arith.addf %6, %15 : vector<8x256xf32>
    %17 = arith.negf %16 : vector<8x256xf32>
    %18 = math.exp %17 : vector<8x256xf32>
    %cst_10 = arith.constant 1.000000e+00 : f32
    %19 = vector.broadcast %cst_10 : f32 to vector<8x256xf32>
    %20 = arith.addf %19, %18 : vector<8x256xf32>
    %21 = arith.divf %19, %20 : vector<8x256xf32>
    %22 = arith.mulf %16, %21 : vector<8x256xf32>
    %c0_11 = arith.constant 0 : index
    %c0_12 = arith.constant 0 : index
    %23 = vector.load %arg7[%c0_11, %c0_12] : memref<8x8xf32, #tpu.memory_space<vmem>>, vector<8x8xf32>
    %cst_13 = arith.constant dense<0.000000e+00> : vector<8x256xf32>
    %24 = tpu.matmul %23, %22, %cst_13 {dimension_numbers = #tpu.dot_dimension_numbers<[1], [0], [0], [1], [0, 0, 1, 1], [], []>} : vector<8x8xf32>, vector<8x256xf32>, vector<8x256xf32> -> vector<8x256xf32>
    %c0_14 = arith.constant 0 : index
    %c0_15 = arith.constant 0 : index
    %25 = vector.load %arg8[%c0_14, %c0_15] : memref<8x1xf32, #tpu.memory_space<vmem>>, vector<8x1xf32>
    %26 = vector.broadcast %25 : vector<8x1xf32> to vector<8x256xf32>
    %27 = arith.addf %24, %26 : vector<8x256xf32>
    %c34_i32 = arith.constant 34 : i32
    %28 = tpu.dynamic_rotate %22 by %c34_i32 dim 1 : vector<8x256xf32>, i32 -> vector<8x256xf32>
    %c0_16 = arith.constant 0 : index
    %c0_17 = arith.constant 0 : index
    %c0_18 = arith.constant 0 : index
    %29 = vector.load %arg9[%c0_16, %c0_17, %c0_18] : memref<25x8x256xf32, #tpu.memory_space<vmem>>, vector<1x8x256xf32>
    %30 = vector.shape_cast %29 : vector<1x8x256xf32> to vector<8x256xf32>
    %31 = arith.mulf %28, %30 : vector<8x256xf32>
    %c33_i32 = arith.constant 33 : i32
    %32 = tpu.dynamic_rotate %22 by %c33_i32 dim 1 : vector<8x256xf32>, i32 -> vector<8x256xf32>
    %c1 = arith.constant 1 : index
    %c0_19 = arith.constant 0 : index
    %c0_20 = arith.constant 0 : index
    %33 = vector.load %arg9[%c1, %c0_19, %c0_20] : memref<25x8x256xf32, #tpu.memory_space<vmem>>, vector<1x8x256xf32>
    %34 = vector.shape_cast %33 : vector<1x8x256xf32> to vector<8x256xf32>
    %35 = arith.mulf %32, %34 : vector<8x256xf32>
    %36 = arith.addf %31, %35 : vector<8x256xf32>
    %c32_i32 = arith.constant 32 : i32
    %37 = tpu.dynamic_rotate %22 by %c32_i32 dim 1 : vector<8x256xf32>, i32 -> vector<8x256xf32>
    %c2 = arith.constant 2 : index
    %c0_21 = arith.constant 0 : index
    %c0_22 = arith.constant 0 : index
    %38 = vector.load %arg9[%c2, %c0_21, %c0_22] : memref<25x8x256xf32, #tpu.memory_space<vmem>>, vector<1x8x256xf32>
    %39 = vector.shape_cast %38 : vector<1x8x256xf32> to vector<8x256xf32>
    %40 = arith.mulf %37, %39 : vector<8x256xf32>
    %41 = arith.addf %36, %40 : vector<8x256xf32>
    %c31_i32 = arith.constant 31 : i32
    %42 = tpu.dynamic_rotate %22 by %c31_i32 dim 1 : vector<8x256xf32>, i32 -> vector<8x256xf32>
    %c3 = arith.constant 3 : index
    %c0_23 = arith.constant 0 : index
    %c0_24 = arith.constant 0 : index
    %43 = vector.load %arg9[%c3, %c0_23, %c0_24] : memref<25x8x256xf32, #tpu.memory_space<vmem>>, vector<1x8x256xf32>
    %44 = vector.shape_cast %43 : vector<1x8x256xf32> to vector<8x256xf32>
    %45 = arith.mulf %42, %44 : vector<8x256xf32>
    %46 = arith.addf %41, %45 : vector<8x256xf32>
    %c30_i32 = arith.constant 30 : i32
    %47 = tpu.dynamic_rotate %22 by %c30_i32 dim 1 : vector<8x256xf32>, i32 -> vector<8x256xf32>
    %c4 = arith.constant 4 : index
    %c0_25 = arith.constant 0 : index
    %c0_26 = arith.constant 0 : index
    %48 = vector.load %arg9[%c4, %c0_25, %c0_26] : memref<25x8x256xf32, #tpu.memory_space<vmem>>, vector<1x8x256xf32>
    %49 = vector.shape_cast %48 : vector<1x8x256xf32> to vector<8x256xf32>
    %50 = arith.mulf %47, %49 : vector<8x256xf32>
    %51 = arith.addf %46, %50 : vector<8x256xf32>
    %c18_i32 = arith.constant 18 : i32
    %52 = tpu.dynamic_rotate %22 by %c18_i32 dim 1 : vector<8x256xf32>, i32 -> vector<8x256xf32>
    %c5 = arith.constant 5 : index
    %c0_27 = arith.constant 0 : index
    %c0_28 = arith.constant 0 : index
    %53 = vector.load %arg9[%c5, %c0_27, %c0_28] : memref<25x8x256xf32, #tpu.memory_space<vmem>>, vector<1x8x256xf32>
    %54 = vector.shape_cast %53 : vector<1x8x256xf32> to vector<8x256xf32>
    %55 = arith.mulf %52, %54 : vector<8x256xf32>
    %56 = arith.addf %51, %55 : vector<8x256xf32>
    %c17_i32 = arith.constant 17 : i32
    %57 = tpu.dynamic_rotate %22 by %c17_i32 dim 1 : vector<8x256xf32>, i32 -> vector<8x256xf32>
    %c6 = arith.constant 6 : index
    %c0_29 = arith.constant 0 : index
    %c0_30 = arith.constant 0 : index
    %58 = vector.load %arg9[%c6, %c0_29, %c0_30] : memref<25x8x256xf32, #tpu.memory_space<vmem>>, vector<1x8x256xf32>
    %59 = vector.shape_cast %58 : vector<1x8x256xf32> to vector<8x256xf32>
    %60 = arith.mulf %57, %59 : vector<8x256xf32>
    %61 = arith.addf %56, %60 : vector<8x256xf32>
    %c16_i32 = arith.constant 16 : i32
    %62 = tpu.dynamic_rotate %22 by %c16_i32 dim 1 : vector<8x256xf32>, i32 -> vector<8x256xf32>
    %c7 = arith.constant 7 : index
    %c0_31 = arith.constant 0 : index
    %c0_32 = arith.constant 0 : index
    %63 = vector.load %arg9[%c7, %c0_31, %c0_32] : memref<25x8x256xf32, #tpu.memory_space<vmem>>, vector<1x8x256xf32>
    %64 = vector.shape_cast %63 : vector<1x8x256xf32> to vector<8x256xf32>
    %65 = arith.mulf %62, %64 : vector<8x256xf32>
    %66 = arith.addf %61, %65 : vector<8x256xf32>
    %c15_i32 = arith.constant 15 : i32
    %67 = tpu.dynamic_rotate %22 by %c15_i32 dim 1 : vector<8x256xf32>, i32 -> vector<8x256xf32>
    %c8 = arith.constant 8 : index
    %c0_33 = arith.constant 0 : index
    %c0_34 = arith.constant 0 : index
    %68 = vector.load %arg9[%c8, %c0_33, %c0_34] : memref<25x8x256xf32, #tpu.memory_space<vmem>>, vector<1x8x256xf32>
    %69 = vector.shape_cast %68 : vector<1x8x256xf32> to vector<8x256xf32>
    %70 = arith.mulf %67, %69 : vector<8x256xf32>
    %71 = arith.addf %66, %70 : vector<8x256xf32>
    %c14_i32 = arith.constant 14 : i32
    %72 = tpu.dynamic_rotate %22 by %c14_i32 dim 1 : vector<8x256xf32>, i32 -> vector<8x256xf32>
    %c9 = arith.constant 9 : index
    %c0_35 = arith.constant 0 : index
    %c0_36 = arith.constant 0 : index
    %73 = vector.load %arg9[%c9, %c0_35, %c0_36] : memref<25x8x256xf32, #tpu.memory_space<vmem>>, vector<1x8x256xf32>
    %74 = vector.shape_cast %73 : vector<1x8x256xf32> to vector<8x256xf32>
    %75 = arith.mulf %72, %74 : vector<8x256xf32>
    %76 = arith.addf %71, %75 : vector<8x256xf32>
    %c2_i32 = arith.constant 2 : i32
    %77 = tpu.dynamic_rotate %22 by %c2_i32 dim 1 : vector<8x256xf32>, i32 -> vector<8x256xf32>
    %c10 = arith.constant 10 : index
    %c0_37 = arith.constant 0 : index
    %c0_38 = arith.constant 0 : index
    %78 = vector.load %arg9[%c10, %c0_37, %c0_38] : memref<25x8x256xf32, #tpu.memory_space<vmem>>, vector<1x8x256xf32>
    %79 = vector.shape_cast %78 : vector<1x8x256xf32> to vector<8x256xf32>
    %80 = arith.mulf %77, %79 : vector<8x256xf32>
    %81 = arith.addf %76, %80 : vector<8x256xf32>
    %c1_i32 = arith.constant 1 : i32
    %82 = tpu.dynamic_rotate %22 by %c1_i32 dim 1 : vector<8x256xf32>, i32 -> vector<8x256xf32>
    %c11 = arith.constant 11 : index
    %c0_39 = arith.constant 0 : index
    %c0_40 = arith.constant 0 : index
    %83 = vector.load %arg9[%c11, %c0_39, %c0_40] : memref<25x8x256xf32, #tpu.memory_space<vmem>>, vector<1x8x256xf32>
    %84 = vector.shape_cast %83 : vector<1x8x256xf32> to vector<8x256xf32>
    %85 = arith.mulf %82, %84 : vector<8x256xf32>
    %86 = arith.addf %81, %85 : vector<8x256xf32>
    %c12 = arith.constant 12 : index
    %c0_41 = arith.constant 0 : index
    %c0_42 = arith.constant 0 : index
    %87 = vector.load %arg9[%c12, %c0_41, %c0_42] : memref<25x8x256xf32, #tpu.memory_space<vmem>>, vector<1x8x256xf32>
    %88 = vector.shape_cast %87 : vector<1x8x256xf32> to vector<8x256xf32>
    %89 = arith.mulf %22, %88 : vector<8x256xf32>
    %90 = arith.addf %86, %89 : vector<8x256xf32>
    %c255_i32 = arith.constant 255 : i32
    %91 = tpu.dynamic_rotate %22 by %c255_i32 dim 1 : vector<8x256xf32>, i32 -> vector<8x256xf32>
    %c13 = arith.constant 13 : index
    %c0_43 = arith.constant 0 : index
    %c0_44 = arith.constant 0 : index
    %92 = vector.load %arg9[%c13, %c0_43, %c0_44] : memref<25x8x256xf32, #tpu.memory_space<vmem>>, vector<1x8x256xf32>
    %93 = vector.shape_cast %92 : vector<1x8x256xf32> to vector<8x256xf32>
    %94 = arith.mulf %91, %93 : vector<8x256xf32>
    %95 = arith.addf %90, %94 : vector<8x256xf32>
    %c254_i32 = arith.constant 254 : i32
    %96 = tpu.dynamic_rotate %22 by %c254_i32 dim 1 : vector<8x256xf32>, i32 -> vector<8x256xf32>
    %c14 = arith.constant 14 : index
    %c0_45 = arith.constant 0 : index
    %c0_46 = arith.constant 0 : index
    %97 = vector.load %arg9[%c14, %c0_45, %c0_46] : memref<25x8x256xf32, #tpu.memory_space<vmem>>, vector<1x8x256xf32>
    %98 = vector.shape_cast %97 : vector<1x8x256xf32> to vector<8x256xf32>
    %99 = arith.mulf %96, %98 : vector<8x256xf32>
    %100 = arith.addf %95, %99 : vector<8x256xf32>
    %c242_i32 = arith.constant 242 : i32
    %101 = tpu.dynamic_rotate %22 by %c242_i32 dim 1 : vector<8x256xf32>, i32 -> vector<8x256xf32>
    %c15 = arith.constant 15 : index
    %c0_47 = arith.constant 0 : index
    %c0_48 = arith.constant 0 : index
    %102 = vector.load %arg9[%c15, %c0_47, %c0_48] : memref<25x8x256xf32, #tpu.memory_space<vmem>>, vector<1x8x256xf32>
    %103 = vector.shape_cast %102 : vector<1x8x256xf32> to vector<8x256xf32>
    %104 = arith.mulf %101, %103 : vector<8x256xf32>
    %105 = arith.addf %100, %104 : vector<8x256xf32>
    %c241_i32 = arith.constant 241 : i32
    %106 = tpu.dynamic_rotate %22 by %c241_i32 dim 1 : vector<8x256xf32>, i32 -> vector<8x256xf32>
    %c16 = arith.constant 16 : index
    %c0_49 = arith.constant 0 : index
    %c0_50 = arith.constant 0 : index
    %107 = vector.load %arg9[%c16, %c0_49, %c0_50] : memref<25x8x256xf32, #tpu.memory_space<vmem>>, vector<1x8x256xf32>
    %108 = vector.shape_cast %107 : vector<1x8x256xf32> to vector<8x256xf32>
    %109 = arith.mulf %106, %108 : vector<8x256xf32>
    %110 = arith.addf %105, %109 : vector<8x256xf32>
    %c240_i32 = arith.constant 240 : i32
    %111 = tpu.dynamic_rotate %22 by %c240_i32 dim 1 : vector<8x256xf32>, i32 -> vector<8x256xf32>
    %c17 = arith.constant 17 : index
    %c0_51 = arith.constant 0 : index
    %c0_52 = arith.constant 0 : index
    %112 = vector.load %arg9[%c17, %c0_51, %c0_52] : memref<25x8x256xf32, #tpu.memory_space<vmem>>, vector<1x8x256xf32>
    %113 = vector.shape_cast %112 : vector<1x8x256xf32> to vector<8x256xf32>
    %114 = arith.mulf %111, %113 : vector<8x256xf32>
    %115 = arith.addf %110, %114 : vector<8x256xf32>
    %c239_i32 = arith.constant 239 : i32
    %116 = tpu.dynamic_rotate %22 by %c239_i32 dim 1 : vector<8x256xf32>, i32 -> vector<8x256xf32>
    %c18 = arith.constant 18 : index
    %c0_53 = arith.constant 0 : index
    %c0_54 = arith.constant 0 : index
    %117 = vector.load %arg9[%c18, %c0_53, %c0_54] : memref<25x8x256xf32, #tpu.memory_space<vmem>>, vector<1x8x256xf32>
    %118 = vector.shape_cast %117 : vector<1x8x256xf32> to vector<8x256xf32>
    %119 = arith.mulf %116, %118 : vector<8x256xf32>
    %120 = arith.addf %115, %119 : vector<8x256xf32>
    %c238_i32 = arith.constant 238 : i32
    %121 = tpu.dynamic_rotate %22 by %c238_i32 dim 1 : vector<8x256xf32>, i32 -> vector<8x256xf32>
    %c19 = arith.constant 19 : index
    %c0_55 = arith.constant 0 : index
    %c0_56 = arith.constant 0 : index
    %122 = vector.load %arg9[%c19, %c0_55, %c0_56] : memref<25x8x256xf32, #tpu.memory_space<vmem>>, vector<1x8x256xf32>
    %123 = vector.shape_cast %122 : vector<1x8x256xf32> to vector<8x256xf32>
    %124 = arith.mulf %121, %123 : vector<8x256xf32>
    %125 = arith.addf %120, %124 : vector<8x256xf32>
    %c226_i32 = arith.constant 226 : i32
    %126 = tpu.dynamic_rotate %22 by %c226_i32 dim 1 : vector<8x256xf32>, i32 -> vector<8x256xf32>
    %c20 = arith.constant 20 : index
    %c0_57 = arith.constant 0 : index
    %c0_58 = arith.constant 0 : index
    %127 = vector.load %arg9[%c20, %c0_57, %c0_58] : memref<25x8x256xf32, #tpu.memory_space<vmem>>, vector<1x8x256xf32>
    %128 = vector.shape_cast %127 : vector<1x8x256xf32> to vector<8x256xf32>
    %129 = arith.mulf %126, %128 : vector<8x256xf32>
    %130 = arith.addf %125, %129 : vector<8x256xf32>
    %c225_i32 = arith.constant 225 : i32
    %131 = tpu.dynamic_rotate %22 by %c225_i32 dim 1 : vector<8x256xf32>, i32 -> vector<8x256xf32>
    %c21 = arith.constant 21 : index
    %c0_59 = arith.constant 0 : index
    %c0_60 = arith.constant 0 : index
    %132 = vector.load %arg9[%c21, %c0_59, %c0_60] : memref<25x8x256xf32, #tpu.memory_space<vmem>>, vector<1x8x256xf32>
    %133 = vector.shape_cast %132 : vector<1x8x256xf32> to vector<8x256xf32>
    %134 = arith.mulf %131, %133 : vector<8x256xf32>
    %135 = arith.addf %130, %134 : vector<8x256xf32>
    %c224_i32 = arith.constant 224 : i32
    %136 = tpu.dynamic_rotate %22 by %c224_i32 dim 1 : vector<8x256xf32>, i32 -> vector<8x256xf32>
    %c22 = arith.constant 22 : index
    %c0_61 = arith.constant 0 : index
    %c0_62 = arith.constant 0 : index
    %137 = vector.load %arg9[%c22, %c0_61, %c0_62] : memref<25x8x256xf32, #tpu.memory_space<vmem>>, vector<1x8x256xf32>
    %138 = vector.shape_cast %137 : vector<1x8x256xf32> to vector<8x256xf32>
    %139 = arith.mulf %136, %138 : vector<8x256xf32>
    %140 = arith.addf %135, %139 : vector<8x256xf32>
    %c223_i32 = arith.constant 223 : i32
    %141 = tpu.dynamic_rotate %22 by %c223_i32 dim 1 : vector<8x256xf32>, i32 -> vector<8x256xf32>
    %c23 = arith.constant 23 : index
    %c0_63 = arith.constant 0 : index
    %c0_64 = arith.constant 0 : index
    %142 = vector.load %arg9[%c23, %c0_63, %c0_64] : memref<25x8x256xf32, #tpu.memory_space<vmem>>, vector<1x8x256xf32>
    %143 = vector.shape_cast %142 : vector<1x8x256xf32> to vector<8x256xf32>
    %144 = arith.mulf %141, %143 : vector<8x256xf32>
    %145 = arith.addf %140, %144 : vector<8x256xf32>
    %c222_i32 = arith.constant 222 : i32
    %146 = tpu.dynamic_rotate %22 by %c222_i32 dim 1 : vector<8x256xf32>, i32 -> vector<8x256xf32>
    %c24 = arith.constant 24 : index
    %c0_65 = arith.constant 0 : index
    %c0_66 = arith.constant 0 : index
    %147 = vector.load %arg9[%c24, %c0_65, %c0_66] : memref<25x8x256xf32, #tpu.memory_space<vmem>>, vector<1x8x256xf32>
    %148 = vector.shape_cast %147 : vector<1x8x256xf32> to vector<8x256xf32>
    %149 = arith.mulf %146, %148 : vector<8x256xf32>
    %150 = arith.addf %145, %149 : vector<8x256xf32>
    %c0_67 = arith.constant 0 : index
    %c0_68 = arith.constant 0 : index
    %151 = vector.load %arg10[%c0_67, %c0_68] : memref<8x1xf32, #tpu.memory_space<vmem>>, vector<8x1xf32>
    %152 = vector.broadcast %151 : vector<8x1xf32> to vector<8x256xf32>
    %153 = arith.addf %150, %152 : vector<8x256xf32>
    %c68_i32 = arith.constant 68 : i32
    %154 = tpu.dynamic_rotate %153 by %c68_i32 dim 1 : vector<8x256xf32>, i32 -> vector<8x256xf32>
    %c0_69 = arith.constant 0 : index
    %c0_70 = arith.constant 0 : index
    %c0_71 = arith.constant 0 : index
    %155 = vector.load %arg11[%c0_69, %c0_70, %c0_71] : memref<25x8x256xf32, #tpu.memory_space<vmem>>, vector<1x8x256xf32>
    %156 = vector.shape_cast %155 : vector<1x8x256xf32> to vector<8x256xf32>
    %157 = arith.mulf %154, %156 : vector<8x256xf32>
    %c66_i32 = arith.constant 66 : i32
    %158 = tpu.dynamic_rotate %153 by %c66_i32 dim 1 : vector<8x256xf32>, i32 -> vector<8x256xf32>
    %c1_72 = arith.constant 1 : index
    %c0_73 = arith.constant 0 : index
    %c0_74 = arith.constant 0 : index
    %159 = vector.load %arg11[%c1_72, %c0_73, %c0_74] : memref<25x8x256xf32, #tpu.memory_space<vmem>>, vector<1x8x256xf32>
    %160 = vector.shape_cast %159 : vector<1x8x256xf32> to vector<8x256xf32>
    %161 = arith.mulf %158, %160 : vector<8x256xf32>
    %162 = arith.addf %157, %161 : vector<8x256xf32>
    %c64_i32 = arith.constant 64 : i32
    %163 = tpu.dynamic_rotate %153 by %c64_i32 dim 1 : vector<8x256xf32>, i32 -> vector<8x256xf32>
    %c2_75 = arith.constant 2 : index
    %c0_76 = arith.constant 0 : index
    %c0_77 = arith.constant 0 : index
    %164 = vector.load %arg11[%c2_75, %c0_76, %c0_77] : memref<25x8x256xf32, #tpu.memory_space<vmem>>, vector<1x8x256xf32>
    %165 = vector.shape_cast %164 : vector<1x8x256xf32> to vector<8x256xf32>
    %166 = arith.mulf %163, %165 : vector<8x256xf32>
    %167 = arith.addf %162, %166 : vector<8x256xf32>
    %c62_i32 = arith.constant 62 : i32
    %168 = tpu.dynamic_rotate %153 by %c62_i32 dim 1 : vector<8x256xf32>, i32 -> vector<8x256xf32>
    %c3_78 = arith.constant 3 : index
    %c0_79 = arith.constant 0 : index
    %c0_80 = arith.constant 0 : index
    %169 = vector.load %arg11[%c3_78, %c0_79, %c0_80] : memref<25x8x256xf32, #tpu.memory_space<vmem>>, vector<1x8x256xf32>
    %170 = vector.shape_cast %169 : vector<1x8x256xf32> to vector<8x256xf32>
    %171 = arith.mulf %168, %170 : vector<8x256xf32>
    %172 = arith.addf %167, %171 : vector<8x256xf32>
    %c60_i32 = arith.constant 60 : i32
    %173 = tpu.dynamic_rotate %153 by %c60_i32 dim 1 : vector<8x256xf32>, i32 -> vector<8x256xf32>
    %c4_81 = arith.constant 4 : index
    %c0_82 = arith.constant 0 : index
    %c0_83 = arith.constant 0 : index
    %174 = vector.load %arg11[%c4_81, %c0_82, %c0_83] : memref<25x8x256xf32, #tpu.memory_space<vmem>>, vector<1x8x256xf32>
    %175 = vector.shape_cast %174 : vector<1x8x256xf32> to vector<8x256xf32>
    %176 = arith.mulf %173, %175 : vector<8x256xf32>
    %177 = arith.addf %172, %176 : vector<8x256xf32>
    %c36_i32 = arith.constant 36 : i32
    %178 = tpu.dynamic_rotate %153 by %c36_i32 dim 1 : vector<8x256xf32>, i32 -> vector<8x256xf32>
    %c5_84 = arith.constant 5 : index
    %c0_85 = arith.constant 0 : index
    %c0_86 = arith.constant 0 : index
    %179 = vector.load %arg11[%c5_84, %c0_85, %c0_86] : memref<25x8x256xf32, #tpu.memory_space<vmem>>, vector<1x8x256xf32>
    %180 = vector.shape_cast %179 : vector<1x8x256xf32> to vector<8x256xf32>
    %181 = arith.mulf %178, %180 : vector<8x256xf32>
    %182 = arith.addf %177, %181 : vector<8x256xf32>
    %c34_i32_87 = arith.constant 34 : i32
    %183 = tpu.dynamic_rotate %153 by %c34_i32_87 dim 1 : vector<8x256xf32>, i32 -> vector<8x256xf32>
    %c6_88 = arith.constant 6 : index
    %c0_89 = arith.constant 0 : index
    %c0_90 = arith.constant 0 : index
    %184 = vector.load %arg11[%c6_88, %c0_89, %c0_90] : memref<25x8x256xf32, #tpu.memory_space<vmem>>, vector<1x8x256xf32>
    %185 = vector.shape_cast %184 : vector<1x8x256xf32> to vector<8x256xf32>
    %186 = arith.mulf %183, %185 : vector<8x256xf32>
    %187 = arith.addf %182, %186 : vector<8x256xf32>
    %c32_i32_91 = arith.constant 32 : i32
    %188 = tpu.dynamic_rotate %153 by %c32_i32_91 dim 1 : vector<8x256xf32>, i32 -> vector<8x256xf32>
    %c7_92 = arith.constant 7 : index
    %c0_93 = arith.constant 0 : index
    %c0_94 = arith.constant 0 : index
    %189 = vector.load %arg11[%c7_92, %c0_93, %c0_94] : memref<25x8x256xf32, #tpu.memory_space<vmem>>, vector<1x8x256xf32>
    %190 = vector.shape_cast %189 : vector<1x8x256xf32> to vector<8x256xf32>
    %191 = arith.mulf %188, %190 : vector<8x256xf32>
    %192 = arith.addf %187, %191 : vector<8x256xf32>
    %c30_i32_95 = arith.constant 30 : i32
    %193 = tpu.dynamic_rotate %153 by %c30_i32_95 dim 1 : vector<8x256xf32>, i32 -> vector<8x256xf32>
    %c8_96 = arith.constant 8 : index
    %c0_97 = arith.constant 0 : index
    %c0_98 = arith.constant 0 : index
    %194 = vector.load %arg11[%c8_96, %c0_97, %c0_98] : memref<25x8x256xf32, #tpu.memory_space<vmem>>, vector<1x8x256xf32>
    %195 = vector.shape_cast %194 : vector<1x8x256xf32> to vector<8x256xf32>
    %196 = arith.mulf %193, %195 : vector<8x256xf32>
    %197 = arith.addf %192, %196 : vector<8x256xf32>
    %c28_i32 = arith.constant 28 : i32
    %198 = tpu.dynamic_rotate %153 by %c28_i32 dim 1 : vector<8x256xf32>, i32 -> vector<8x256xf32>
    %c9_99 = arith.constant 9 : index
    %c0_100 = arith.constant 0 : index
    %c0_101 = arith.constant 0 : index
    %199 = vector.load %arg11[%c9_99, %c0_100, %c0_101] : memref<25x8x256xf32, #tpu.memory_space<vmem>>, vector<1x8x256xf32>
    %200 = vector.shape_cast %199 : vector<1x8x256xf32> to vector<8x256xf32>
    %201 = arith.mulf %198, %200 : vector<8x256xf32>
    %202 = arith.addf %197, %201 : vector<8x256xf32>
    %c4_i32 = arith.constant 4 : i32
    %203 = tpu.dynamic_rotate %153 by %c4_i32 dim 1 : vector<8x256xf32>, i32 -> vector<8x256xf32>
    %c10_102 = arith.constant 10 : index
    %c0_103 = arith.constant 0 : index
    %c0_104 = arith.constant 0 : index
    %204 = vector.load %arg11[%c10_102, %c0_103, %c0_104] : memref<25x8x256xf32, #tpu.memory_space<vmem>>, vector<1x8x256xf32>
    %205 = vector.shape_cast %204 : vector<1x8x256xf32> to vector<8x256xf32>
    %206 = arith.mulf %203, %205 : vector<8x256xf32>
    %207 = arith.addf %202, %206 : vector<8x256xf32>
    %c2_i32_105 = arith.constant 2 : i32
    %208 = tpu.dynamic_rotate %153 by %c2_i32_105 dim 1 : vector<8x256xf32>, i32 -> vector<8x256xf32>
    %c11_106 = arith.constant 11 : index
    %c0_107 = arith.constant 0 : index
    %c0_108 = arith.constant 0 : index
    %209 = vector.load %arg11[%c11_106, %c0_107, %c0_108] : memref<25x8x256xf32, #tpu.memory_space<vmem>>, vector<1x8x256xf32>
    %210 = vector.shape_cast %209 : vector<1x8x256xf32> to vector<8x256xf32>
    %211 = arith.mulf %208, %210 : vector<8x256xf32>
    %212 = arith.addf %207, %211 : vector<8x256xf32>
    %c12_109 = arith.constant 12 : index
    %c0_110 = arith.constant 0 : index
    %c0_111 = arith.constant 0 : index
    %213 = vector.load %arg11[%c12_109, %c0_110, %c0_111] : memref<25x8x256xf32, #tpu.memory_space<vmem>>, vector<1x8x256xf32>
    %214 = vector.shape_cast %213 : vector<1x8x256xf32> to vector<8x256xf32>
    %215 = arith.mulf %153, %214 : vector<8x256xf32>
    %216 = arith.addf %212, %215 : vector<8x256xf32>
    %c254_i32_112 = arith.constant 254 : i32
    %217 = tpu.dynamic_rotate %153 by %c254_i32_112 dim 1 : vector<8x256xf32>, i32 -> vector<8x256xf32>
    %c13_113 = arith.constant 13 : index
    %c0_114 = arith.constant 0 : index
    %c0_115 = arith.constant 0 : index
    %218 = vector.load %arg11[%c13_113, %c0_114, %c0_115] : memref<25x8x256xf32, #tpu.memory_space<vmem>>, vector<1x8x256xf32>
    %219 = vector.shape_cast %218 : vector<1x8x256xf32> to vector<8x256xf32>
    %220 = arith.mulf %217, %219 : vector<8x256xf32>
    %221 = arith.addf %216, %220 : vector<8x256xf32>
    %c252_i32 = arith.constant 252 : i32
    %222 = tpu.dynamic_rotate %153 by %c252_i32 dim 1 : vector<8x256xf32>, i32 -> vector<8x256xf32>
    %c14_116 = arith.constant 14 : index
    %c0_117 = arith.constant 0 : index
    %c0_118 = arith.constant 0 : index
    %223 = vector.load %arg11[%c14_116, %c0_117, %c0_118] : memref<25x8x256xf32, #tpu.memory_space<vmem>>, vector<1x8x256xf32>
    %224 = vector.shape_cast %223 : vector<1x8x256xf32> to vector<8x256xf32>
    %225 = arith.mulf %222, %224 : vector<8x256xf32>
    %226 = arith.addf %221, %225 : vector<8x256xf32>
    %c228_i32 = arith.constant 228 : i32
    %227 = tpu.dynamic_rotate %153 by %c228_i32 dim 1 : vector<8x256xf32>, i32 -> vector<8x256xf32>
    %c15_119 = arith.constant 15 : index
    %c0_120 = arith.constant 0 : index
    %c0_121 = arith.constant 0 : index
    %228 = vector.load %arg11[%c15_119, %c0_120, %c0_121] : memref<25x8x256xf32, #tpu.memory_space<vmem>>, vector<1x8x256xf32>
    %229 = vector.shape_cast %228 : vector<1x8x256xf32> to vector<8x256xf32>
    %230 = arith.mulf %227, %229 : vector<8x256xf32>
    %231 = arith.addf %226, %230 : vector<8x256xf32>
    %c226_i32_122 = arith.constant 226 : i32
    %232 = tpu.dynamic_rotate %153 by %c226_i32_122 dim 1 : vector<8x256xf32>, i32 -> vector<8x256xf32>
    %c16_123 = arith.constant 16 : index
    %c0_124 = arith.constant 0 : index
    %c0_125 = arith.constant 0 : index
    %233 = vector.load %arg11[%c16_123, %c0_124, %c0_125] : memref<25x8x256xf32, #tpu.memory_space<vmem>>, vector<1x8x256xf32>
    %234 = vector.shape_cast %233 : vector<1x8x256xf32> to vector<8x256xf32>
    %235 = arith.mulf %232, %234 : vector<8x256xf32>
    %236 = arith.addf %231, %235 : vector<8x256xf32>
    %c224_i32_126 = arith.constant 224 : i32
    %237 = tpu.dynamic_rotate %153 by %c224_i32_126 dim 1 : vector<8x256xf32>, i32 -> vector<8x256xf32>
    %c17_127 = arith.constant 17 : index
    %c0_128 = arith.constant 0 : index
    %c0_129 = arith.constant 0 : index
    %238 = vector.load %arg11[%c17_127, %c0_128, %c0_129] : memref<25x8x256xf32, #tpu.memory_space<vmem>>, vector<1x8x256xf32>
    %239 = vector.shape_cast %238 : vector<1x8x256xf32> to vector<8x256xf32>
    %240 = arith.mulf %237, %239 : vector<8x256xf32>
    %241 = arith.addf %236, %240 : vector<8x256xf32>
    %c222_i32_130 = arith.constant 222 : i32
    %242 = tpu.dynamic_rotate %153 by %c222_i32_130 dim 1 : vector<8x256xf32>, i32 -> vector<8x256xf32>
    %c18_131 = arith.constant 18 : index
    %c0_132 = arith.constant 0 : index
    %c0_133 = arith.constant 0 : index
    %243 = vector.load %arg11[%c18_131, %c0_132, %c0_133] : memref<25x8x256xf32, #tpu.memory_space<vmem>>, vector<1x8x256xf32>
    %244 = vector.shape_cast %243 : vector<1x8x256xf32> to vector<8x256xf32>
    %245 = arith.mulf %242, %244 : vector<8x256xf32>
    %246 = arith.addf %241, %245 : vector<8x256xf32>
    %c220_i32 = arith.constant 220 : i32
    %247 = tpu.dynamic_rotate %153 by %c220_i32 dim 1 : vector<8x256xf32>, i32 -> vector<8x256xf32>
    %c19_134 = arith.constant 19 : index
    %c0_135 = arith.constant 0 : index
    %c0_136 = arith.constant 0 : index
    %248 = vector.load %arg11[%c19_134, %c0_135, %c0_136] : memref<25x8x256xf32, #tpu.memory_space<vmem>>, vector<1x8x256xf32>
    %249 = vector.shape_cast %248 : vector<1x8x256xf32> to vector<8x256xf32>
    %250 = arith.mulf %247, %249 : vector<8x256xf32>
    %251 = arith.addf %246, %250 : vector<8x256xf32>
    %c196_i32 = arith.constant 196 : i32
    %252 = tpu.dynamic_rotate %153 by %c196_i32 dim 1 : vector<8x256xf32>, i32 -> vector<8x256xf32>
    %c20_137 = arith.constant 20 : index
    %c0_138 = arith.constant 0 : index
    %c0_139 = arith.constant 0 : index
    %253 = vector.load %arg11[%c20_137, %c0_138, %c0_139] : memref<25x8x256xf32, #tpu.memory_space<vmem>>, vector<1x8x256xf32>
    %254 = vector.shape_cast %253 : vector<1x8x256xf32> to vector<8x256xf32>
    %255 = arith.mulf %252, %254 : vector<8x256xf32>
    %256 = arith.addf %251, %255 : vector<8x256xf32>
    %c194_i32 = arith.constant 194 : i32
    %257 = tpu.dynamic_rotate %153 by %c194_i32 dim 1 : vector<8x256xf32>, i32 -> vector<8x256xf32>
    %c21_140 = arith.constant 21 : index
    %c0_141 = arith.constant 0 : index
    %c0_142 = arith.constant 0 : index
    %258 = vector.load %arg11[%c21_140, %c0_141, %c0_142] : memref<25x8x256xf32, #tpu.memory_space<vmem>>, vector<1x8x256xf32>
    %259 = vector.shape_cast %258 : vector<1x8x256xf32> to vector<8x256xf32>
    %260 = arith.mulf %257, %259 : vector<8x256xf32>
    %261 = arith.addf %256, %260 : vector<8x256xf32>
    %c192_i32 = arith.constant 192 : i32
    %262 = tpu.dynamic_rotate %153 by %c192_i32 dim 1 : vector<8x256xf32>, i32 -> vector<8x256xf32>
    %c22_143 = arith.constant 22 : index
    %c0_144 = arith.constant 0 : index
    %c0_145 = arith.constant 0 : index
    %263 = vector.load %arg11[%c22_143, %c0_144, %c0_145] : memref<25x8x256xf32, #tpu.memory_space<vmem>>, vector<1x8x256xf32>
    %264 = vector.shape_cast %263 : vector<1x8x256xf32> to vector<8x256xf32>
    %265 = arith.mulf %262, %264 : vector<8x256xf32>
    %266 = arith.addf %261, %265 : vector<8x256xf32>
    %c190_i32 = arith.constant 190 : i32
    %267 = tpu.dynamic_rotate %153 by %c190_i32 dim 1 : vector<8x256xf32>, i32 -> vector<8x256xf32>
    %c23_146 = arith.constant 23 : index
    %c0_147 = arith.constant 0 : index
    %c0_148 = arith.constant 0 : index
    %268 = vector.load %arg11[%c23_146, %c0_147, %c0_148] : memref<25x8x256xf32, #tpu.memory_space<vmem>>, vector<1x8x256xf32>
    %269 = vector.shape_cast %268 : vector<1x8x256xf32> to vector<8x256xf32>
    %270 = arith.mulf %267, %269 : vector<8x256xf32>
    %271 = arith.addf %266, %270 : vector<8x256xf32>
    %c188_i32 = arith.constant 188 : i32
    %272 = tpu.dynamic_rotate %153 by %c188_i32 dim 1 : vector<8x256xf32>, i32 -> vector<8x256xf32>
    %c24_149 = arith.constant 24 : index
    %c0_150 = arith.constant 0 : index
    %c0_151 = arith.constant 0 : index
    %273 = vector.load %arg11[%c24_149, %c0_150, %c0_151] : memref<25x8x256xf32, #tpu.memory_space<vmem>>, vector<1x8x256xf32>
    %274 = vector.shape_cast %273 : vector<1x8x256xf32> to vector<8x256xf32>
    %275 = arith.mulf %272, %274 : vector<8x256xf32>
    %276 = arith.addf %271, %275 : vector<8x256xf32>
    %c102_i32 = arith.constant 102 : i32
    %277 = tpu.dynamic_rotate %153 by %c102_i32 dim 1 : vector<8x256xf32>, i32 -> vector<8x256xf32>
    %c0_152 = arith.constant 0 : index
    %c0_153 = arith.constant 0 : index
    %c0_154 = arith.constant 0 : index
    %278 = vector.load %arg12[%c0_152, %c0_153, %c0_154] : memref<25x8x256xf32, #tpu.memory_space<vmem>>, vector<1x8x256xf32>
    %279 = vector.shape_cast %278 : vector<1x8x256xf32> to vector<8x256xf32>
    %280 = arith.mulf %277, %279 : vector<8x256xf32>
    %c99_i32 = arith.constant 99 : i32
    %281 = tpu.dynamic_rotate %153 by %c99_i32 dim 1 : vector<8x256xf32>, i32 -> vector<8x256xf32>
    %c1_155 = arith.constant 1 : index
    %c0_156 = arith.constant 0 : index
    %c0_157 = arith.constant 0 : index
    %282 = vector.load %arg12[%c1_155, %c0_156, %c0_157] : memref<25x8x256xf32, #tpu.memory_space<vmem>>, vector<1x8x256xf32>
    %283 = vector.shape_cast %282 : vector<1x8x256xf32> to vector<8x256xf32>
    %284 = arith.mulf %281, %283 : vector<8x256xf32>
    %285 = arith.addf %280, %284 : vector<8x256xf32>
    %c96_i32 = arith.constant 96 : i32
    %286 = tpu.dynamic_rotate %153 by %c96_i32 dim 1 : vector<8x256xf32>, i32 -> vector<8x256xf32>
    %c2_158 = arith.constant 2 : index
    %c0_159 = arith.constant 0 : index
    %c0_160 = arith.constant 0 : index
    %287 = vector.load %arg12[%c2_158, %c0_159, %c0_160] : memref<25x8x256xf32, #tpu.memory_space<vmem>>, vector<1x8x256xf32>
    %288 = vector.shape_cast %287 : vector<1x8x256xf32> to vector<8x256xf32>
    %289 = arith.mulf %286, %288 : vector<8x256xf32>
    %290 = arith.addf %285, %289 : vector<8x256xf32>
    %c93_i32 = arith.constant 93 : i32
    %291 = tpu.dynamic_rotate %153 by %c93_i32 dim 1 : vector<8x256xf32>, i32 -> vector<8x256xf32>
    %c3_161 = arith.constant 3 : index
    %c0_162 = arith.constant 0 : index
    %c0_163 = arith.constant 0 : index
    %292 = vector.load %arg12[%c3_161, %c0_162, %c0_163] : memref<25x8x256xf32, #tpu.memory_space<vmem>>, vector<1x8x256xf32>
    %293 = vector.shape_cast %292 : vector<1x8x256xf32> to vector<8x256xf32>
    %294 = arith.mulf %291, %293 : vector<8x256xf32>
    %295 = arith.addf %290, %294 : vector<8x256xf32>
    %c90_i32 = arith.constant 90 : i32
    %296 = tpu.dynamic_rotate %153 by %c90_i32 dim 1 : vector<8x256xf32>, i32 -> vector<8x256xf32>
    %c4_164 = arith.constant 4 : index
    %c0_165 = arith.constant 0 : index
    %c0_166 = arith.constant 0 : index
    %297 = vector.load %arg12[%c4_164, %c0_165, %c0_166] : memref<25x8x256xf32, #tpu.memory_space<vmem>>, vector<1x8x256xf32>
    %298 = vector.shape_cast %297 : vector<1x8x256xf32> to vector<8x256xf32>
    %299 = arith.mulf %296, %298 : vector<8x256xf32>
    %300 = arith.addf %295, %299 : vector<8x256xf32>
    %c54_i32 = arith.constant 54 : i32
    %301 = tpu.dynamic_rotate %153 by %c54_i32 dim 1 : vector<8x256xf32>, i32 -> vector<8x256xf32>
    %c5_167 = arith.constant 5 : index
    %c0_168 = arith.constant 0 : index
    %c0_169 = arith.constant 0 : index
    %302 = vector.load %arg12[%c5_167, %c0_168, %c0_169] : memref<25x8x256xf32, #tpu.memory_space<vmem>>, vector<1x8x256xf32>
    %303 = vector.shape_cast %302 : vector<1x8x256xf32> to vector<8x256xf32>
    %304 = arith.mulf %301, %303 : vector<8x256xf32>
    %305 = arith.addf %300, %304 : vector<8x256xf32>
    %c51_i32 = arith.constant 51 : i32
    %306 = tpu.dynamic_rotate %153 by %c51_i32 dim 1 : vector<8x256xf32>, i32 -> vector<8x256xf32>
    %c6_170 = arith.constant 6 : index
    %c0_171 = arith.constant 0 : index
    %c0_172 = arith.constant 0 : index
    %307 = vector.load %arg12[%c6_170, %c0_171, %c0_172] : memref<25x8x256xf32, #tpu.memory_space<vmem>>, vector<1x8x256xf32>
    %308 = vector.shape_cast %307 : vector<1x8x256xf32> to vector<8x256xf32>
    %309 = arith.mulf %306, %308 : vector<8x256xf32>
    %310 = arith.addf %305, %309 : vector<8x256xf32>
    %c48_i32 = arith.constant 48 : i32
    %311 = tpu.dynamic_rotate %153 by %c48_i32 dim 1 : vector<8x256xf32>, i32 -> vector<8x256xf32>
    %c7_173 = arith.constant 7 : index
    %c0_174 = arith.constant 0 : index
    %c0_175 = arith.constant 0 : index
    %312 = vector.load %arg12[%c7_173, %c0_174, %c0_175] : memref<25x8x256xf32, #tpu.memory_space<vmem>>, vector<1x8x256xf32>
    %313 = vector.shape_cast %312 : vector<1x8x256xf32> to vector<8x256xf32>
    %314 = arith.mulf %311, %313 : vector<8x256xf32>
    %315 = arith.addf %310, %314 : vector<8x256xf32>
    %c45_i32 = arith.constant 45 : i32
    %316 = tpu.dynamic_rotate %153 by %c45_i32 dim 1 : vector<8x256xf32>, i32 -> vector<8x256xf32>
    %c8_176 = arith.constant 8 : index
    %c0_177 = arith.constant 0 : index
    %c0_178 = arith.constant 0 : index
    %317 = vector.load %arg12[%c8_176, %c0_177, %c0_178] : memref<25x8x256xf32, #tpu.memory_space<vmem>>, vector<1x8x256xf32>
    %318 = vector.shape_cast %317 : vector<1x8x256xf32> to vector<8x256xf32>
    %319 = arith.mulf %316, %318 : vector<8x256xf32>
    %320 = arith.addf %315, %319 : vector<8x256xf32>
    %c42_i32 = arith.constant 42 : i32
    %321 = tpu.dynamic_rotate %153 by %c42_i32 dim 1 : vector<8x256xf32>, i32 -> vector<8x256xf32>
    %c9_179 = arith.constant 9 : index
    %c0_180 = arith.constant 0 : index
    %c0_181 = arith.constant 0 : index
    %322 = vector.load %arg12[%c9_179, %c0_180, %c0_181] : memref<25x8x256xf32, #tpu.memory_space<vmem>>, vector<1x8x256xf32>
    %323 = vector.shape_cast %322 : vector<1x8x256xf32> to vector<8x256xf32>
    %324 = arith.mulf %321, %323 : vector<8x256xf32>
    %325 = arith.addf %320, %324 : vector<8x256xf32>
    %c6_i32 = arith.constant 6 : i32
    %326 = tpu.dynamic_rotate %153 by %c6_i32 dim 1 : vector<8x256xf32>, i32 -> vector<8x256xf32>
    %c10_182 = arith.constant 10 : index
    %c0_183 = arith.constant 0 : index
    %c0_184 = arith.constant 0 : index
    %327 = vector.load %arg12[%c10_182, %c0_183, %c0_184] : memref<25x8x256xf32, #tpu.memory_space<vmem>>, vector<1x8x256xf32>
    %328 = vector.shape_cast %327 : vector<1x8x256xf32> to vector<8x256xf32>
    %329 = arith.mulf %326, %328 : vector<8x256xf32>
    %330 = arith.addf %325, %329 : vector<8x256xf32>
    %c3_i32 = arith.constant 3 : i32
    %331 = tpu.dynamic_rotate %153 by %c3_i32 dim 1 : vector<8x256xf32>, i32 -> vector<8x256xf32>
    %c11_185 = arith.constant 11 : index
    %c0_186 = arith.constant 0 : index
    %c0_187 = arith.constant 0 : index
    %332 = vector.load %arg12[%c11_185, %c0_186, %c0_187] : memref<25x8x256xf32, #tpu.memory_space<vmem>>, vector<1x8x256xf32>
    %333 = vector.shape_cast %332 : vector<1x8x256xf32> to vector<8x256xf32>
    %334 = arith.mulf %331, %333 : vector<8x256xf32>
    %335 = arith.addf %330, %334 : vector<8x256xf32>
    %c12_188 = arith.constant 12 : index
    %c0_189 = arith.constant 0 : index
    %c0_190 = arith.constant 0 : index
    %336 = vector.load %arg12[%c12_188, %c0_189, %c0_190] : memref<25x8x256xf32, #tpu.memory_space<vmem>>, vector<1x8x256xf32>
    %337 = vector.shape_cast %336 : vector<1x8x256xf32> to vector<8x256xf32>
    %338 = arith.mulf %153, %337 : vector<8x256xf32>
    %339 = arith.addf %335, %338 : vector<8x256xf32>
    %c253_i32 = arith.constant 253 : i32
    %340 = tpu.dynamic_rotate %153 by %c253_i32 dim 1 : vector<8x256xf32>, i32 -> vector<8x256xf32>
    %c13_191 = arith.constant 13 : index
    %c0_192 = arith.constant 0 : index
    %c0_193 = arith.constant 0 : index
    %341 = vector.load %arg12[%c13_191, %c0_192, %c0_193] : memref<25x8x256xf32, #tpu.memory_space<vmem>>, vector<1x8x256xf32>
    %342 = vector.shape_cast %341 : vector<1x8x256xf32> to vector<8x256xf32>
    %343 = arith.mulf %340, %342 : vector<8x256xf32>
    %344 = arith.addf %339, %343 : vector<8x256xf32>
    %c250_i32 = arith.constant 250 : i32
    %345 = tpu.dynamic_rotate %153 by %c250_i32 dim 1 : vector<8x256xf32>, i32 -> vector<8x256xf32>
    %c14_194 = arith.constant 14 : index
    %c0_195 = arith.constant 0 : index
    %c0_196 = arith.constant 0 : index
    %346 = vector.load %arg12[%c14_194, %c0_195, %c0_196] : memref<25x8x256xf32, #tpu.memory_space<vmem>>, vector<1x8x256xf32>
    %347 = vector.shape_cast %346 : vector<1x8x256xf32> to vector<8x256xf32>
    %348 = arith.mulf %345, %347 : vector<8x256xf32>
    %349 = arith.addf %344, %348 : vector<8x256xf32>
    %c214_i32 = arith.constant 214 : i32
    %350 = tpu.dynamic_rotate %153 by %c214_i32 dim 1 : vector<8x256xf32>, i32 -> vector<8x256xf32>
    %c15_197 = arith.constant 15 : index
    %c0_198 = arith.constant 0 : index
    %c0_199 = arith.constant 0 : index
    %351 = vector.load %arg12[%c15_197, %c0_198, %c0_199] : memref<25x8x256xf32, #tpu.memory_space<vmem>>, vector<1x8x256xf32>
    %352 = vector.shape_cast %351 : vector<1x8x256xf32> to vector<8x256xf32>
    %353 = arith.mulf %350, %352 : vector<8x256xf32>
    %354 = arith.addf %349, %353 : vector<8x256xf32>
    %c211_i32 = arith.constant 211 : i32
    %355 = tpu.dynamic_rotate %153 by %c211_i32 dim 1 : vector<8x256xf32>, i32 -> vector<8x256xf32>
    %c16_200 = arith.constant 16 : index
    %c0_201 = arith.constant 0 : index
    %c0_202 = arith.constant 0 : index
    %356 = vector.load %arg12[%c16_200, %c0_201, %c0_202] : memref<25x8x256xf32, #tpu.memory_space<vmem>>, vector<1x8x256xf32>
    %357 = vector.shape_cast %356 : vector<1x8x256xf32> to vector<8x256xf32>
    %358 = arith.mulf %355, %357 : vector<8x256xf32>
    %359 = arith.addf %354, %358 : vector<8x256xf32>
    %c208_i32 = arith.constant 208 : i32
    %360 = tpu.dynamic_rotate %153 by %c208_i32 dim 1 : vector<8x256xf32>, i32 -> vector<8x256xf32>
    %c17_203 = arith.constant 17 : index
    %c0_204 = arith.constant 0 : index
    %c0_205 = arith.constant 0 : index
    %361 = vector.load %arg12[%c17_203, %c0_204, %c0_205] : memref<25x8x256xf32, #tpu.memory_space<vmem>>, vector<1x8x256xf32>
    %362 = vector.shape_cast %361 : vector<1x8x256xf32> to vector<8x256xf32>
    %363 = arith.mulf %360, %362 : vector<8x256xf32>
    %364 = arith.addf %359, %363 : vector<8x256xf32>
    %c205_i32 = arith.constant 205 : i32
    %365 = tpu.dynamic_rotate %153 by %c205_i32 dim 1 : vector<8x256xf32>, i32 -> vector<8x256xf32>
    %c18_206 = arith.constant 18 : index
    %c0_207 = arith.constant 0 : index
    %c0_208 = arith.constant 0 : index
    %366 = vector.load %arg12[%c18_206, %c0_207, %c0_208] : memref<25x8x256xf32, #tpu.memory_space<vmem>>, vector<1x8x256xf32>
    %367 = vector.shape_cast %366 : vector<1x8x256xf32> to vector<8x256xf32>
    %368 = arith.mulf %365, %367 : vector<8x256xf32>
    %369 = arith.addf %364, %368 : vector<8x256xf32>
    %c202_i32 = arith.constant 202 : i32
    %370 = tpu.dynamic_rotate %153 by %c202_i32 dim 1 : vector<8x256xf32>, i32 -> vector<8x256xf32>
    %c19_209 = arith.constant 19 : index
    %c0_210 = arith.constant 0 : index
    %c0_211 = arith.constant 0 : index
    %371 = vector.load %arg12[%c19_209, %c0_210, %c0_211] : memref<25x8x256xf32, #tpu.memory_space<vmem>>, vector<1x8x256xf32>
    %372 = vector.shape_cast %371 : vector<1x8x256xf32> to vector<8x256xf32>
    %373 = arith.mulf %370, %372 : vector<8x256xf32>
    %374 = arith.addf %369, %373 : vector<8x256xf32>
    %c166_i32 = arith.constant 166 : i32
    %375 = tpu.dynamic_rotate %153 by %c166_i32 dim 1 : vector<8x256xf32>, i32 -> vector<8x256xf32>
    %c20_212 = arith.constant 20 : index
    %c0_213 = arith.constant 0 : index
    %c0_214 = arith.constant 0 : index
    %376 = vector.load %arg12[%c20_212, %c0_213, %c0_214] : memref<25x8x256xf32, #tpu.memory_space<vmem>>, vector<1x8x256xf32>
    %377 = vector.shape_cast %376 : vector<1x8x256xf32> to vector<8x256xf32>
    %378 = arith.mulf %375, %377 : vector<8x256xf32>
    %379 = arith.addf %374, %378 : vector<8x256xf32>
    %c163_i32 = arith.constant 163 : i32
    %380 = tpu.dynamic_rotate %153 by %c163_i32 dim 1 : vector<8x256xf32>, i32 -> vector<8x256xf32>
    %c21_215 = arith.constant 21 : index
    %c0_216 = arith.constant 0 : index
    %c0_217 = arith.constant 0 : index
    %381 = vector.load %arg12[%c21_215, %c0_216, %c0_217] : memref<25x8x256xf32, #tpu.memory_space<vmem>>, vector<1x8x256xf32>
    %382 = vector.shape_cast %381 : vector<1x8x256xf32> to vector<8x256xf32>
    %383 = arith.mulf %380, %382 : vector<8x256xf32>
    %384 = arith.addf %379, %383 : vector<8x256xf32>
    %c160_i32 = arith.constant 160 : i32
    %385 = tpu.dynamic_rotate %153 by %c160_i32 dim 1 : vector<8x256xf32>, i32 -> vector<8x256xf32>
    %c22_218 = arith.constant 22 : index
    %c0_219 = arith.constant 0 : index
    %c0_220 = arith.constant 0 : index
    %386 = vector.load %arg12[%c22_218, %c0_219, %c0_220] : memref<25x8x256xf32, #tpu.memory_space<vmem>>, vector<1x8x256xf32>
    %387 = vector.shape_cast %386 : vector<1x8x256xf32> to vector<8x256xf32>
    %388 = arith.mulf %385, %387 : vector<8x256xf32>
    %389 = arith.addf %384, %388 : vector<8x256xf32>
    %c157_i32 = arith.constant 157 : i32
    %390 = tpu.dynamic_rotate %153 by %c157_i32 dim 1 : vector<8x256xf32>, i32 -> vector<8x256xf32>
    %c23_221 = arith.constant 23 : index
    %c0_222 = arith.constant 0 : index
    %c0_223 = arith.constant 0 : index
    %391 = vector.load %arg12[%c23_221, %c0_222, %c0_223] : memref<25x8x256xf32, #tpu.memory_space<vmem>>, vector<1x8x256xf32>
    %392 = vector.shape_cast %391 : vector<1x8x256xf32> to vector<8x256xf32>
    %393 = arith.mulf %390, %392 : vector<8x256xf32>
    %394 = arith.addf %389, %393 : vector<8x256xf32>
    %c154_i32 = arith.constant 154 : i32
    %395 = tpu.dynamic_rotate %153 by %c154_i32 dim 1 : vector<8x256xf32>, i32 -> vector<8x256xf32>
    %c24_224 = arith.constant 24 : index
    %c0_225 = arith.constant 0 : index
    %c0_226 = arith.constant 0 : index
    %396 = vector.load %arg12[%c24_224, %c0_225, %c0_226] : memref<25x8x256xf32, #tpu.memory_space<vmem>>, vector<1x8x256xf32>
    %397 = vector.shape_cast %396 : vector<1x8x256xf32> to vector<8x256xf32>
    %398 = arith.mulf %395, %397 : vector<8x256xf32>
    %399 = arith.addf %394, %398 : vector<8x256xf32>
    %400 = arith.addf %276, %399 : vector<8x256xf32>
    %c0_227 = arith.constant 0 : index
    %c0_228 = arith.constant 0 : index
    %401 = vector.load %arg13[%c0_227, %c0_228] : memref<8x1xf32, #tpu.memory_space<vmem>>, vector<8x1xf32>
    %402 = vector.broadcast %401 : vector<8x1xf32> to vector<8x256xf32>
    %403 = arith.mulf %153, %402 : vector<8x256xf32>
    %404 = arith.addf %403, %400 : vector<8x256xf32>
    %c0_229 = arith.constant 0 : index
    %c0_230 = arith.constant 0 : index
    %405 = vector.load %arg14[%c0_229, %c0_230] : memref<8x1xf32, #tpu.memory_space<vmem>>, vector<8x1xf32>
    %406 = vector.broadcast %405 : vector<8x1xf32> to vector<8x256xf32>
    %407 = arith.addf %404, %406 : vector<8x256xf32>
    %c0_231 = arith.constant 0 : index
    %c0_232 = arith.constant 0 : index
    %408 = vector.load %arg15[%c0_231, %c0_232] : memref<8x8xf32, #tpu.memory_space<vmem>>, vector<8x8xf32>
    %cst_233 = arith.constant dense<0.000000e+00> : vector<8x256xf32>
    %409 = tpu.matmul %408, %407, %cst_233 {dimension_numbers = #tpu.dot_dimension_numbers<[1], [0], [0], [1], [0, 0, 1, 1], [], []>} : vector<8x8xf32>, vector<8x256xf32>, vector<8x256xf32> -> vector<8x256xf32>
    %c0_234 = arith.constant 0 : index
    %c0_235 = arith.constant 0 : index
    %410 = vector.load %arg16[%c0_234, %c0_235] : memref<8x1xf32, #tpu.memory_space<vmem>>, vector<8x1xf32>
    %411 = vector.broadcast %410 : vector<8x1xf32> to vector<8x256xf32>
    %412 = arith.addf %409, %411 : vector<8x256xf32>
    %413 = arith.negf %27 : vector<8x256xf32>
    %414 = math.exp %413 : vector<8x256xf32>
    %cst_236 = arith.constant 1.000000e+00 : f32
    %415 = vector.broadcast %cst_236 : f32 to vector<8x256xf32>
    %416 = arith.addf %415, %414 : vector<8x256xf32>
    %417 = arith.divf %415, %416 : vector<8x256xf32>
    %418 = arith.mulf %27, %417 : vector<8x256xf32>
    %419 = arith.negf %412 : vector<8x256xf32>
    %420 = math.exp %419 : vector<8x256xf32>
    %cst_237 = arith.constant 1.000000e+00 : f32
    %421 = vector.broadcast %cst_237 : f32 to vector<8x256xf32>
    %422 = arith.addf %421, %420 : vector<8x256xf32>
    %423 = arith.divf %421, %422 : vector<8x256xf32>
    %424 = arith.mulf %412, %423 : vector<8x256xf32>
    %425 = arith.mulf %418, %424 : vector<8x256xf32>
    %c0_238 = arith.constant 0 : index
    %c0_239 = arith.constant 0 : index
    %426 = vector.load %arg2[%c0_238, %c0_239] : memref<8x1xf32, #tpu.memory_space<vmem>>, vector<8x1xf32>
    %427 = vector.broadcast %426 : vector<8x1xf32> to vector<8x256xf32>
    %428 = arith.mulf %1, %427 : vector<8x256xf32>
    %c0_240 = arith.constant 0 : index
    %c0_241 = arith.constant 0 : index
    %429 = vector.load %arg3[%c0_240, %c0_241] : memref<8x1xf32, #tpu.memory_space<vmem>>, vector<8x1xf32>
    %430 = vector.broadcast %429 : vector<8x1xf32> to vector<8x256xf32>
    %431 = arith.addf %428, %430 : vector<8x256xf32>
    %c0_242 = arith.constant 0 : index
    %c0_243 = arith.constant 0 : index
    %432 = vector.load %arg17[%c0_242, %c0_243] : memref<8x8xf32, #tpu.memory_space<vmem>>, vector<8x8xf32>
    %cst_244 = arith.constant dense<0.000000e+00> : vector<8x256xf32>
    %433 = tpu.matmul %432, %425, %cst_244 {dimension_numbers = #tpu.dot_dimension_numbers<[1], [0], [0], [1], [0, 0, 1, 1], [], []>} : vector<8x8xf32>, vector<8x256xf32>, vector<8x256xf32> -> vector<8x256xf32>
    %434 = arith.addf %431, %433 : vector<8x256xf32>
    %c0_245 = arith.constant 0 : index
    %c0_246 = arith.constant 0 : index
    %435 = vector.load %arg18[%c0_245, %c0_246] : memref<32x8xf32, #tpu.memory_space<vmem>>, vector<32x8xf32>
    %cst_247 = arith.constant dense<0.000000e+00> : vector<32x256xf32>
    %436 = tpu.matmul %435, %434, %cst_247 {dimension_numbers = #tpu.dot_dimension_numbers<[1], [0], [0], [1], [0, 0, 1, 1], [], []>} : vector<32x8xf32>, vector<8x256xf32>, vector<32x256xf32> -> vector<32x256xf32>
    %c0_248 = arith.constant 0 : index
    %c0_249 = arith.constant 0 : index
    %437 = vector.load %arg19[%c0_248, %c0_249] : memref<32x1xf32, #tpu.memory_space<vmem>>, vector<32x1xf32>
    %438 = vector.broadcast %437 : vector<32x1xf32> to vector<32x256xf32>
    %439 = arith.addf %436, %438 : vector<32x256xf32>
    %c17_i32_250 = arith.constant 17 : i32
    %440 = tpu.dynamic_rotate %439 by %c17_i32_250 dim 1 : vector<32x256xf32>, i32 -> vector<32x256xf32>
    %c0_251 = arith.constant 0 : index
    %c0_252 = arith.constant 0 : index
    %c0_253 = arith.constant 0 : index
    %441 = vector.load %arg20[%c0_251, %c0_252, %c0_253] : memref<9x32x256xf32, #tpu.memory_space<vmem>>, vector<1x32x256xf32>
    %442 = vector.shape_cast %441 : vector<1x32x256xf32> to vector<32x256xf32>
    %443 = arith.mulf %440, %442 : vector<32x256xf32>
    %c16_i32_254 = arith.constant 16 : i32
    %444 = tpu.dynamic_rotate %439 by %c16_i32_254 dim 1 : vector<32x256xf32>, i32 -> vector<32x256xf32>
    %c1_255 = arith.constant 1 : index
    %c0_256 = arith.constant 0 : index
    %c0_257 = arith.constant 0 : index
    %445 = vector.load %arg20[%c1_255, %c0_256, %c0_257] : memref<9x32x256xf32, #tpu.memory_space<vmem>>, vector<1x32x256xf32>
    %446 = vector.shape_cast %445 : vector<1x32x256xf32> to vector<32x256xf32>
    %447 = arith.mulf %444, %446 : vector<32x256xf32>
    %448 = arith.addf %443, %447 : vector<32x256xf32>
    %c15_i32_258 = arith.constant 15 : i32
    %449 = tpu.dynamic_rotate %439 by %c15_i32_258 dim 1 : vector<32x256xf32>, i32 -> vector<32x256xf32>
    %c2_259 = arith.constant 2 : index
    %c0_260 = arith.constant 0 : index
    %c0_261 = arith.constant 0 : index
    %450 = vector.load %arg20[%c2_259, %c0_260, %c0_261] : memref<9x32x256xf32, #tpu.memory_space<vmem>>, vector<1x32x256xf32>
    %451 = vector.shape_cast %450 : vector<1x32x256xf32> to vector<32x256xf32>
    %452 = arith.mulf %449, %451 : vector<32x256xf32>
    %453 = arith.addf %448, %452 : vector<32x256xf32>
    %c1_i32_262 = arith.constant 1 : i32
    %454 = tpu.dynamic_rotate %439 by %c1_i32_262 dim 1 : vector<32x256xf32>, i32 -> vector<32x256xf32>
    %c3_263 = arith.constant 3 : index
    %c0_264 = arith.constant 0 : index
    %c0_265 = arith.constant 0 : index
    %455 = vector.load %arg20[%c3_263, %c0_264, %c0_265] : memref<9x32x256xf32, #tpu.memory_space<vmem>>, vector<1x32x256xf32>
    %456 = vector.shape_cast %455 : vector<1x32x256xf32> to vector<32x256xf32>
    %457 = arith.mulf %454, %456 : vector<32x256xf32>
    %458 = arith.addf %453, %457 : vector<32x256xf32>
    %c4_266 = arith.constant 4 : index
    %c0_267 = arith.constant 0 : index
    %c0_268 = arith.constant 0 : index
    %459 = vector.load %arg20[%c4_266, %c0_267, %c0_268] : memref<9x32x256xf32, #tpu.memory_space<vmem>>, vector<1x32x256xf32>
    %460 = vector.shape_cast %459 : vector<1x32x256xf32> to vector<32x256xf32>
    %461 = arith.mulf %439, %460 : vector<32x256xf32>
    %462 = arith.addf %458, %461 : vector<32x256xf32>
    %c255_i32_269 = arith.constant 255 : i32
    %463 = tpu.dynamic_rotate %439 by %c255_i32_269 dim 1 : vector<32x256xf32>, i32 -> vector<32x256xf32>
    %c5_270 = arith.constant 5 : index
    %c0_271 = arith.constant 0 : index
    %c0_272 = arith.constant 0 : index
    %464 = vector.load %arg20[%c5_270, %c0_271, %c0_272] : memref<9x32x256xf32, #tpu.memory_space<vmem>>, vector<1x32x256xf32>
    %465 = vector.shape_cast %464 : vector<1x32x256xf32> to vector<32x256xf32>
    %466 = arith.mulf %463, %465 : vector<32x256xf32>
    %467 = arith.addf %462, %466 : vector<32x256xf32>
    %c241_i32_273 = arith.constant 241 : i32
    %468 = tpu.dynamic_rotate %439 by %c241_i32_273 dim 1 : vector<32x256xf32>, i32 -> vector<32x256xf32>
    %c6_274 = arith.constant 6 : index
    %c0_275 = arith.constant 0 : index
    %c0_276 = arith.constant 0 : index
    %469 = vector.load %arg20[%c6_274, %c0_275, %c0_276] : memref<9x32x256xf32, #tpu.memory_space<vmem>>, vector<1x32x256xf32>
    %470 = vector.shape_cast %469 : vector<1x32x256xf32> to vector<32x256xf32>
    %471 = arith.mulf %468, %470 : vector<32x256xf32>
    %472 = arith.addf %467, %471 : vector<32x256xf32>
    %c240_i32_277 = arith.constant 240 : i32
    %473 = tpu.dynamic_rotate %439 by %c240_i32_277 dim 1 : vector<32x256xf32>, i32 -> vector<32x256xf32>
    %c7_278 = arith.constant 7 : index
    %c0_279 = arith.constant 0 : index
    %c0_280 = arith.constant 0 : index
    %474 = vector.load %arg20[%c7_278, %c0_279, %c0_280] : memref<9x32x256xf32, #tpu.memory_space<vmem>>, vector<1x32x256xf32>
    %475 = vector.shape_cast %474 : vector<1x32x256xf32> to vector<32x256xf32>
    %476 = arith.mulf %473, %475 : vector<32x256xf32>
    %477 = arith.addf %472, %476 : vector<32x256xf32>
    %c239_i32_281 = arith.constant 239 : i32
    %478 = tpu.dynamic_rotate %439 by %c239_i32_281 dim 1 : vector<32x256xf32>, i32 -> vector<32x256xf32>
    %c8_282 = arith.constant 8 : index
    %c0_283 = arith.constant 0 : index
    %c0_284 = arith.constant 0 : index
    %479 = vector.load %arg20[%c8_282, %c0_283, %c0_284] : memref<9x32x256xf32, #tpu.memory_space<vmem>>, vector<1x32x256xf32>
    %480 = vector.shape_cast %479 : vector<1x32x256xf32> to vector<32x256xf32>
    %481 = arith.mulf %478, %480 : vector<32x256xf32>
    %482 = arith.addf %477, %481 : vector<32x256xf32>
    %c0_285 = arith.constant 0 : index
    %c0_286 = arith.constant 0 : index
    %483 = vector.load %arg21[%c0_285, %c0_286] : memref<32x1xf32, #tpu.memory_space<vmem>>, vector<32x1xf32>
    %484 = vector.broadcast %483 : vector<32x1xf32> to vector<32x256xf32>
    %485 = arith.addf %482, %484 : vector<32x256xf32>
    %cst_287 = arith.constant 5.000000e-01 : f32
    %486 = vector.broadcast %cst_287 : f32 to vector<32x256xf32>
    %487 = arith.mulf %486, %485 : vector<32x256xf32>
    %cst_288 = arith.constant 0.707106769 : f32
    %488 = vector.broadcast %cst_288 : f32 to vector<32x256xf32>
    %489 = arith.mulf %485, %488 : vector<32x256xf32>
    %cst_289 = arith.constant 0.000000e+00 : f32
    %490 = vector.broadcast %cst_289 : f32 to vector<32x256xf32>
    %491 = arith.cmpf oge, %489, %490 : vector<32x256xf32>
    %cst_290 = arith.constant 1.000000e+00 : f32
    %cst_291 = arith.constant -1.000000e+00 : f32
    %492 = vector.broadcast %cst_290 : f32 to vector<32x256xf32>
    %493 = vector.broadcast %cst_291 : f32 to vector<32x256xf32>
    %494 = arith.select %491, %492, %493 : vector<32x256xi1>, vector<32x256xf32>
    %495 = math.absf %489 : vector<32x256xf32>
    %cst_292 = arith.constant 0.327591091 : f32
    %496 = vector.broadcast %cst_292 : f32 to vector<32x256xf32>
    %497 = arith.mulf %496, %495 : vector<32x256xf32>
    %cst_293 = arith.constant 1.000000e+00 : f32
    %498 = vector.broadcast %cst_293 : f32 to vector<32x256xf32>
    %499 = arith.addf %498, %497 : vector<32x256xf32>
    %cst_294 = arith.constant 1.000000e+00 : f32
    %500 = vector.broadcast %cst_294 : f32 to vector<32x256xf32>
    %501 = arith.divf %500, %499 : vector<32x256xf32>
    %cst_295 = arith.constant 1.06140542 : f32
    %502 = vector.broadcast %cst_295 : f32 to vector<32x256xf32>
    %503 = arith.mulf %502, %501 : vector<32x256xf32>
    %cst_296 = arith.constant -1.45315206 : f32
    %504 = vector.broadcast %cst_296 : f32 to vector<32x256xf32>
    %505 = arith.addf %503, %504 : vector<32x256xf32>
    %506 = arith.mulf %505, %501 : vector<32x256xf32>
    %cst_297 = arith.constant 1.42141378 : f32
    %507 = vector.broadcast %cst_297 : f32 to vector<32x256xf32>
    %508 = arith.addf %506, %507 : vector<32x256xf32>
    %509 = arith.mulf %508, %501 : vector<32x256xf32>
    %cst_298 = arith.constant -0.284496725 : f32
    %510 = vector.broadcast %cst_298 : f32 to vector<32x256xf32>
    %511 = arith.addf %509, %510 : vector<32x256xf32>
    %512 = arith.mulf %511, %501 : vector<32x256xf32>
    %cst_299 = arith.constant 0.254829586 : f32
    %513 = vector.broadcast %cst_299 : f32 to vector<32x256xf32>
    %514 = arith.addf %512, %513 : vector<32x256xf32>
    %515 = arith.mulf %514, %501 : vector<32x256xf32>
    %cst_300 = arith.constant 0.000000e+00 : f32
    %516 = vector.broadcast %cst_300 : f32 to vector<32x256xf32>
    %517 = arith.subf %516, %495 : vector<32x256xf32>
    %518 = arith.mulf %517, %495 : vector<32x256xf32>
    %519 = math.exp %518 : vector<32x256xf32>
    %520 = arith.mulf %515, %519 : vector<32x256xf32>
    %cst_301 = arith.constant 1.000000e+00 : f32
    %521 = vector.broadcast %cst_301 : f32 to vector<32x256xf32>
    %522 = arith.subf %521, %520 : vector<32x256xf32>
    %523 = arith.mulf %494, %522 : vector<32x256xf32>
    %cst_302 = arith.constant 1.000000e+00 : f32
    %524 = vector.broadcast %cst_302 : f32 to vector<32x256xf32>
    %525 = arith.addf %524, %523 : vector<32x256xf32>
    %526 = arith.mulf %487, %525 : vector<32x256xf32>
    %c0_303 = arith.constant 0 : index
    %c0_304 = arith.constant 0 : index
    %527 = vector.load %arg22[%c0_303, %c0_304] : memref<32x1xf32, #tpu.memory_space<vmem>>, vector<32x1xf32>
    %528 = vector.broadcast %527 : vector<32x1xf32> to vector<32x256xf32>
    %529 = arith.mulf %526, %528 : vector<32x256xf32>
    %cst_305 = arith.constant dense<0.000000e+00> : vector<256xf32>
    %530 = vector.multi_reduction <add>, %529, %cst_305 [0] : vector<32x256xf32> to vector<256xf32>
    %531 = vector.shape_cast %530 : vector<256xf32> to vector<1x256xf32>
    %c0_306 = arith.constant 0 : index
    %c0_307 = arith.constant 0 : index
    %532 = vector.load %arg23[%c0_306, %c0_307] : memref<1x1xf32, #tpu.memory_space<vmem>>, vector<1x1xf32>
    %533 = vector.broadcast %532 : vector<1x1xf32> to vector<1x256xf32>
    %534 = arith.addf %531, %533 : vector<1x256xf32>
    %c0_308 = arith.constant 0 : index
    %c0_309 = arith.constant 0 : index
    %535 = vector.load %arg24[%c0_308, %c0_309] : memref<32x1xf32, #tpu.memory_space<vmem>>, vector<32x1xf32>
    %cst_310 = arith.constant 5.000000e-01 : f32
    %536 = vector.broadcast %cst_310 : f32 to vector<1x256xf32>
    %537 = arith.mulf %536, %534 : vector<1x256xf32>
    %cst_311 = arith.constant 0.707106769 : f32
    %538 = vector.broadcast %cst_311 : f32 to vector<1x256xf32>
    %539 = arith.mulf %534, %538 : vector<1x256xf32>
    %cst_312 = arith.constant 0.000000e+00 : f32
    %540 = vector.broadcast %cst_312 : f32 to vector<1x256xf32>
    %541 = arith.cmpf oge, %539, %540 : vector<1x256xf32>
    %cst_313 = arith.constant 1.000000e+00 : f32
    %cst_314 = arith.constant -1.000000e+00 : f32
    %542 = vector.broadcast %cst_313 : f32 to vector<1x256xf32>
    %543 = vector.broadcast %cst_314 : f32 to vector<1x256xf32>
    %544 = arith.select %541, %542, %543 : vector<1x256xi1>, vector<1x256xf32>
    %545 = math.absf %539 : vector<1x256xf32>
    %cst_315 = arith.constant 0.327591091 : f32
    %546 = vector.broadcast %cst_315 : f32 to vector<1x256xf32>
    %547 = arith.mulf %546, %545 : vector<1x256xf32>
    %cst_316 = arith.constant 1.000000e+00 : f32
    %548 = vector.broadcast %cst_316 : f32 to vector<1x256xf32>
    %549 = arith.addf %548, %547 : vector<1x256xf32>
    %cst_317 = arith.constant 1.000000e+00 : f32
    %550 = vector.broadcast %cst_317 : f32 to vector<1x256xf32>
    %551 = arith.divf %550, %549 : vector<1x256xf32>
    %cst_318 = arith.constant 1.06140542 : f32
    %552 = vector.broadcast %cst_318 : f32 to vector<1x256xf32>
    %553 = arith.mulf %552, %551 : vector<1x256xf32>
    %cst_319 = arith.constant -1.45315206 : f32
    %554 = vector.broadcast %cst_319 : f32 to vector<1x256xf32>
    %555 = arith.addf %553, %554 : vector<1x256xf32>
    %556 = arith.mulf %555, %551 : vector<1x256xf32>
    %cst_320 = arith.constant 1.42141378 : f32
    %557 = vector.broadcast %cst_320 : f32 to vector<1x256xf32>
    %558 = arith.addf %556, %557 : vector<1x256xf32>
    %559 = arith.mulf %558, %551 : vector<1x256xf32>
    %cst_321 = arith.constant -0.284496725 : f32
    %560 = vector.broadcast %cst_321 : f32 to vector<1x256xf32>
    %561 = arith.addf %559, %560 : vector<1x256xf32>
    %562 = arith.mulf %561, %551 : vector<1x256xf32>
    %cst_322 = arith.constant 0.254829586 : f32
    %563 = vector.broadcast %cst_322 : f32 to vector<1x256xf32>
    %564 = arith.addf %562, %563 : vector<1x256xf32>
    %565 = arith.mulf %564, %551 : vector<1x256xf32>
    %cst_323 = arith.constant 0.000000e+00 : f32
    %566 = vector.broadcast %cst_323 : f32 to vector<1x256xf32>
    %567 = arith.subf %566, %545 : vector<1x256xf32>
    %568 = arith.mulf %567, %545 : vector<1x256xf32>
    %569 = math.exp %568 : vector<1x256xf32>
    %570 = arith.mulf %565, %569 : vector<1x256xf32>
    %cst_324 = arith.constant 1.000000e+00 : f32
    %571 = vector.broadcast %cst_324 : f32 to vector<1x256xf32>
    %572 = arith.subf %571, %570 : vector<1x256xf32>
    %573 = arith.mulf %544, %572 : vector<1x256xf32>
    %cst_325 = arith.constant 1.000000e+00 : f32
    %574 = vector.broadcast %cst_325 : f32 to vector<1x256xf32>
    %575 = arith.addf %574, %573 : vector<1x256xf32>
    %576 = arith.mulf %537, %575 : vector<1x256xf32>
    %577 = vector.broadcast %576 : vector<1x256xf32> to vector<32x256xf32>
    %578 = arith.subf %526, %577 : vector<32x256xf32>
    %579 = vector.broadcast %535 : vector<32x1xf32> to vector<32x256xf32>
    %580 = arith.mulf %579, %578 : vector<32x256xf32>
    %581 = arith.addf %526, %580 : vector<32x256xf32>
    %c0_326 = arith.constant 0 : index
    %c0_327 = arith.constant 0 : index
    %582 = vector.load %arg25[%c0_326, %c0_327] : memref<8x32xf32, #tpu.memory_space<vmem>>, vector<8x32xf32>
    %cst_328 = arith.constant dense<0.000000e+00> : vector<8x256xf32>
    %583 = tpu.matmul %582, %581, %cst_328 {dimension_numbers = #tpu.dot_dimension_numbers<[1], [0], [0], [1], [0, 0, 1, 1], [], []>} : vector<8x32xf32>, vector<32x256xf32>, vector<8x256xf32> -> vector<8x256xf32>
    %c0_329 = arith.constant 0 : index
    %c0_330 = arith.constant 0 : index
    %584 = vector.load %arg26[%c0_329, %c0_330] : memref<8x1xf32, #tpu.memory_space<vmem>>, vector<8x1xf32>
    %585 = vector.broadcast %584 : vector<8x1xf32> to vector<8x256xf32>
    %586 = arith.addf %583, %585 : vector<8x256xf32>
    %587 = arith.addf %434, %586 : vector<8x256xf32>
    %c0_331 = arith.constant 0 : index
    %c0_332 = arith.constant 0 : index
    %c0_333 = arith.constant 0 : index
    %588 = vector.load %arg27[%c0_331, %c0_332, %c0_333] : memref<1x8x256xf32, #tpu.memory_space<vmem>>, vector<1x8x256xf32>
    %589 = vector.shape_cast %588 : vector<1x8x256xf32> to vector<8x256xf32>
    %590 = vector.shape_cast %587 : vector<8x256xf32> to vector<1x8x256xf32>
    tpu.vector_store %arg27[%c0_331, %c0_332, %c0_333], %590 {strides = array<i32>} : memref<1x8x256xf32, #tpu.memory_space<vmem>>, vector<1x8x256xf32>,
    return
  }
  func.func @transform_0(%arg0: i32) -> (i32, i32, i32) {
    %c0_i32 = arith.constant 0 : i32
    %c0_i32_0 = arith.constant 0 : i32
    %c0_i32_1 = arith.constant 0 : i32
    return %arg0, %c0_i32, %c0_i32_0 : i32, i32, i32
  }
  func.func @transform_1(%arg0: i32) -> (i32, i32) {
    %c0_i32 = arith.constant 0 : i32
    %c0_i32_0 = arith.constant 0 : i32
    %c0_i32_1 = arith.constant 0 : i32
    return %c0_i32, %c0_i32_0 : i32, i32
  }
  func.func @transform_2(%arg0: i32) -> (i32, i32) {
    %c0_i32 = arith.constant 0 : i32
    %c0_i32_0 = arith.constant 0 : i32
    %c0_i32_1 = arith.constant 0 : i32
    return %c0_i32, %c0_i32_0 : i32, i32
  }
  func.func @transform_3(%arg0: i32) -> (i32, i32) {
    %c0_i32 = arith.constant 0 : i32
    %c0_i32_0 = arith.constant 0 : i32
    %c0_i32_1 = arith.constant 0 : i32
    return %c0_i32, %c0_i32_0 : i32, i32
  }
  func.func @transform_4(%arg0: i32) -> (i32, i32) {
    %c0_i32 = arith.constant 0 : i32
    %c0_i32_0 = arith.constant 0 : i32
    %c0_i32_1 = arith.constant 0 : i32
    return %c0_i32, %c0_i32_0 : i32, i32
  }
  func.func @transform_5(%arg0: i32) -> (i32, i32) {
    %c0_i32 = arith.constant 0 : i32
    %c0_i32_0 = arith.constant 0 : i32
    %c0_i32_1 = arith.constant 0 : i32
    return %c0_i32, %c0_i32_0 : i32, i32
  }
  func.func @transform_6(%arg0: i32) -> (i32, i32) {
    %c0_i32 = arith.constant 0 : i32
    %c0_i32_0 = arith.constant 0 : i32
    %c0_i32_1 = arith.constant 0 : i32
    return %c0_i32, %c0_i32_0 : i32, i32
  }
  func.func @transform_7(%arg0: i32) -> (i32, i32) {
    %c0_i32 = arith.constant 0 : i32
    %c0_i32_0 = arith.constant 0 : i32
    %c0_i32_1 = arith.constant 0 : i32
    return %c0_i32, %c0_i32_0 : i32, i32
  }
  func.func @transform_8(%arg0: i32) -> (i32, i32, i32) {
    %c0_i32 = arith.constant 0 : i32
    %c0_i32_0 = arith.constant 0 : i32
    %c0_i32_1 = arith.constant 0 : i32
    %c0_i32_2 = arith.constant 0 : i32
    return %c0_i32, %c0_i32_0, %c0_i32_1 : i32, i32, i32
  }
  func.func @transform_9(%arg0: i32) -> (i32, i32) {
    %c0_i32 = arith.constant 0 : i32
    %c0_i32_0 = arith.constant 0 : i32
    %c0_i32_1 = arith.constant 0 : i32
    return %c0_i32, %c0_i32_0 : i32, i32
  }
  func.func @transform_10(%arg0: i32) -> (i32, i32, i32) {
    %c0_i32 = arith.constant 0 : i32
    %c0_i32_0 = arith.constant 0 : i32
    %c0_i32_1 = arith.constant 0 : i32
    %c0_i32_2 = arith.constant 0 : i32
    return %c0_i32, %c0_i32_0, %c0_i32_1 : i32, i32, i32
  }
  func.func @transform_11(%arg0: i32) -> (i32, i32, i32) {
    %c0_i32 = arith.constant 0 : i32
    %c0_i32_0 = arith.constant 0 : i32
    %c0_i32_1 = arith.constant 0 : i32
    %c0_i32_2 = arith.constant 0 : i32
    return %c0_i32, %c0_i32_0, %c0_i32_1 : i32, i32, i32
  }
  func.func @transform_12(%arg0: i32) -> (i32, i32) {
    %c0_i32 = arith.constant 0 : i32
    %c0_i32_0 = arith.constant 0 : i32
    %c0_i32_1 = arith.constant 0 : i32
    return %c0_i32, %c0_i32_0 : i32, i32
  }
  func.func @transform_13(%arg0: i32) -> (i32, i32) {
    %c0_i32 = arith.constant 0 : i32
    %c0_i32_0 = arith.constant 0 : i32
    %c0_i32_1 = arith.constant 0 : i32
    return %c0_i32, %c0_i32_0 : i32, i32
  }
  func.func @transform_14(%arg0: i32) -> (i32, i32) {
    %c0_i32 = arith.constant 0 : i32
    %c0_i32_0 = arith.constant 0 : i32
    %c0_i32_1 = arith.constant 0 : i32
    return %c0_i32, %c0_i32_0 : i32, i32
  }
  func.func @transform_15(%arg0: i32) -> (i32, i32) {
    %c0_i32 = arith.constant 0 : i32
    %c0_i32_0 = arith.constant 0 : i32
    %c0_i32_1 = arith.constant 0 : i32
    return %c0_i32, %c0_i32_0 : i32, i32
  }
  func.func @transform_16(%arg0: i32) -> (i32, i32) {
    %c0_i32 = arith.constant 0 : i32
    %c0_i32_0 = arith.constant 0 : i32
    %c0_i32_1 = arith.constant 0 : i32
    return %c0_i32, %c0_i32_0 : i32, i32
  }
  func.func @transform_17(%arg0: i32) -> (i32, i32) {
    %c0_i32 = arith.constant 0 : i32
    %c0_i32_0 = arith.constant 0 : i32
    %c0_i32_1 = arith.constant 0 : i32
    return %c0_i32, %c0_i32_0 : i32, i32
  }
  func.func @transform_18(%arg0: i32) -> (i32, i32) {
    %c0_i32 = arith.constant 0 : i32
    %c0_i32_0 = arith.constant 0 : i32
    %c0_i32_1 = arith.constant 0 : i32
    return %c0_i32, %c0_i32_0 : i32, i32
  }
  func.func @transform_19(%arg0: i32) -> (i32, i32, i32) {
    %c0_i32 = arith.constant 0 : i32
    %c0_i32_0 = arith.constant 0 : i32
    %c0_i32_1 = arith.constant 0 : i32
    %c0_i32_2 = arith.constant 0 : i32
    return %c0_i32, %c0_i32_0, %c0_i32_1 : i32, i32, i32
  }
  func.func @transform_20(%arg0: i32) -> (i32, i32) {
    %c0_i32 = arith.constant 0 : i32
    %c0_i32_0 = arith.constant 0 : i32
    %c0_i32_1 = arith.constant 0 : i32
    return %c0_i32, %c0_i32_0 : i32, i32
  }
  func.func @transform_21(%arg0: i32) -> (i32, i32) {
    %c0_i32 = arith.constant 0 : i32
    %c0_i32_0 = arith.constant 0 : i32
    %c0_i32_1 = arith.constant 0 : i32
    return %c0_i32, %c0_i32_0 : i32, i32
  }
  func.func @transform_22(%arg0: i32) -> (i32, i32) {
    %c0_i32 = arith.constant 0 : i32
    %c0_i32_0 = arith.constant 0 : i32
    %c0_i32_1 = arith.constant 0 : i32
    return %c0_i32, %c0_i32_0 : i32, i32
  }
  func.func @transform_23(%arg0: i32) -> (i32, i32) {
    %c0_i32 = arith.constant 0 : i32
    %c0_i32_0 = arith.constant 0 : i32
    %c0_i32_1 = arith.constant 0 : i32
    return %c0_i32, %c0_i32_0 : i32, i32
  }
  func.func @transform_24(%arg0: i32) -> (i32, i32) {
    %c0_i32 = arith.constant 0 : i32
    %c0_i32_0 = arith.constant 0 : i32
    %c0_i32_1 = arith.constant 0 : i32
    return %c0_i32, %c0_i32_0 : i32, i32
  }
  func.func @transform_25(%arg0: i32) -> (i32, i32) {
    %c0_i32 = arith.constant 0 : i32
    %c0_i32_0 = arith.constant 0 : i32
    %c0_i32_1 = arith.constant 0 : i32
    return %c0_i32, %c0_i32_0 : i32, i32
  }
  func.func @transform_26(%arg0: i32) -> (i32, i32, i32) {
    %c0_i32 = arith.constant 0 : i32
    %c0_i32_0 = arith.constant 0 : i32
    %c0_i32_1 = arith.constant 0 : i32
    return %arg0, %c0_i32, %c0_i32_0 : i32, i32, i32
  }
}

</mosaic_0001>

<llo_original>
// kernel: mul.82
$region0: #{mul.82}
  %s0 = inlined_call_operand.vmem [shape: f32[5,5,8], index: 0, kind: input, shape index: {}]
  %s1 = inlined_call_operand.vmem [shape: f32[25,8], index: 1, kind: output, shape index: {}]
  %v2 = vld [vmem:[%s0] sm:$0x1f]
  %vm3 = vcmask 64512
  %4 = vst.msk [vmem:[%s1] sm:$0x1f] %vm3, %v2
  %s5 = scalar_lea.vmem %s0, 8
  %v6 = vld [vmem:[%s5] sm:$0x1f]
  %vm7 = vcmask 64512
  %s8 = scalar_lea.vmem %s1, 5
  %9 = vst.msk [vmem:[%s8] sm:$0x1f] %vm7, %v6
  %s10 = scalar_lea.vmem %s0, 16
  %v11 = vld [vmem:[%s10] sm:$0x1f]
  %vm12 = vcmask 64512
  %s13 = scalar_lea.vmem %s1, 10
  %14 = vst.msk [vmem:[%s13] sm:$0x1f] %vm12, %v11
  %s15 = scalar_lea.vmem %s0, 24
  %v16 = vld [vmem:[%s15] sm:$0x1f]
  %vm17 = vcmask 64512
  %s18 = scalar_lea.vmem %s1, 15
  %19 = vst.msk [vmem:[%s18] sm:$0x1f] %vm17, %v16
  %s20 = scalar_lea.vmem %s0, 32
  %v21 = vld [vmem:[%s20] sm:$0x1f]
  %vm22 = vcmask 64512
  %s23 = scalar_lea.vmem %s1, 20
  %24 = vst.msk [vmem:[%s23] sm:$0x1f] %vm22, %v21

// kernel: mul.96
$region0: #{mul.96}
  %s0 = inlined_call_operand.vmem [shape: f32[3,3,32], index: 0, kind: input, shape index: {}]
  %s1 = inlined_call_operand.vmem [shape: f32[9,32], index: 1, kind: output, shape index: {}]
  $region1: #{mul.96} parent=0
    #allocation0 [shape = 'u8[12288]{0}', space=vmem, size = 0x3000, scoped, tag = 'scoped mem for input reshape']
    %s3 = sshllo.u32 0, 4
    %s4 = smul.addr 4, 2
    %s5 = scalar_lea.vmem %s0, %s4
    %v6 = vld [vmem:[%s5] sm:%s3]
    %s7 = scalar_lea.vmem [#allocation0], 16
    %8 = vst [vmem:[%s7] sm:%s3] %v6
    %s9 = scalar_lea.vmem %s0, 4
    %v10 = vld [vmem:[%s9] sm:%s3]
    %s11 = scalar_lea.vmem [#allocation0], 8
    %12 = vst [vmem:[%s11] sm:%s3] %v10
    %v13 = vld [vmem:[%s0] sm:%s3]
    %14 = vst [vmem:[#allocation0] sm:%s3] %v13
    %v15 = vld [vmem:[#allocation0] sm:$0x7]
    %vm16 = vcmask 261120
    %17 = vst.msk [vmem:[%s1] sm:$0x7] %vm16, %v15
    %s18 = scalar_lea.vmem [#allocation0], 8
    %v19 = vld [vmem:[%s18] sm:$0x7]
    %vm20 = vcmask 261120
    %s21 = scalar_lea.vmem %s1, 3
    %22 = vst.msk [vmem:[%s21] sm:$0x7] %vm20, %v19
    %s23 = scalar_lea.vmem [#allocation0], 16
    %v24 = vld [vmem:[%s23] sm:$0x7]
    %vm25 = vcmask 261120
    %s26 = scalar_lea.vmem %s1, 6
    %27 = vst.msk [vmem:[%s26] sm:$0x7] %vm25, %v24

// kernel: moga_sub_block.1
$region0: #{moga_sub_block.1}
  #allocation0 [shape = 'u32[]', space=smem, size = 0x4, offset = 0x4, fixed_abs, tag = 'smem constant byte address 0x4 - core index']
  #allocation1 [shape = 'u32[144,128]{1,0:T(1,128)}', space=vmem, size = 0x12000, scoped, tag = 'internal scratch']
  #allocation2 [shape = 'f32[1,1]{1,0:T(1,128)S(1)}', space=vmem, size = 0x200, scoped, tag = 'scoped memory for moga_sub_block.1']
  %s0 = inlined_call_operand.vmem [shape: f32[2,8,256], index: 0, kind: input, shape index: {}]
  %s1 = inlined_call_operand.vmem [shape: f32[8,1], index: 1, kind: input, shape index: {}]
  %s2 = inlined_call_operand.vmem [shape: f32[8,1], index: 2, kind: input, shape index: {}]
  %s3 = inlined_call_operand.vmem [shape: f32[8,8], index: 3, kind: input, shape index: {}]
  %s4 = inlined_call_operand.vmem [shape: f32[8,1], index: 4, kind: input, shape index: {}]
  %s5 = inlined_call_operand.vmem [shape: f32[8,1], index: 5, kind: input, shape index: {}]
  %s6 = inlined_call_operand.vmem [shape: f32[8,8], index: 6, kind: input, shape index: {}]
  %s7 = inlined_call_operand.vmem [shape: f32[8,1], index: 7, kind: input, shape index: {}]
  %s8 = inlined_call_operand.vmem [shape: f32[25,8,256], index: 8, kind: input, shape index: {}]
  %s9 = inlined_call_operand.vmem [shape: f32[8,1], index: 9, kind: input, shape index: {}]
  %s10 = inlined_call_operand.vmem [shape: f32[25,8,256], index: 10, kind: input, shape index: {}]
  %s11 = inlined_call_operand.vmem [shape: f32[25,8,256], index: 11, kind: input, shape index: {}]
  %s12 = inlined_call_operand.vmem [shape: f32[8,1], index: 12, kind: input, shape index: {}]
  %s13 = inlined_call_operand.vmem [shape: f32[8,1], index: 13, kind: input, shape index: {}]
  %s14 = inlined_call_operand.vmem [shape: f32[8,8], index: 14, kind: input, shape index: {}]
  %s15 = inlined_call_operand.vmem [shape: f32[8,1], index: 15, kind: input, shape index: {}]
  %s16 = inlined_call_operand.vmem [shape: f32[8,8], index: 16, kind: input, shape index: {}]
  %s17 = inlined_call_operand.vmem [shape: f32[32,8], index: 17, kind: input, shape index: {}]
  %s18 = inlined_call_operand.vmem [shape: f32[32,1], index: 18, kind: input, shape index: {}]
  %s19 = inlined_call_operand.vmem [shape: f32[9,32,256], index: 19, kind: input, shape index: {}]
  %s20 = inlined_call_operand.vmem [shape: f32[32,1], index: 20, kind: input, shape index: {}]
  %s21 = inlined_call_operand.vmem [shape: f32[32,1], index: 21, kind: input, shape index: {}]
  %s22 = inlined_call_operand.<no memory space> [shape: f32[1,1], index: 22, kind: input, shape index: {}]
  %s23 = inlined_call_operand.vmem [shape: f32[32,1], index: 23, kind: input, shape index: {}]
  %s24 = inlined_call_operand.vmem [shape: f32[8,32], index: 24, kind: input, shape index: {}]
  %s25 = inlined_call_operand.vmem [shape: f32[8,1], index: 25, kind: input, shape index: {}]
  %s26 = inlined_call_operand.vmem [shape: f32[2,8,256], index: 26, kind: output, shape index: {}]
  %s27 = sld [smem:[#allocation0]]
  $region137: #{moga_sub_block.1} parent=0
    _
  %s29 = ssub.s32 1, %s27
  %s30 = scalar_select 0, %s29, %s27
  %v31 = vstv %s22
  %32 = vst [vmem:[#allocation2] sm:$0x1] %v31
  loop: start=0, step=1, limit=4
  $region2: #{moga_sub_block.1} parent=0 // loop_pre_header
    _
  $region3: #{moga_sub_block.1} parent=0 // loop_header
    %s34 = sphi 0, %s38
    %p35 = scmp.ge.s32.totalorder %s34, 4
    %s44 = sphi 0, %s46
    %s47 = sphi 0, %s44
    %s48 = sphi 0, %s47
    %s64 = sphi 0, %s48
    %s68 = sphi 0, %s68
    %s70 = sphi 0, %s68
    %s71 = sphi 0, %s70
    %s85 = sphi 0, %s71
    %s89 = sphi 0, %s89
    %s91 = sphi 0, %s89
    %s92 = sphi 0, %s91
    %s106 = sphi 0, %s92
    %s110 = sphi 0, %s110
    %s112 = sphi 0, %s110
    %s113 = sphi 0, %s112
    %s127 = sphi 0, %s113
    %s131 = sphi 0, %s131
    %s133 = sphi 0, %s131
    %s134 = sphi 0, %s133
    %s148 = sphi 0, %s134
    %s152 = sphi 0, %s152
    %s154 = sphi 0, %s152
    %s155 = sphi 0, %s154
    %s169 = sphi 0, %s155
    %s173 = sphi 0, %s173
    %s175 = sphi 0, %s173
    %s176 = sphi 0, %s175
    %s190 = sphi 0, %s176
    %s194 = sphi 0, %s194
    %s196 = sphi 0, %s194
    %s197 = sphi 0, %s196
    %s211 = sphi 0, %s197
    %s215 = sphi 0, %s215
    %s217 = sphi 0, %s215
    %s218 = sphi 0, %s217
    %s232 = sphi 0, %s218
    %s236 = sphi 0, %s236
    %s238 = sphi 0, %s236
    %s239 = sphi 0, %s238
    %s253 = sphi 0, %s239
    %s257 = sphi 0, %s257
    %s259 = sphi 0, %s257
    %s260 = sphi 0, %s259
    %s274 = sphi 0, %s260
    %s278 = sphi 0, %s278
    %s280 = sphi 0, %s278
    %s281 = sphi 0, %s280
    %s295 = sphi 0, %s281
    %s299 = sphi 0, %s299
    %s301 = sphi 0, %s299
    %s302 = sphi 0, %s301
    %s316 = sphi 0, %s302
    %s320 = sphi 0, %s320
    %s322 = sphi 0, %s320
    %s323 = sphi 0, %s322
    %s337 = sphi 0, %s323
    %s341 = sphi 0, %s341
    %s343 = sphi 0, %s341
    %s344 = sphi 0, %s343
    %s358 = sphi 0, %s344
    %s362 = sphi 0, %s362
    %s364 = sphi 0, %s362
    %s365 = sphi 0, %s364
    %s379 = sphi 0, %s365
    %s383 = sphi 0, %s383
    %s385 = sphi 0, %s383
    %s386 = sphi 0, %s385
    %s400 = sphi 0, %s386
    %s404 = sphi 0, %s404
    %s406 = sphi 0, %s404
    %s407 = sphi 0, %s406
    %s421 = sphi 0, %s407
    %s425 = sphi 0, %s425
    %s427 = sphi 0, %s425
    %s428 = sphi 0, %s427
    %s442 = sphi 0, %s428
    %s446 = sphi 0, %s446
    %s448 = sphi 0, %s446
    %s449 = sphi 0, %s448
    %s463 = sphi 0, %s449
    %s467 = sphi 0, %s467
    %s469 = sphi 0, %s467
    %s470 = sphi 0, %s469
    %s484 = sphi 0, %s470
    %s488 = sphi 0, %s488
    %s490 = sphi 0, %s488
    %s491 = sphi 0, %s490
    %s505 = sphi 0, %s491
    %s509 = sphi 0, %s509
    %s511 = sphi 0, %s509
    %s512 = sphi 0, %s511
    %s526 = sphi 0, %s512
    %s530 = sphi 0, %s530
    %s532 = sphi 0, %s530
    %s533 = sphi 0, %s532
    %s547 = sphi 0, %s533
    %s551 = sphi 0, %s551
    %s553 = sphi 0, %s551
    %s554 = sphi 0, %s553
    %s568 = sphi 0, %s554
    %s572 = sphi 0, %s572
    %s574 = sphi 0, %s572
    %s575 = sphi 0, %s574
    %s589 = sphi 0, %s575
    %s595 = sphi 0, %s597
    %s598 = sphi 0, %s595
    %s599 = sphi 0, %s598
    %s615 = sphi 0, %s599
  $region4: #{moga_sub_block.1} parent=0 // loop_header_branch
    %37 = sbr.rel (%p35) target = $region8
  $region5: #{moga_sub_block.1} parent=0 // loop_body
    %s39 = ssub.s32 %s34, 1
    %s40 = ssub.s32 %s34, 2
    %s41 = sadd.s32 %s34, 1
    %s42 = ssub.s32 %s34, %s41
    %p43 = scmp.eq.s32.totalorder %s42, 0
    %s45 = sadd.s32 %s44, 1
    %s46 = scalar_select %p43, %s44, %s45
    %p49 = pneg %p43
    %p50 = scmp.eq.s32.totalorder %s34, 1
    %p51 = por %p49, %p50
    %p52 = scmp.ne.s32.totalorder %s44, %s47
    %p53 = scmp.eq.s32.totalorder %s34, 0
    %p54 = por %p52, %p53
    %p55 = scmp.ne.s32.totalorder %s44, %s47
    %p56 = scmp.eq.s32.totalorder %s39, 1
    %p57 = por %p55, %p56
    %p58 = scmp.ne.s32.totalorder %s47, %s48
    %p59 = scmp.eq.s32.totalorder %s39, 0
    %p60 = por %p58, %p59
    %p61 = scmp.ne.s32.totalorder %s47, %s48
    %p62 = scmp.eq.s32.totalorder %s40, 1
    %p63 = por %p61, %p62
    %p65 = scmp.ne.s32.totalorder %s48, %s64
    %p66 = scmp.eq.s32.totalorder %s40, 0
    %p67 = por %p65, %p66
    %s69 = sadd.s32 %s68, 1
    %p72 = scmp.eq.s32.totalorder %s34, 1
    %p73 = scmp.ne.s32.totalorder %s68, %s70
    %p74 = scmp.eq.s32.totalorder %s34, 0
    %p75 = por %p73, %p74
    %p76 = scmp.ne.s32.totalorder %s68, %s70
    %p77 = scmp.eq.s32.totalorder %s39, 1
    %p78 = por %p76, %p77
    %p79 = scmp.ne.s32.totalorder %s70, %s71
    %p80 = scmp.eq.s32.totalorder %s39, 0
    %p81 = por %p79, %p80
    %p82 = scmp.ne.s32.totalorder %s70, %s71
    %p83 = scmp.eq.s32.totalorder %s40, 1
    %p84 = por %p82, %p83
    %p86 = scmp.ne.s32.totalorder %s71, %s85
    %p87 = scmp.eq.s32.totalorder %s40, 0
    %p88 = por %p86, %p87
    %s90 = sadd.s32 %s89, 1
    %p93 = scmp.eq.s32.totalorder %s34, 1
    %p94 = scmp.ne.s32.totalorder %s89, %s91
    %p95 = scmp.eq.s32.totalorder %s34, 0
    %p96 = por %p94, %p95
    %p97 = scmp.ne.s32.totalorder %s89, %s91
    %p98 = scmp.eq.s32.totalorder %s39, 1
    %p99 = por %p97, %p98
    %p100 = scmp.ne.s32.totalorder %s91, %s92
    %p101 = scmp.eq.s32.totalorder %s39, 0
    %p102 = por %p100, %p101
    %p103 = scmp.ne.s32.totalorder %s91, %s92
    %p104 = scmp.eq.s32.totalorder %s40, 1
    %p105 = por %p103, %p104
    %p107 = scmp.ne.s32.totalorder %s92, %s106
    %p108 = scmp.eq.s32.totalorder %s40, 0
    %p109 = por %p107, %p108
    %s111 = sadd.s32 %s110, 1
    %p114 = scmp.eq.s32.totalorder %s34, 1
    %p115 = scmp.ne.s32.totalorder %s110, %s112
    %p116 = scmp.eq.s32.totalorder %s34, 0
    %p117 = por %p115, %p116
    %p118 = scmp.ne.s32.totalorder %s110, %s112
    %p119 = scmp.eq.s32.totalorder %s39, 1
    %p120 = por %p118, %p119
    %p121 = scmp.ne.s32.totalorder %s112, %s113
    %p122 = scmp.eq.s32.totalorder %s39, 0
    %p123 = por %p121, %p122
    %p124 = scmp.ne.s32.totalorder %s112, %s113
    %p125 = scmp.eq.s32.totalorder %s40, 1
    %p126 = por %p124, %p125
    %p128 = scmp.ne.s32.totalorder %s113, %s127
    %p129 = scmp.eq.s32.totalorder %s40, 0
    %p130 = por %p128, %p129
    %s132 = sadd.s32 %s131, 1
    %p135 = scmp.eq.s32.totalorder %s34, 1
    %p136 = scmp.ne.s32.totalorder %s131, %s133
    %p137 = scmp.eq.s32.totalorder %s34, 0
    %p138 = por %p136, %p137
    %p139 = scmp.ne.s32.totalorder %s131, %s133
    %p140 = scmp.eq.s32.totalorder %s39, 1
    %p141 = por %p139, %p140
    %p142 = scmp.ne.s32.totalorder %s133, %s134
    %p143 = scmp.eq.s32.totalorder %s39, 0
    %p144 = por %p142, %p143
    %p145 = scmp.ne.s32.totalorder %s133, %s134
    %p146 = scmp.eq.s32.totalorder %s40, 1
    %p147 = por %p145, %p146
    %p149 = scmp.ne.s32.totalorder %s134, %s148
    %p150 = scmp.eq.s32.totalorder %s40, 0
    %p151 = por %p149, %p150
    %s153 = sadd.s32 %s152, 1
    %p156 = scmp.eq.s32.totalorder %s34, 1
    %p157 = scmp.ne.s32.totalorder %s152, %s154
    %p158 = scmp.eq.s32.totalorder %s34, 0
    %p159 = por %p157, %p158
    %p160 = scmp.ne.s32.totalorder %s152, %s154
    %p161 = scmp.eq.s32.totalorder %s39, 1
    %p162 = por %p160, %p161
    %p163 = scmp.ne.s32.totalorder %s154, %s155
    %p164 = scmp.eq.s32.totalorder %s39, 0
    %p165 = por %p163, %p164
    %p166 = scmp.ne.s32.totalorder %s154, %s155
    %p167 = scmp.eq.s32.totalorder %s40, 1
    %p168 = por %p166, %p167
    %p170 = scmp.ne.s32.totalorder %s155, %s169
    %p171 = scmp.eq.s32.totalorder %s40, 0
    %p172 = por %p170, %p171
    %s174 = sadd.s32 %s173, 1
    %p177 = scmp.eq.s32.totalorder %s34, 1
    %p178 = scmp.ne.s32.totalorder %s173, %s175
    %p179 = scmp.eq.s32.totalorder %s34, 0
    %p180 = por %p178, %p179
    %p181 = scmp.ne.s32.totalorder %s173, %s175
    %p182 = scmp.eq.s32.totalorder %s39, 1
    %p183 = por %p181, %p182
    %p184 = scmp.ne.s32.totalorder %s175, %s176
    %p185 = scmp.eq.s32.totalorder %s39, 0
    %p186 = por %p184, %p185
    %p187 = scmp.ne.s32.totalorder %s175, %s176
    %p188 = scmp.eq.s32.totalorder %s40, 1
    %p189 = por %p187, %p188
    %p191 = scmp.ne.s32.totalorder %s176, %s190
    %p192 = scmp.eq.s32.totalorder %s40, 0
    %p193 = por %p191, %p192
    %s195 = sadd.s32 %s194, 1
    %p198 = scmp.eq.s32.totalorder %s34, 1
    %p199 = scmp.ne.s32.totalorder %s194, %s196
    %p200 = scmp.eq.s32.totalorder %s34, 0
    %p201 = por %p199, %p200
    %p202 = scmp.ne.s32.totalorder %s194, %s196
    %p203 = scmp.eq.s32.totalorder %s39, 1
    %p204 = por %p202, %p203
    %p205 = scmp.ne.s32.totalorder %s196, %s197
    %p206 = scmp.eq.s32.totalorder %s39, 0
    %p207 = por %p205, %p206
    %p208 = scmp.ne.s32.totalorder %s196, %s197
    %p209 = scmp.eq.s32.totalorder %s40, 1
    %p210 = por %p208, %p209
    %p212 = scmp.ne.s32.totalorder %s197, %s211
    %p213 = scmp.eq.s32.totalorder %s40, 0
    %p214 = por %p212, %p213
    %s216 = sadd.s32 %s215, 1
    %p219 = scmp.eq.s32.totalorder %s34, 1
    %p220 = scmp.ne.s32.totalorder %s215, %s217
    %p221 = scmp.eq.s32.totalorder %s34, 0
    %p222 = por %p220, %p221
    %p223 = scmp.ne.s32.totalorder %s215, %s217
    %p224 = scmp.eq.s32.totalorder %s39, 1
    %p225 = por %p223, %p224
    %p226 = scmp.ne.s32.totalorder %s217, %s218
    %p227 = scmp.eq.s32.totalorder %s39, 0
    %p228 = por %p226, %p227
    %p229 = scmp.ne.s32.totalorder %s217, %s218
    %p230 = scmp.eq.s32.totalorder %s40, 1
    %p231 = por %p229, %p230
    %p233 = scmp.ne.s32.totalorder %s218, %s232
    %p234 = scmp.eq.s32.totalorder %s40, 0
    %p235 = por %p233, %p234
    %s237 = sadd.s32 %s236, 1
    %p240 = scmp.eq.s32.totalorder %s34, 1
    %p241 = scmp.ne.s32.totalorder %s236, %s238
    %p242 = scmp.eq.s32.totalorder %s34, 0
    %p243 = por %p241, %p242
    %p244 = scmp.ne.s32.totalorder %s236, %s238
    %p245 = scmp.eq.s32.totalorder %s39, 1
    %p246 = por %p244, %p245
    %p247 = scmp.ne.s32.totalorder %s238, %s239
    %p248 = scmp.eq.s32.totalorder %s39, 0
    %p249 = por %p247, %p248
    %p250 = scmp.ne.s32.totalorder %s238, %s239
    %p251 = scmp.eq.s32.totalorder %s40, 1
    %p252 = por %p250, %p251
    %p254 = scmp.ne.s32.totalorder %s239, %s253
    %p255 = scmp.eq.s32.totalorder %s40, 0
    %p256 = por %p254, %p255
    %s258 = sadd.s32 %s257, 1
    %p261 = scmp.eq.s32.totalorder %s34, 1
    %p262 = scmp.ne.s32.totalorder %s257, %s259
    %p263 = scmp.eq.s32.totalorder %s34, 0
    %p264 = por %p262, %p263
    %p265 = scmp.ne.s32.totalorder %s257, %s259
    %p266 = scmp.eq.s32.totalorder %s39, 1
    %p267 = por %p265, %p266
    %p268 = scmp.ne.s32.totalorder %s259, %s260
    %p269 = scmp.eq.s32.totalorder %s39, 0
    %p270 = por %p268, %p269
    %p271 = scmp.ne.s32.totalorder %s259, %s260
    %p272 = scmp.eq.s32.totalorder %s40, 1
    %p273 = por %p271, %p272
    %p275 = scmp.ne.s32.totalorder %s260, %s274
    %p276 = scmp.eq.s32.totalorder %s40, 0
    %p277 = por %p275, %p276
    %s279 = sadd.s32 %s278, 1
    %p282 = scmp.eq.s32.totalorder %s34, 1
    %p283 = scmp.ne.s32.totalorder %s278, %s280
    %p284 = scmp.eq.s32.totalorder %s34, 0
    %p285 = por %p283, %p284
    %p286 = scmp.ne.s32.totalorder %s278, %s280
    %p287 = scmp.eq.s32.totalorder %s39, 1
    %p288 = por %p286, %p287
    %p289 = scmp.ne.s32.totalorder %s280, %s281
    %p290 = scmp.eq.s32.totalorder %s39, 0
    %p291 = por %p289, %p290
    %p292 = scmp.ne.s32.totalorder %s280, %s281
    %p293 = scmp.eq.s32.totalorder %s40, 1
    %p294 = por %p292, %p293
    %p296 = scmp.ne.s32.totalorder %s281, %s295
    %p297 = scmp.eq.s32.totalorder %s40, 0
    %p298 = por %p296, %p297
    %s300 = sadd.s32 %s299, 1
    %p303 = scmp.eq.s32.totalorder %s34, 1
    %p304 = scmp.ne.s32.totalorder %s299, %s301
    %p305 = scmp.eq.s32.totalorder %s34, 0
    %p306 = por %p304, %p305
    %p307 = scmp.ne.s32.totalorder %s299, %s301
    %p308 = scmp.eq.s32.totalorder %s39, 1
    %p309 = por %p307, %p308
    %p310 = scmp.ne.s32.totalorder %s301, %s302
    %p311 = scmp.eq.s32.totalorder %s39, 0
    %p312 = por %p310, %p311
    %p313 = scmp.ne.s32.totalorder %s301, %s302
    %p314 = scmp.eq.s32.totalorder %s40, 1
    %p315 = por %p313, %p314
    %p317 = scmp.ne.s32.totalorder %s302, %s316
    %p318 = scmp.eq.s32.totalorder %s40, 0
    %p319 = por %p317, %p318
    %s321 = sadd.s32 %s320, 1
    %p324 = scmp.eq.s32.totalorder %s34, 1
    %p325 = scmp.ne.s32.totalorder %s320, %s322
    %p326 = scmp.eq.s32.totalorder %s34, 0
    %p327 = por %p325, %p326
    %p328 = scmp.ne.s32.totalorder %s320, %s322
    %p329 = scmp.eq.s32.totalorder %s39, 1
    %p330 = por %p328, %p329
    %p331 = scmp.ne.s32.totalorder %s322, %s323
    %p332 = scmp.eq.s32.totalorder %s39, 0
    %p333 = por %p331, %p332
    %p334 = scmp.ne.s32.totalorder %s322, %s323
    %p335 = scmp.eq.s32.totalorder %s40, 1
    %p336 = por %p334, %p335
    %p338 = scmp.ne.s32.totalorder %s323, %s337
    %p339 = scmp.eq.s32.totalorder %s40, 0
    %p340 = por %p338, %p339
    %s342 = sadd.s32 %s341, 1
    %p345 = scmp.eq.s32.totalorder %s34, 1
    %p346 = scmp.ne.s32.totalorder %s341, %s343
    %p347 = scmp.eq.s32.totalorder %s34, 0
    %p348 = por %p346, %p347
    %p349 = scmp.ne.s32.totalorder %s341, %s343
    %p350 = scmp.eq.s32.totalorder %s39, 1
    %p351 = por %p349, %p350
    %p352 = scmp.ne.s32.totalorder %s343, %s344
    %p353 = scmp.eq.s32.totalorder %s39, 0
    %p354 = por %p352, %p353
    %p355 = scmp.ne.s32.totalorder %s343, %s344
    %p356 = scmp.eq.s32.totalorder %s40, 1
    %p357 = por %p355, %p356
    %p359 = scmp.ne.s32.totalorder %s344, %s358
    %p360 = scmp.eq.s32.totalorder %s40, 0
    %p361 = por %p359, %p360
    %s363 = sadd.s32 %s362, 1
    %p366 = scmp.eq.s32.totalorder %s34, 1
    %p367 = scmp.ne.s32.totalorder %s362, %s364
    %p368 = scmp.eq.s32.totalorder %s34, 0
    %p369 = por %p367, %p368
    %p370 = scmp.ne.s32.totalorder %s362, %s364
    %p371 = scmp.eq.s32.totalorder %s39, 1
    %p372 = por %p370, %p371
    %p373 = scmp.ne.s32.totalorder %s364, %s365
    %p374 = scmp.eq.s32.totalorder %s39, 0
    %p375 = por %p373, %p374
    %p376 = scmp.ne.s32.totalorder %s364, %s365
    %p377 = scmp.eq.s32.totalorder %s40, 1
    %p378 = por %p376, %p377
    %p380 = scmp.ne.s32.totalorder %s365, %s379
    %p381 = scmp.eq.s32.totalorder %s40, 0
    %p382 = por %p380, %p381
    %s384 = sadd.s32 %s383, 1
    %p387 = scmp.eq.s32.totalorder %s34, 1
    %p388 = scmp.ne.s32.totalorder %s383, %s385
    %p389 = scmp.eq.s32.totalorder %s34, 0
    %p390 = por %p388, %p389
    %p391 = scmp.ne.s32.totalorder %s383, %s385
    %p392 = scmp.eq.s32.totalorder %s39, 1
    %p393 = por %p391, %p392
    %p394 = scmp.ne.s32.totalorder %s385, %s386
    %p395 = scmp.eq.s32.totalorder %s39, 0
    %p396 = por %p394, %p395
    %p397 = scmp.ne.s32.totalorder %s385, %s386
    %p398 = scmp.eq.s32.totalorder %s40, 1
    %p399 = por %p397, %p398
    %p401 = scmp.ne.s32.totalorder %s386, %s400
    %p402 = scmp.eq.s32.totalorder %s40, 0
    %p403 = por %p401, %p402
    %s405 = sadd.s32 %s404, 1
    %p408 = scmp.eq.s32.totalorder %s34, 1
    %p409 = scmp.ne.s32.totalorder %s404, %s406
    %p410 = scmp.eq.s32.totalorder %s34, 0
    %p411 = por %p409, %p410
    %p412 = scmp.ne.s32.totalorder %s404, %s406
    %p413 = scmp.eq.s32.totalorder %s39, 1
    %p414 = por %p412, %p413
    %p415 = scmp.ne.s32.totalorder %s406, %s407
    %p416 = scmp.eq.s32.totalorder %s39, 0
    %p417 = por %p415, %p416
    %p418 = scmp.ne.s32.totalorder %s406, %s407
    %p419 = scmp.eq.s32.totalorder %s40, 1
    %p420 = por %p418, %p419
    %p422 = scmp.ne.s32.totalorder %s407, %s421
    %p423 = scmp.eq.s32.totalorder %s40, 0
    %p424 = por %p422, %p423
    %s426 = sadd.s32 %s425, 1
    %p429 = scmp.eq.s32.totalorder %s34, 1
    %p430 = scmp.ne.s32.totalorder %s425, %s427
    %p431 = scmp.eq.s32.totalorder %s34, 0
    %p432 = por %p430, %p431
    %p433 = scmp.ne.s32.totalorder %s425, %s427
    %p434 = scmp.eq.s32.totalorder %s39, 1
    %p435 = por %p433, %p434
    %p436 = scmp.ne.s32.totalorder %s427, %s428
    %p437 = scmp.eq.s32.totalorder %s39, 0
    %p438 = por %p436, %p437
    %p439 = scmp.ne.s32.totalorder %s427, %s428
    %p440 = scmp.eq.s32.totalorder %s40, 1
    %p441 = por %p439, %p440
    %p443 = scmp.ne.s32.totalorder %s428, %s442
    %p444 = scmp.eq.s32.totalorder %s40, 0
    %p445 = por %p443, %p444
    %s447 = sadd.s32 %s446, 1
    %p450 = scmp.eq.s32.totalorder %s34, 1
    %p451 = scmp.ne.s32.totalorder %s446, %s448
    %p452 = scmp.eq.s32.totalorder %s34, 0
    %p453 = por %p451, %p452
    %p454 = scmp.ne.s32.totalorder %s446, %s448
    %p455 = scmp.eq.s32.totalorder %s39, 1
    %p456 = por %p454, %p455
    %p457 = scmp.ne.s32.totalorder %s448, %s449
    %p458 = scmp.eq.s32.totalorder %s39, 0
    %p459 = por %p457, %p458
    %p460 = scmp.ne.s32.totalorder %s448, %s449
    %p461 = scmp.eq.s32.totalorder %s40, 1
    %p462 = por %p460, %p461
    %p464 = scmp.ne.s32.totalorder %s449, %s463
    %p465 = scmp.eq.s32.totalorder %s40, 0
    %p466 = por %p464, %p465
    %s468 = sadd.s32 %s467, 1
    %p471 = scmp.eq.s32.totalorder %s34, 1
    %p472 = scmp.ne.s32.totalorder %s467, %s469
    %p473 = scmp.eq.s32.totalorder %s34, 0
    %p474 = por %p472, %p473
    %p475 = scmp.ne.s32.totalorder %s467, %s469
    %p476 = scmp.eq.s32.totalorder %s39, 1
    %p477 = por %p475, %p476
    %p478 = scmp.ne.s32.totalorder %s469, %s470
    %p479 = scmp.eq.s32.totalorder %s39, 0
    %p480 = por %p478, %p479
    %p481 = scmp.ne.s32.totalorder %s469, %s470
    %p482 = scmp.eq.s32.totalorder %s40, 1
    %p483 = por %p481, %p482
    %p485 = scmp.ne.s32.totalorder %s470, %s484
    %p486 = scmp.eq.s32.totalorder %s40, 0
    %p487 = por %p485, %p486
    %s489 = sadd.s32 %s488, 1
    %p492 = scmp.eq.s32.totalorder %s34, 1
    %p493 = scmp.ne.s32.totalorder %s488, %s490
    %p494 = scmp.eq.s32.totalorder %s34, 0
    %p495 = por %p493, %p494
    %p496 = scmp.ne.s32.totalorder %s488, %s490
    %p497 = scmp.eq.s32.totalorder %s39, 1
    %p498 = por %p496, %p497
    %p499 = scmp.ne.s32.totalorder %s490, %s491
    %p500 = scmp.eq.s32.totalorder %s39, 0
    %p501 = por %p499, %p500
    %p502 = scmp.ne.s32.totalorder %s490, %s491
    %p503 = scmp.eq.s32.totalorder %s40, 1
    %p504 = por %p502, %p503
    %p506 = scmp.ne.s32.totalorder %s491, %s505
    %p507 = scmp.eq.s32.totalorder %s40, 0
    %p508 = por %p506, %p507
    %s510 = sadd.s32 %s509, 1
    %p513 = scmp.eq.s32.totalorder %s34, 1
    %p514 = scmp.ne.s32.totalorder %s509, %s511
    %p515 = scmp.eq.s32.totalorder %s34, 0
    %p516 = por %p514, %p515
    %p517 = scmp.ne.s32.totalorder %s509, %s511
    %p518 = scmp.eq.s32.totalorder %s39, 1
    %p519 = por %p517, %p518
    %p520 = scmp.ne.s32.totalorder %s511, %s512
    %p521 = scmp.eq.s32.totalorder %s39, 0
    %p522 = por %p520, %p521
    %p523 = scmp.ne.s32.totalorder %s511, %s512
    %p524 = scmp.eq.s32.totalorder %s40, 1
    %p525 = por %p523, %p524
    %p527 = scmp.ne.s32.totalorder %s512, %s526
    %p528 = scmp.eq.s32.totalorder %s40, 0
    %p529 = por %p527, %p528
    %s531 = sadd.s32 %s530, 1
    %p534 = scmp.eq.s32.totalorder %s34, 1
    %p535 = scmp.ne.s32.totalorder %s530, %s532
    %p536 = scmp.eq.s32.totalorder %s34, 0
    %p537 = por %p535, %p536
    %p538 = scmp.ne.s32.totalorder %s530, %s532
    %p539 = scmp.eq.s32.totalorder %s39, 1
    %p540 = por %p538, %p539
    %p541 = scmp.ne.s32.totalorder %s532, %s533
    %p542 = scmp.eq.s32.totalorder %s39, 0
    %p543 = por %p541, %p542
    %p544 = scmp.ne.s32.totalorder %s532, %s533
    %p545 = scmp.eq.s32.totalorder %s40, 1
    %p546 = por %p544, %p545
    %p548 = scmp.ne.s32.totalorder %s533, %s547
    %p549 = scmp.eq.s32.totalorder %s40, 0
    %p550 = por %p548, %p549
    %s552 = sadd.s32 %s551, 1
    %p555 = scmp.eq.s32.totalorder %s34, 1
    %p556 = scmp.ne.s32.totalorder %s551, %s553
    %p557 = scmp.eq.s32.totalorder %s34, 0
    %p558 = por %p556, %p557
    %p559 = scmp.ne.s32.totalorder %s551, %s553
    %p560 = scmp.eq.s32.totalorder %s39, 1
    %p561 = por %p559, %p560
    %p562 = scmp.ne.s32.totalorder %s553, %s554
    %p563 = scmp.eq.s32.totalorder %s39, 0
    %p564 = por %p562, %p563
    %p565 = scmp.ne.s32.totalorder %s553, %s554
    %p566 = scmp.eq.s32.totalorder %s40, 1
    %p567 = por %p565, %p566
    %p569 = scmp.ne.s32.totalorder %s554, %s568
    %p570 = scmp.eq.s32.totalorder %s40, 0
    %p571 = por %p569, %p570
    %s573 = sadd.s32 %s572, 1
    %p576 = scmp.eq.s32.totalorder %s34, 1
    %p577 = scmp.ne.s32.totalorder %s572, %s574
    %p578 = scmp.eq.s32.totalorder %s34, 0
    %p579 = por %p577, %p578
    %p580 = scmp.ne.s32.totalorder %s572, %s574
    %p581 = scmp.eq.s32.totalorder %s39, 1
    %p582 = por %p580, %p581
    %p583 = scmp.ne.s32.totalorder %s574, %s575
    %p584 = scmp.eq.s32.totalorder %s39, 0
    %p585 = por %p583, %p584
    %p586 = scmp.ne.s32.totalorder %s574, %s575
    %p587 = scmp.eq.s32.totalorder %s40, 1
    %p588 = por %p586, %p587
    %p590 = scmp.ne.s32.totalorder %s575, %s589
    %p591 = scmp.eq.s32.totalorder %s40, 0
    %p592 = por %p590, %p591
    %s593 = ssub.s32 %s34, %s41
    %p594 = scmp.eq.s32.totalorder %s593, 0
    %s596 = sadd.s32 %s595, 1
    %s597 = scalar_select %p594, %s595, %s596
    %p600 = pneg %p594
    %p601 = scmp.eq.s32.totalorder %s34, 1
    %p602 = por %p600, %p601
    %p603 = scmp.ne.s32.totalorder %s595, %s598
    %p604 = scmp.eq.s32.totalorder %s34, 0
    %p605 = por %p603, %p604
    %p606 = scmp.ne.s32.totalorder %s595, %s598
    %p607 = scmp.eq.s32.totalorder %s39, 1
    %p608 = por %p606, %p607
    %p609 = scmp.ne.s32.totalorder %s598, %s599
    %p610 = scmp.eq.s32.totalorder %s39, 0
    %p611 = por %p609, %p610
    %p612 = scmp.ne.s32.totalorder %s598, %s599
    %p613 = scmp.eq.s32.totalorder %s40, 1
    %p614 = por %p612, %p613
    %p616 = scmp.ne.s32.totalorder %s599, %s615
    %p617 = scmp.eq.s32.totalorder %s40, 0
    %p618 = por %p616, %p617
    %p619 = scmp.le.s32.totalorder 1, %s34
    %p620 = scmp.lt.s32.totalorder %s34, 3
    %p621 = pnand %p619, %p620
    %p622 = pneg %p621
    // Predicated region
    $region9: #{moga_sub_block.1} parent=5 // pred_check
      _
    $region10: #{moga_sub_block.1} parent=5 // pred_check_branch
      %624 = sbr.rel (%p621) target = $region12
    $region11: #{moga_sub_block.1} parent=5 // pred_region
      %s625 = ssub.s32 %s34, 1
      // Predicated region
      $region13: #{moga_sub_block.1} parent=11 // pred_check
        %p626 = pneg %p81
      $region14: #{moga_sub_block.1} parent=11 // pred_check_branch
        %628 = sbr.rel (%p626) target = $region16
      $region15: #{moga_sub_block.1} parent=11 // pred_region
        _
      $region16: #{moga_sub_block.1} parent=11 // pred_fallthru
        _
      // Predicated region
      $region17: #{moga_sub_block.1} parent=11 // pred_check
        %p629 = pneg %p102
      $region18: #{moga_sub_block.1} parent=11 // pred_check_branch
        %631 = sbr.rel (%p629) target = $region20
      $region19: #{moga_sub_block.1} parent=11 // pred_region
        _
      $region20: #{moga_sub_block.1} parent=11 // pred_fallthru
        _
      // Predicated region
      $region21: #{moga_sub_block.1} parent=11 // pred_check
        %p632 = pneg %p123
      $region22: #{moga_sub_block.1} parent=11 // pred_check_branch
        %634 = sbr.rel (%p632) target = $region24
      $region23: #{moga_sub_block.1} parent=11 // pred_region
        _
      $region24: #{moga_sub_block.1} parent=11 // pred_fallthru
        _
      // Predicated region
      $region25: #{moga_sub_block.1} parent=11 // pred_check
        %p635 = pneg %p144
      $region26: #{moga_sub_block.1} parent=11 // pred_check_branch
        %637 = sbr.rel (%p635) target = $region28
      $region27: #{moga_sub_block.1} parent=11 // pred_region
        _
      $region28: #{moga_sub_block.1} parent=11 // pred_fallthru
        _
      // Predicated region
      $region29: #{moga_sub_block.1} parent=11 // pred_check
        %p638 = pneg %p165
      $region30: #{moga_sub_block.1} parent=11 // pred_check_branch
        %640 = sbr.rel (%p638) target = $region32
      $region31: #{moga_sub_block.1} parent=11 // pred_region
        _
      $region32: #{moga_sub_block.1} parent=11 // pred_fallthru
        _
      // Predicated region
      $region33: #{moga_sub_block.1} parent=11 // pred_check
        %p641 = pneg %p186
      $region34: #{moga_sub_block.1} parent=11 // pred_check_branch
        %643 = sbr.rel (%p641) target = $region36
      $region35: #{moga_sub_block.1} parent=11 // pred_region
        _
      $region36: #{moga_sub_block.1} parent=11 // pred_fallthru
        _
      // Predicated region
      $region37: #{moga_sub_block.1} parent=11 // pred_check
        %p644 = pneg %p207
      $region38: #{moga_sub_block.1} parent=11 // pred_check_branch
        %646 = sbr.rel (%p644) target = $region40
      $region39: #{moga_sub_block.1} parent=11 // pred_region
        _
      $region40: #{moga_sub_block.1} parent=11 // pred_fallthru
        _
      // Predicated region
      $region41: #{moga_sub_block.1} parent=11 // pred_check
        %p647 = pneg %p228
      $region42: #{moga_sub_block.1} parent=11 // pred_check_branch
        %649 = sbr.rel (%p647) target = $region44
      $region43: #{moga_sub_block.1} parent=11 // pred_region
        _
      $region44: #{moga_sub_block.1} parent=11 // pred_fallthru
        _
      // Predicated region
      $region45: #{moga_sub_block.1} parent=11 // pred_check
        %p650 = pneg %p249
      $region46: #{moga_sub_block.1} parent=11 // pred_check_branch
        %652 = sbr.rel (%p650) target = $region48
      $region47: #{moga_sub_block.1} parent=11 // pred_region
        _
      $region48: #{moga_sub_block.1} parent=11 // pred_fallthru
        _
      // Predicated region
      $region49: #{moga_sub_block.1} parent=11 // pred_check
        %p653 = pneg %p270
      $region50: #{moga_sub_block.1} parent=11 // pred_check_branch
        %655 = sbr.rel (%p653) target = $region52
      $region51: #{moga_sub_block.1} parent=11 // pred_region
        _
      $region52: #{moga_sub_block.1} parent=11 // pred_fallthru
        _
      // Predicated region
      $region53: #{moga_sub_block.1} parent=11 // pred_check
        %p656 = pneg %p291
      $region54: #{moga_sub_block.1} parent=11 // pred_check_branch
        %658 = sbr.rel (%p656) target = $region56
      $region55: #{moga_sub_block.1} parent=11 // pred_region
        _
      $region56: #{moga_sub_block.1} parent=11 // pred_fallthru
        _
      // Predicated region
      $region57: #{moga_sub_block.1} parent=11 // pred_check
        %p659 = pneg %p312
      $region58: #{moga_sub_block.1} parent=11 // pred_check_branch
        %661 = sbr.rel (%p659) target = $region60
      $region59: #{moga_sub_block.1} parent=11 // pred_region
        _
      $region60: #{moga_sub_block.1} parent=11 // pred_fallthru
        _
      // Predicated region
      $region61: #{moga_sub_block.1} parent=11 // pred_check
        %p662 = pneg %p333
      $region62: #{moga_sub_block.1} parent=11 // pred_check_branch
        %664 = sbr.rel (%p662) target = $region64
      $region63: #{moga_sub_block.1} parent=11 // pred_region
        _
      $region64: #{moga_sub_block.1} parent=11 // pred_fallthru
        _
      // Predicated region
      $region65: #{moga_sub_block.1} parent=11 // pred_check
        %p665 = pneg %p354
      $region66: #{moga_sub_block.1} parent=11 // pred_check_branch
        %667 = sbr.rel (%p665) target = $region68
      $region67: #{moga_sub_block.1} parent=11 // pred_region
        _
      $region68: #{moga_sub_block.1} parent=11 // pred_fallthru
        _
      // Predicated region
      $region69: #{moga_sub_block.1} parent=11 // pred_check
        %p668 = pneg %p375
      $region70: #{moga_sub_block.1} parent=11 // pred_check_branch
        %670 = sbr.rel (%p668) target = $region72
      $region71: #{moga_sub_block.1} parent=11 // pred_region
        _
      $region72: #{moga_sub_block.1} parent=11 // pred_fallthru
        _
      // Predicated region
      $region73: #{moga_sub_block.1} parent=11 // pred_check
        %p671 = pneg %p396
      $region74: #{moga_sub_block.1} parent=11 // pred_check_branch
        %673 = sbr.rel (%p671) target = $region76
      $region75: #{moga_sub_block.1} parent=11 // pred_region
        _
      $region76: #{moga_sub_block.1} parent=11 // pred_fallthru
        _
      // Predicated region
      $region77: #{moga_sub_block.1} parent=11 // pred_check
        %p674 = pneg %p417
      $region78: #{moga_sub_block.1} parent=11 // pred_check_branch
        %676 = sbr.rel (%p674) target = $region80
      $region79: #{moga_sub_block.1} parent=11 // pred_region
        _
      $region80: #{moga_sub_block.1} parent=11 // pred_fallthru
        _
      // Predicated region
      $region81: #{moga_sub_block.1} parent=11 // pred_check
        %p677 = pneg %p438
      $region82: #{moga_sub_block.1} parent=11 // pred_check_branch
        %679 = sbr.rel (%p677) target = $region84
      $region83: #{moga_sub_block.1} parent=11 // pred_region
        _
      $region84: #{moga_sub_block.1} parent=11 // pred_fallthru
        _
      // Predicated region
      $region85: #{moga_sub_block.1} parent=11 // pred_check
        %p680 = pneg %p459
      $region86: #{moga_sub_block.1} parent=11 // pred_check_branch
        %682 = sbr.rel (%p680) target = $region88
      $region87: #{moga_sub_block.1} parent=11 // pred_region
        _
      $region88: #{moga_sub_block.1} parent=11 // pred_fallthru
        _
      // Predicated region
      $region89: #{moga_sub_block.1} parent=11 // pred_check
        %p683 = pneg %p480
      $region90: #{moga_sub_block.1} parent=11 // pred_check_branch
        %685 = sbr.rel (%p683) target = $region92
      $region91: #{moga_sub_block.1} parent=11 // pred_region
        _
      $region92: #{moga_sub_block.1} parent=11 // pred_fallthru
        _
      // Predicated region
      $region93: #{moga_sub_block.1} parent=11 // pred_check
        %p686 = pneg %p501
      $region94: #{moga_sub_block.1} parent=11 // pred_check_branch
        %688 = sbr.rel (%p686) target = $region96
      $region95: #{moga_sub_block.1} parent=11 // pred_region
        _
      $region96: #{moga_sub_block.1} parent=11 // pred_fallthru
        _
      // Predicated region
      $region97: #{moga_sub_block.1} parent=11 // pred_check
        %p689 = pneg %p522
      $region98: #{moga_sub_block.1} parent=11 // pred_check_branch
        %691 = sbr.rel (%p689) target = $region100
      $region99: #{moga_sub_block.1} parent=11 // pred_region
        _
      $region100: #{moga_sub_block.1} parent=11 // pred_fallthru
        _
      // Predicated region
      $region101: #{moga_sub_block.1} parent=11 // pred_check
        %p692 = pneg %p543
      $region102: #{moga_sub_block.1} parent=11 // pred_check_branch
        %694 = sbr.rel (%p692) target = $region104
      $region103: #{moga_sub_block.1} parent=11 // pred_region
        _
      $region104: #{moga_sub_block.1} parent=11 // pred_fallthru
        _
      // Predicated region
      $region105: #{moga_sub_block.1} parent=11 // pred_check
        %p695 = pneg %p564
      $region106: #{moga_sub_block.1} parent=11 // pred_check_branch
        %697 = sbr.rel (%p695) target = $region108
      $region107: #{moga_sub_block.1} parent=11 // pred_region
        _
      $region108: #{moga_sub_block.1} parent=11 // pred_fallthru
        _
      // Predicated region
      $region109: #{moga_sub_block.1} parent=11 // pred_check
        %p698 = pneg %p585
      $region110: #{moga_sub_block.1} parent=11 // pred_check_branch
        %700 = sbr.rel (%p698) target = $region112
      $region111: #{moga_sub_block.1} parent=11 // pred_region
        _
      $region112: #{moga_sub_block.1} parent=11 // pred_fallthru
        _
    $region12: #{moga_sub_block.1} parent=5 // pred_fallthru
      _
    %p701 = scmp.lt.s32.totalorder %s34, 2
    // Predicated region
    $region113: #{moga_sub_block.1} parent=5 // pred_check
      %p702 = pneg %p701
    $region114: #{moga_sub_block.1} parent=5 // pred_check_branch
      %704 = sbr.rel (%p702) target = $region116
    $region115: #{moga_sub_block.1} parent=5 // pred_region
      // Predicated region
      $region117: #{moga_sub_block.1} parent=115 // pred_check
        %p705 = pneg %p54
      $region118: #{moga_sub_block.1} parent=115 // pred_check_branch
        %707 = sbr.rel (%p705) target = $region120
      $region119: #{moga_sub_block.1} parent=115 // pred_region
        %p708 = scmp.lt.s32.totalorder %s34, 1
        %s709 = scalar_select %p708, %s34, 1
        %s710 = smul.addr %s709, 2
        %s711 = smul.addr %s710, 8
        %s712 = scalar_lea.vmem %s0, %s711
      $region120: #{moga_sub_block.1} parent=115 // pred_fallthru
        _
    $region116: #{moga_sub_block.1} parent=5 // pred_fallthru
      _
    %p713 = scmp.le.s32.totalorder 1, %s34
    %p714 = scmp.lt.s32.totalorder %s34, 3
    %p715 = pnand %p713, %p714
    %p716 = pneg %p715
    // Predicated region
    $region121: #{moga_sub_block.1} parent=5 // pred_check
      _
    $region122: #{moga_sub_block.1} parent=5 // pred_check_branch
      %718 = sbr.rel (%p715) target = $region124
    $region123: #{moga_sub_block.1} parent=5 // pred_region
      %s719 = ssub.s32 %s34, 1
      %p720 = scmp.lt.s32.totalorder %s39, 1
      %s721 = scalar_select %p720, %s39, 1
      %s722 = smul.addr %s721, 2
      %s723 = smul.addr %s722, 8
      %s724 = scalar_lea.vmem %s0, %s723
      %p725 = pneg %p60
      %p726 = pneg %p57
      %p727 = pneg %p81
      %p728 = pneg %p78
      %p729 = pneg %p102
      %p730 = pneg %p99
      %p731 = pneg %p123
      %p732 = pneg %p120
      %p733 = pneg %p144
      %p734 = pneg %p141
      %p735 = pneg %p165
      %p736 = pneg %p162
      %p737 = pneg %p186
      %p738 = pneg %p183
      %p739 = pneg %p207
      %p740 = pneg %p204
      %p741 = pneg %p228
      %p742 = pneg %p225
      %p743 = pneg %p249
      %p744 = pneg %p246
      %p745 = pneg %p270
      %p746 = pneg %p267
      %p747 = pneg %p291
      %p748 = pneg %p288
      %p749 = pneg %p312
      %p750 = pneg %p309
      %p751 = pneg %p333
      %p752 = pneg %p330
      %p753 = pneg %p354
      %p754 = pneg %p351
      %p755 = pneg %p375
      %p756 = pneg %p372
      %p757 = pneg %p396
      %p758 = pneg %p393
      %p759 = pneg %p417
      %p760 = pneg %p414
      %p761 = pneg %p438
      %p762 = pneg %p435
      %p763 = pneg %p459
      %p764 = pneg %p456
      %p765 = pneg %p480
      %p766 = pneg %p477
      %p767 = pneg %p501
      %p768 = pneg %p498
      %p769 = pneg %p522
      %p770 = pneg %p519
      %p771 = pneg %p543
      %p772 = pneg %p540
      %p773 = pneg %p564
      %p774 = pneg %p561
      %p775 = pneg %p585
      %p776 = pneg %p582
      %p777 = pneg %p611
      %p778 = pneg %p608
      %p779 = scmp.lt.s32.totalorder %s39, 1
      %s780 = scalar_select %p779, %s39, 1
      %s781 = smul.addr %s780, 2
      %s782 = smul.addr %s781, 8
      %s783 = scalar_lea.vmem %s26, %s782
      %p784 = scmp.lt.s32.totalorder %s39, 1
      %s785 = scalar_select %p784, %s39, 1
      %s786 = smul.addr %s785, 2
      %s787 = smul.addr %s786, 8
      %s788 = scalar_lea.vmem %s0, %s787
      %p789 = scmp.lt.s32.totalorder %s39, 1
      %s790 = scalar_select %p789, %s39, 1
      %s791 = smul.addr %s790, 2
      %s792 = smul.addr %s791, 8
      %s793 = scalar_lea.vmem %s26, %s792
      %v794 = vld [vmem:[%s788] sm:$0xff]
      %v795 = vld [vmem:[%s788 + $0x8] sm:$0xff]
      %v796 = vld [vmem:[%s3] sm:$0xff]
      %v797 = vld [vmem:[%s4] sm:$0xff]
      %799 = vset.pattern.permute.xlu0 0
      %800 = vperm.xlu0 %799, %v797
      %v801 = vpop.permute.xlu0 %800
      %vm803 = vcmask 64512
      %v805 = vsel %vm803, %v796, 0
      %807 = vmatprep.subr.mxu0 %v795
      %808 = vmatpush1.msra.mxu0 %v794
      %809 = vmatprep.subr.mxu0 0.0
      %810 = vmatpush1.msra.mxu0 0.0
      %811 = vmatprep.subr.mxu0 0.0
      %812 = vmatpush1.msra.mxu0 0.0
      %813 = vmatprep.subr.mxu0 0.0
      %814 = vmatpush1.msra.mxu0 0.0
      %815 = vmatprep.subr.mxu0 0.0
      %816 = vmatpush1.msra.mxu0 0.0
      %817 = vmatprep.subr.mxu0 0.0
      %818 = vmatpush1.msra.mxu0 0.0
      %819 = vmatprep.subr.mxu0 0.0
      %820 = vmatpush1.msra.mxu0 0.0
      %821 = vmatprep.subr.mxu0 0.0
      %822 = vmatpush1.msra.mxu0 0.0
      %823 = vmatprep.subr.mxu0 0.0
      %824 = vmatpush1.msra.mxu0 0.0
      %825 = vmatprep.subr.mxu0 0.0
      %826 = vmatpush1.msra.mxu0 0.0
      %827 = vmatprep.subr.mxu0 0.0
      %828 = vmatpush1.msra.mxu0 0.0
      %829 = vmatprep.subr.mxu0 0.0
      %830 = vmatpush1.msra.mxu0 0.0
      %831 = vmatprep.subr.mxu0 0.0
      %832 = vmatpush1.msra.mxu0 0.0
      %833 = vmatprep.subr.mxu0 0.0
      %834 = vmatpush1.msra.mxu0 0.0
      %835 = vmatprep.subr.mxu0 0.0
      %836 = vmatpush1.msra.mxu0 0.0
      %837 = vmatprep.subr.mxu0 0.0
      %838 = vmatpush1.msra.mxu0 0.0
      %839 = vmatprep.subr.mxu0 0.0
      %840 = vmatpush1.msra.mxu0 0.0
      %841 = vmatprep.subr.mxu0 0.0
      %842 = vmatpush1.msra.mxu0 0.0
      %843 = vmatprep.subr.mxu0 0.0
      %844 = vmatpush1.msra.mxu0 0.0
      %845 = vmatprep.subr.mxu0 0.0
      %846 = vmatpush1.msra.mxu0 0.0
      %847 = vmatprep.subr.mxu0 0.0
      %848 = vmatpush1.msra.mxu0 0.0
      %849 = vmatprep.subr.mxu0 0.0
      %850 = vmatpush1.msra.mxu0 0.0
      %851 = vmatprep.subr.mxu0 0.0
      %852 = vmatpush1.msra.mxu0 0.0
      %853 = vmatprep.subr.mxu0 0.0
      %854 = vmatpush1.msra.mxu0 0.0
      %855 = vmatprep.subr.mxu0 0.0
      %856 = vmatpush1.msra.mxu0 0.0
      %857 = vmatprep.subr.mxu0 0.0
      %858 = vmatpush1.msra.mxu0 0.0
      %859 = vmatprep.subr.mxu0 0.0
      %860 = vmatpush1.msra.mxu0 0.0
      %861 = vmatprep.subr.mxu0 0.0
      %862 = vmatpush1.msra.mxu0 0.0
      %863 = vmatprep.subr.mxu0 0.0
      %864 = vmatpush1.msra.mxu0 0.0
      %865 = vmatprep.subr.mxu0 0.0
      %866 = vmatpush1.msra.mxu0 0.0
      %867 = vmatprep.subr.mxu0 0.0
      %868 = vmatpush1.msra.mxu0 0.0
      %869 = vmatprep.subr.mxu0 0.0
      %870 = vmatpush1.msra.mxu0 0.0
      %871 = vmatprep.mubr.f32.mxu0 0.0
      %872 = vmatmul.mubr.f32.gmra.mrb[0].mxu0 %v805
      %v873 = vpop.f32.mrb[0].mxu0
      %v874 = vadd.f32 %v801, %v873
      %v875 = vpop.f32.mrb[0].mxu0
      %v876 = vadd.f32 %v801, %v875
      %877 = vdwg.mxu0
      %v878 = vadd.f32 %v874, %v876
      %879 = vadd.xlane.f32.xlu0 %v878
      %v880 = vpop.xlane.xlu0 %879
      %v881 = vrcp.pop 256.0
      %v882 = vmul.f32 %v880, %v881
      %v883 = vld [vmem:[%s5] sm:$0xff]
      %v884 = vsub.f32 %v874, %v882
      %v885 = vsub.f32 %v876, %v882
      %887 = vset.pattern.permute.xlu0 0
      %888 = vperm.xlu0 %887, %v883
      %v889 = vpop.permute.xlu0 %888
      %v891 = vmul.f32 %v889, %v884
      %v892 = vmul.f32 %v889, %v885
      %v893 = vadd.f32 %v874, %v891
      %v894 = vadd.f32 %v876, %v892
      %v895 = vxor.u32 %v893, 2147483648
      %v896 = vxor.u32 %v894, 2147483648
      %v897 = vmul.f32 %v895, 1.442695
      %v898 = vpow.pop %v897
      %v899 = vmul.f32 %v896, 1.442695
      %v900 = vpow.pop %v899
      %v901 = vadd.f32 %v898, 1.0
      %v902 = vadd.f32 %v900, 1.0
      %v903 = vrcp.pop %v901
      %v904 = vmul.f32 1.0, %v903
      %v905 = vrcp.pop %v902
      %v906 = vmul.f32 1.0, %v905
      %v907 = vmul.f32 %v893, %v904
      %v908 = vmul.f32 %v894, %v906
      %v909 = vld [vmem:[%s6] sm:$0xff]
      %v910 = vld [vmem:[%s7] sm:$0xff]
      %912 = vset.pattern.permute.xlu0 0
      %913 = vperm.xlu0 %912, %v910
      %v914 = vpop.permute.xlu0 %913
      %v917 = vsel %vm803, %v909, 0
      %919 = vmatprep.subr.mxu0 %v908
      %920 = vmatpush1.msra.mxu0 %v907
      %921 = vmatprep.subr.mxu0 0.0
      %922 = vmatpush1.msra.mxu0 0.0
      %923 = vmatprep.subr.mxu0 0.0
      %924 = vmatpush1.msra.mxu0 0.0
      %925 = vmatprep.subr.mxu0 0.0
      %926 = vmatpush1.msra.mxu0 0.0
      %927 = vmatprep.subr.mxu0 0.0
      %928 = vmatpush1.msra.mxu0 0.0
      %929 = vmatprep.subr.mxu0 0.0
      %930 = vmatpush1.msra.mxu0 0.0
      %931 = vmatprep.subr.mxu0 0.0
      %932 = vmatpush1.msra.mxu0 0.0
      %933 = vmatprep.subr.mxu0 0.0
      %934 = vmatpush1.msra.mxu0 0.0
      %935 = vmatprep.subr.mxu0 0.0
      %936 = vmatpush1.msra.mxu0 0.0
      %937 = vmatprep.subr.mxu0 0.0
      %938 = vmatpush1.msra.mxu0 0.0
      %939 = vmatprep.subr.mxu0 0.0
      %940 = vmatpush1.msra.mxu0 0.0
      %941 = vmatprep.subr.mxu0 0.0
      %942 = vmatpush1.msra.mxu0 0.0
      %943 = vmatprep.subr.mxu0 0.0
      %944 = vmatpush1.msra.mxu0 0.0
      %945 = vmatprep.subr.mxu0 0.0
      %946 = vmatpush1.msra.mxu0 0.0
      %947 = vmatprep.subr.mxu0 0.0
      %948 = vmatpush1.msra.mxu0 0.0
      %949 = vmatprep.subr.mxu0 0.0
      %950 = vmatpush1.msra.mxu0 0.0
      %951 = vmatprep.subr.mxu0 0.0
      %952 = vmatpush1.msra.mxu0 0.0
      %953 = vmatprep.subr.mxu0 0.0
      %954 = vmatpush1.msra.mxu0 0.0
      %955 = vmatprep.subr.mxu0 0.0
      %956 = vmatpush1.msra.mxu0 0.0
      %957 = vmatprep.subr.mxu0 0.0
      %958 = vmatpush1.msra.mxu0 0.0
      %959 = vmatprep.subr.mxu0 0.0
      %960 = vmatpush1.msra.mxu0 0.0
      %961 = vmatprep.subr.mxu0 0.0
      %962 = vmatpush1.msra.mxu0 0.0
      %963 = vmatprep.subr.mxu0 0.0
      %964 = vmatpush1.msra.mxu0 0.0
      %965 = vmatprep.subr.mxu0 0.0
      %966 = vmatpush1.msra.mxu0 0.0
      %967 = vmatprep.subr.mxu0 0.0
      %968 = vmatpush1.msra.mxu0 0.0
      %969 = vmatprep.subr.mxu0 0.0
      %970 = vmatpush1.msra.mxu0 0.0
      %971 = vmatprep.subr.mxu0 0.0
      %972 = vmatpush1.msra.mxu0 0.0
      %973 = vmatprep.subr.mxu0 0.0
      %974 = vmatpush1.msra.mxu0 0.0
      %975 = vmatprep.subr.mxu0 0.0
      %976 = vmatpush1.msra.mxu0 0.0
      %977 = vmatprep.subr.mxu0 0.0
      %978 = vmatpush1.msra.mxu0 0.0
      %979 = vmatprep.subr.mxu0 0.0
      %980 = vmatpush1.msra.mxu0 0.0
      %981 = vmatprep.subr.mxu0 0.0
      %982 = vmatpush1.msra.mxu0 0.0
      %983 = vmatprep.mubr.f32.mxu0 0.0
      %984 = vmatmul.mubr.f32.gmra.mrb[0].mxu0 %v917
      %v985 = vpop.f32.mrb[0].mxu0
      %v986 = vadd.f32 %v914, %v985
      %v987 = vpop.f32.mrb[0].mxu0
      %v988 = vadd.f32 %v914, %v987
      %989 = vdwg.mxu0
      %990 = vrot.lane.b32.xlu0 %v907, 34
      %v991 = vpop.permute.xlu0 %990
      %992 = vrot.lane.b32.xlu0 %v908, 34
      %v993 = vpop.permute.xlu0 %992
      %v994 = vlaneseq
      %v995 = vand.u32 %v994, 127
      %vm996 = vcmp.lt.s32.totalorder %v995, 34
      %v997 = vsel %vm996, %v991, %v993
      %v998 = vsel %vm996, %v993, %v991
      %v999 = vld [vmem:[%s8] sm:$0xff]
      %v1000 = vld [vmem:[%s8 + $0x8] sm:$0xff]
      %v1001 = vmul.f32 %v998, %v999
      %v1002 = vmul.f32 %v997, %v1000
      %1003 = vrot.lane.b32.xlu0 %v907, 33
      %v1004 = vpop.permute.xlu0 %1003
      %1005 = vrot.lane.b32.xlu0 %v908, 33
      %v1006 = vpop.permute.xlu0 %1005
      %vm1007 = vcmp.lt.s32.totalorder %v995, 33
      %v1008 = vsel %vm1007, %v1004, %v1006
      %v1009 = vsel %vm1007, %v1006, %v1004
      %s1010 = scalar_lea.vmem %s8, 16
      %v1011 = vld [vmem:[%s1010] sm:$0xff]
      %v1012 = vld [vmem:[%s1010 + $0x8] sm:$0xff]
      %v1013 = vmul.f32 %v1009, %v1011
      %v1014 = vmul.f32 %v1008, %v1012
      %v1015 = vadd.f32 %v1001, %v1013
      %v1016 = vadd.f32 %v1002, %v1014
      %1017 = vrot.lane.b32.xlu0 %v907, 32
      %v1018 = vpop.permute.xlu0 %1017
      %1019 = vrot.lane.b32.xlu0 %v908, 32
      %v1020 = vpop.permute.xlu0 %1019
      %vm1021 = vcmp.lt.s32.totalorder %v995, 32
      %v1022 = vsel %vm1021, %v1018, %v1020
      %v1023 = vsel %vm1021, %v1020, %v1018
      %s1024 = scalar_lea.vmem %s8, 32
      %v1025 = vld [vmem:[%s1024] sm:$0xff]
      %v1026 = vld [vmem:[%s1024 + $0x8] sm:$0xff]
      %v1027 = vmul.f32 %v1023, %v1025
      %v1028 = vmul.f32 %v1022, %v1026
      %v1029 = vadd.f32 %v1015, %v1027
      %v1030 = vadd.f32 %v1016, %v1028
      %1031 = vrot.lane.b32.xlu0 %v907, 31
      %v1032 = vpop.permute.xlu0 %1031
      %1033 = vrot.lane.b32.xlu0 %v908, 31
      %v1034 = vpop.permute.xlu0 %1033
      %vm1035 = vcmp.lt.s32.totalorder %v995, 31
      %v1036 = vsel %vm1035, %v1032, %v1034
      %v1037 = vsel %vm1035, %v1034, %v1032
      %s1038 = scalar_lea.vmem %s8, 48
      %v1039 = vld [vmem:[%s1038] sm:$0xff]
      %v1040 = vld [vmem:[%s1038 + $0x8] sm:$0xff]
      %v1041 = vmul.f32 %v1037, %v1039
      %v1042 = vmul.f32 %v1036, %v1040
      %v1043 = vadd.f32 %v1029, %v1041
      %v1044 = vadd.f32 %v1030, %v1042
      %1045 = vrot.lane.b32.xlu0 %v907, 30
      %v1046 = vpop.permute.xlu0 %1045
      %1047 = vrot.lane.b32.xlu0 %v908, 30
      %v1048 = vpop.permute.xlu0 %1047
      %vm1049 = vcmp.lt.s32.totalorder %v995, 30
      %v1050 = vsel %vm1049, %v1046, %v1048
      %v1051 = vsel %vm1049, %v1048, %v1046
      %s1052 = scalar_lea.vmem %s8, 64
      %v1053 = vld [vmem:[%s1052] sm:$0xff]
      %v1054 = vld [vmem:[%s1052 + $0x8] sm:$0xff]
      %v1055 = vmul.f32 %v1051, %v1053
      %v1056 = vmul.f32 %v1050, %v1054
      %v1057 = vadd.f32 %v1043, %v1055
      %v1058 = vadd.f32 %v1044, %v1056
      %1059 = vrot.lane.b32.xlu0 %v907, 18
      %v1060 = vpop.permute.xlu0 %1059
      %1061 = vrot.lane.b32.xlu0 %v908, 18
      %v1062 = vpop.permute.xlu0 %1061
      %vm1063 = vcmp.lt.s32.totalorder %v995, 18
      %v1064 = vsel %vm1063, %v1060, %v1062
      %v1065 = vsel %vm1063, %v1062, %v1060
      %s1066 = scalar_lea.vmem %s8, 80
      %v1067 = vld [vmem:[%s1066] sm:$0xff]
      %v1068 = vld [vmem:[%s1066 + $0x8] sm:$0xff]
      %v1069 = vmul.f32 %v1065, %v1067
      %v1070 = vmul.f32 %v1064, %v1068
      %v1071 = vadd.f32 %v1057, %v1069
      %v1072 = vadd.f32 %v1058, %v1070
      %1073 = vrot.lane.b32.xlu0 %v907, 17
      %v1074 = vpop.permute.xlu0 %1073
      %1075 = vrot.lane.b32.xlu0 %v908, 17
      %v1076 = vpop.permute.xlu0 %1075
      %vm1077 = vcmp.lt.s32.totalorder %v995, 17
      %v1078 = vsel %vm1077, %v1074, %v1076
      %v1079 = vsel %vm1077, %v1076, %v1074
      %s1080 = scalar_lea.vmem %s8, 96
      %v1081 = vld [vmem:[%s1080] sm:$0xff]
      %v1082 = vld [vmem:[%s1080 + $0x8] sm:$0xff]
      %v1083 = vmul.f32 %v1079, %v1081
      %v1084 = vmul.f32 %v1078, %v1082
      %v1085 = vadd.f32 %v1071, %v1083
      %v1086 = vadd.f32 %v1072, %v1084
      %1087 = vrot.lane.b32.xlu0 %v907, 16
      %v1088 = vpop.permute.xlu0 %1087
      %1089 = vrot.lane.b32.xlu0 %v908, 16
      %v1090 = vpop.permute.xlu0 %1089
      %vm1091 = vcmp.lt.s32.totalorder %v995, 16
      %v1092 = vsel %vm1091, %v1088, %v1090
      %v1093 = vsel %vm1091, %v1090, %v1088
      %s1094 = scalar_lea.vmem %s8, 112
      %v1095 = vld [vmem:[%s1094] sm:$0xff]
      %v1096 = vld [vmem:[%s1094 + $0x8] sm:$0xff]
      %v1097 = vmul.f32 %v1093, %v1095
      %v1098 = vmul.f32 %v1092, %v1096
      %v1099 = vadd.f32 %v1085, %v1097
      %v1100 = vadd.f32 %v1086, %v1098
      %1101 = vrot.lane.b32.xlu0 %v907, 15
      %v1102 = vpop.permute.xlu0 %1101
      %1103 = vrot.lane.b32.xlu0 %v908, 15
      %v1104 = vpop.permute.xlu0 %1103
      %vm1105 = vcmp.lt.s32.totalorder %v995, 15
      %v1106 = vsel %vm1105, %v1102, %v1104
      %v1107 = vsel %vm1105, %v1104, %v1102
      %s1108 = scalar_lea.vmem %s8, 128
      %v1109 = vld [vmem:[%s1108] sm:$0xff]
      %v1110 = vld [vmem:[%s1108 + $0x8] sm:$0xff]
      %v1111 = vmul.f32 %v1107, %v1109
      %v1112 = vmul.f32 %v1106, %v1110
      %v1113 = vadd.f32 %v1099, %v1111
      %v1114 = vadd.f32 %v1100, %v1112
      %1115 = vrot.lane.b32.xlu0 %v907, 14
      %v1116 = vpop.permute.xlu0 %1115
      %1117 = vrot.lane.b32.xlu0 %v908, 14
      %v1118 = vpop.permute.xlu0 %1117
      %vm1119 = vcmp.lt.s32.totalorder %v995, 14
      %v1120 = vsel %vm1119, %v1116, %v1118
      %v1121 = vsel %vm1119, %v1118, %v1116
      %s1122 = scalar_lea.vmem %s8, 144
      %v1123 = vld [vmem:[%s1122] sm:$0xff]
      %v1124 = vld [vmem:[%s1122 + $0x8] sm:$0xff]
      %v1125 = vmul.f32 %v1121, %v1123
      %v1126 = vmul.f32 %v1120, %v1124
      %v1127 = vadd.f32 %v1113, %v1125
      %v1128 = vadd.f32 %v1114, %v1126
      %1129 = vrot.lane.b32.xlu0 %v907, 2
      %v1130 = vpop.permute.xlu0 %1129
      %1131 = vrot.lane.b32.xlu0 %v908, 2
      %v1132 = vpop.permute.xlu0 %1131
      %vm1133 = vcmp.lt.s32.totalorder %v995, 2
      %v1134 = vsel %vm1133, %v1130, %v1132
      %v1135 = vsel %vm1133, %v1132, %v1130
      %s1136 = scalar_lea.vmem %s8, 160
      %v1137 = vld [vmem:[%s1136] sm:$0xff]
      %v1138 = vld [vmem:[%s1136 + $0x8] sm:$0xff]
      %v1139 = vmul.f32 %v1135, %v1137
      %v1140 = vmul.f32 %v1134, %v1138
      %v1141 = vadd.f32 %v1127, %v1139
      %v1142 = vadd.f32 %v1128, %v1140
      %1143 = vrot.lane.b32.xlu0 %v907, 1
      %v1144 = vpop.permute.xlu0 %1143
      %1145 = vrot.lane.b32.xlu0 %v908, 1
      %v1146 = vpop.permute.xlu0 %1145
      %vm1147 = vcmp.lt.s32.totalorder %v995, 1
      %v1148 = vsel %vm1147, %v1144, %v1146
      %v1149 = vsel %vm1147, %v1146, %v1144
      %s1150 = scalar_lea.vmem %s8, 176
      %v1151 = vld [vmem:[%s1150] sm:$0xff]
      %v1152 = vld [vmem:[%s1150 + $0x8] sm:$0xff]
      %v1153 = vmul.f32 %v1149, %v1151
      %v1154 = vmul.f32 %v1148, %v1152
      %v1155 = vadd.f32 %v1141, %v1153
      %v1156 = vadd.f32 %v1142, %v1154
      %s1157 = scalar_lea.vmem %s8, 192
      %v1158 = vld [vmem:[%s1157] sm:$0xff]
      %v1159 = vld [vmem:[%s1157 + $0x8] sm:$0xff]
      %v1160 = vmul.f32 %v907, %v1158
      %v1161 = vmul.f32 %v908, %v1159
      %v1162 = vadd.f32 %v1155, %v1160
      %v1163 = vadd.f32 %v1156, %v1161
      %1164 = vrot.lane.b32.xlu0 %v907, 127
      %v1165 = vpop.permute.xlu0 %1164
      %1166 = vrot.lane.b32.xlu0 %v908, 127
      %v1167 = vpop.permute.xlu0 %1166
      %vm1168 = vcmp.lt.s32.totalorder %v995, 127
      %v1169 = vsel %vm1168, %v1165, %v1167
      %v1170 = vsel %vm1168, %v1167, %v1165
      %s1171 = scalar_lea.vmem %s8, 208
      %v1172 = vld [vmem:[%s1171] sm:$0xff]
      %v1173 = vld [vmem:[%s1171 + $0x8] sm:$0xff]
      %v1174 = vmul.f32 %v1169, %v1172
      %v1175 = vmul.f32 %v1170, %v1173
      %v1176 = vadd.f32 %v1162, %v1174
      %v1177 = vadd.f32 %v1163, %v1175
      %1178 = vrot.lane.b32.xlu0 %v907, 126
      %v1179 = vpop.permute.xlu0 %1178
      %1180 = vrot.lane.b32.xlu0 %v908, 126
      %v1181 = vpop.permute.xlu0 %1180
      %vm1182 = vcmp.lt.s32.totalorder %v995, 126
      %v1183 = vsel %vm1182, %v1179, %v1181
      %v1184 = vsel %vm1182, %v1181, %v1179
      %s1185 = scalar_lea.vmem %s8, 224
      %v1186 = vld [vmem:[%s1185] sm:$0xff]
      %v1187 = vld [vmem:[%s1185 + $0x8] sm:$0xff]
      %v1188 = vmul.f32 %v1183, %v1186
      %v1189 = vmul.f32 %v1184, %v1187
      %v1190 = vadd.f32 %v1176, %v1188
      %v1191 = vadd.f32 %v1177, %v1189
      %1192 = vrot.lane.b32.xlu0 %v907, 114
      %v1193 = vpop.permute.xlu0 %1192
      %1194 = vrot.lane.b32.xlu0 %v908, 114
      %v1195 = vpop.permute.xlu0 %1194
      %vm1196 = vcmp.lt.s32.totalorder %v995, 114
      %v1197 = vsel %vm1196, %v1193, %v1195
      %v1198 = vsel %vm1196, %v1195, %v1193
      %s1199 = scalar_lea.vmem %s8, 240
      %v1200 = vld [vmem:[%s1199] sm:$0xff]
      %v1201 = vld [vmem:[%s1199 + $0x8] sm:$0xff]
      %v1202 = vmul.f32 %v1197, %v1200
      %v1203 = vmul.f32 %v1198, %v1201
      %v1204 = vadd.f32 %v1190, %v1202
      %v1205 = vadd.f32 %v1191, %v1203
      %1206 = vrot.lane.b32.xlu0 %v907, 113
      %v1207 = vpop.permute.xlu0 %1206
      %1208 = vrot.lane.b32.xlu0 %v908, 113
      %v1209 = vpop.permute.xlu0 %1208
      %vm1210 = vcmp.lt.s32.totalorder %v995, 113
      %v1211 = vsel %vm1210, %v1207, %v1209
      %v1212 = vsel %vm1210, %v1209, %v1207
      %s1213 = scalar_lea.vmem %s8, 256
      %v1214 = vld [vmem:[%s1213] sm:$0xff]
      %v1215 = vld [vmem:[%s1213 + $0x8] sm:$0xff]
      %v1216 = vmul.f32 %v1211, %v1214
      %v1217 = vmul.f32 %v1212, %v1215
      %v1218 = vadd.f32 %v1204, %v1216
      %v1219 = vadd.f32 %v1205, %v1217
      %1220 = vrot.lane.b32.xlu0 %v907, 112
      %v1221 = vpop.permute.xlu0 %1220
      %1222 = vrot.lane.b32.xlu0 %v908, 112
      %v1223 = vpop.permute.xlu0 %1222
      %vm1224 = vcmp.lt.s32.totalorder %v995, 112
      %v1225 = vsel %vm1224, %v1221, %v1223
      %v1226 = vsel %vm1224, %v1223, %v1221
      %s1227 = scalar_lea.vmem %s8, 272
      %v1228 = vld [vmem:[%s1227] sm:$0xff]
      %v1229 = vld [vmem:[%s1227 + $0x8] sm:$0xff]
      %v1230 = vmul.f32 %v1225, %v1228
      %v1231 = vmul.f32 %v1226, %v1229
      %v1232 = vadd.f32 %v1218, %v1230
      %v1233 = vadd.f32 %v1219, %v1231
      %1234 = vrot.lane.b32.xlu0 %v907, 111
      %v1235 = vpop.permute.xlu0 %1234
      %1236 = vrot.lane.b32.xlu0 %v908, 111
      %v1237 = vpop.permute.xlu0 %1236
      %vm1238 = vcmp.lt.s32.totalorder %v995, 111
      %v1239 = vsel %vm1238, %v1235, %v1237
      %v1240 = vsel %vm1238, %v1237, %v1235
      %s1241 = scalar_lea.vmem %s8, 288
      %v1242 = vld [vmem:[%s1241] sm:$0xff]
      %v1243 = vld [vmem:[%s1241 + $0x8] sm:$0xff]
      %v1244 = vmul.f32 %v1239, %v1242
      %v1245 = vmul.f32 %v1240, %v1243
      %v1246 = vadd.f32 %v1232, %v1244
      %v1247 = vadd.f32 %v1233, %v1245
      %1248 = vrot.lane.b32.xlu0 %v907, 110
      %v1249 = vpop.permute.xlu0 %1248
      %1250 = vrot.lane.b32.xlu0 %v908, 110
      %v1251 = vpop.permute.xlu0 %1250
      %vm1252 = vcmp.lt.s32.totalorder %v995, 110
      %v1253 = vsel %vm1252, %v1249, %v1251
      %v1254 = vsel %vm1252, %v1251, %v1249
      %s1255 = scalar_lea.vmem %s8, 304
      %v1256 = vld [vmem:[%s1255] sm:$0xff]
      %v1257 = vld [vmem:[%s1255 + $0x8] sm:$0xff]
      %v1258 = vmul.f32 %v1253, %v1256
      %v1259 = vmul.f32 %v1254, %v1257
      %v1260 = vadd.f32 %v1246, %v1258
      %v1261 = vadd.f32 %v1247, %v1259
      %1262 = vrot.lane.b32.xlu0 %v907, 98
      %v1263 = vpop.permute.xlu0 %1262
      %1264 = vrot.lane.b32.xlu0 %v908, 98
      %v1265 = vpop.permute.xlu0 %1264
      %vm1266 = vcmp.lt.s32.totalorder %v995, 98
      %v1267 = vsel %vm1266, %v1263, %v1265
      %v1268 = vsel %vm1266, %v1265, %v1263
      %s1269 = scalar_lea.vmem %s8, 320
      %v1270 = vld [vmem:[%s1269] sm:$0xff]
      %v1271 = vld [vmem:[%s1269 + $0x8] sm:$0xff]
      %v1272 = vmul.f32 %v1267, %v1270
      %v1273 = vmul.f32 %v1268, %v1271
      %v1274 = vadd.f32 %v1260, %v1272
      %v1275 = vadd.f32 %v1261, %v1273
      %1276 = vrot.lane.b32.xlu0 %v907, 97
      %v1277 = vpop.permute.xlu0 %1276
      %1278 = vrot.lane.b32.xlu0 %v908, 97
      %v1279 = vpop.permute.xlu0 %1278
      %vm1280 = vcmp.lt.s32.totalorder %v995, 97
      %v1281 = vsel %vm1280, %v1277, %v1279
      %v1282 = vsel %vm1280, %v1279, %v1277
      %s1283 = scalar_lea.vmem %s8, 336
      %v1284 = vld [vmem:[%s1283] sm:$0xff]
      %v1285 = vld [vmem:[%s1283 + $0x8] sm:$0xff]
      %v1286 = vmul.f32 %v1281, %v1284
      %v1287 = vmul.f32 %v1282, %v1285
      %v1288 = vadd.f32 %v1274, %v1286
      %v1289 = vadd.f32 %v1275, %v1287
      %1290 = vrot.lane.b32.xlu0 %v907, 96
      %v1291 = vpop.permute.xlu0 %1290
      %1292 = vrot.lane.b32.xlu0 %v908, 96
      %v1293 = vpop.permute.xlu0 %1292
      %vm1294 = vcmp.lt.s32.totalorder %v995, 96
      %v1295 = vsel %vm1294, %v1291, %v1293
      %v1296 = vsel %vm1294, %v1293, %v1291
      %s1297 = scalar_lea.vmem %s8, 352
      %v1298 = vld [vmem:[%s1297] sm:$0xff]
      %v1299 = vld [vmem:[%s1297 + $0x8] sm:$0xff]
      %v1300 = vmul.f32 %v1295, %v1298
      %v1301 = vmul.f32 %v1296, %v1299
      %v1302 = vadd.f32 %v1288, %v1300
      %v1303 = vadd.f32 %v1289, %v1301
      %1304 = vrot.lane.b32.xlu0 %v907, 95
      %v1305 = vpop.permute.xlu0 %1304
      %1306 = vrot.lane.b32.xlu0 %v908, 95
      %v1307 = vpop.permute.xlu0 %1306
      %vm1308 = vcmp.lt.s32.totalorder %v995, 95
      %v1309 = vsel %vm1308, %v1305, %v1307
      %v1310 = vsel %vm1308, %v1307, %v1305
      %s1311 = scalar_lea.vmem %s8, 368
      %v1312 = vld [vmem:[%s1311] sm:$0xff]
      %v1313 = vld [vmem:[%s1311 + $0x8] sm:$0xff]
      %v1314 = vmul.f32 %v1309, %v1312
      %v1315 = vmul.f32 %v1310, %v1313
      %v1316 = vadd.f32 %v1302, %v1314
      %v1317 = vadd.f32 %v1303, %v1315
      %1318 = vrot.lane.b32.xlu0 %v907, 94
      %v1319 = vpop.permute.xlu0 %1318
      %1320 = vrot.lane.b32.xlu0 %v908, 94
      %v1321 = vpop.permute.xlu0 %1320
      %vm1322 = vcmp.lt.s32.totalorder %v995, 94
      %v1323 = vsel %vm1322, %v1319, %v1321
      %v1324 = vsel %vm1322, %v1321, %v1319
      %s1325 = scalar_lea.vmem %s8, 384
      %v1326 = vld [vmem:[%s1325] sm:$0xff]
      %v1327 = vld [vmem:[%s1325 + $0x8] sm:$0xff]
      %v1328 = vmul.f32 %v1323, %v1326
      %v1329 = vmul.f32 %v1324, %v1327
      %v1330 = vadd.f32 %v1316, %v1328
      %v1331 = vadd.f32 %v1317, %v1329
      %v1332 = vld [vmem:[%s9] sm:$0xff]
      %1334 = vset.pattern.permute.xlu0 0
      %1335 = vperm.xlu0 %1334, %v1332
      %v1336 = vpop.permute.xlu0 %1335
      %v1338 = vadd.f32 %v1330, %v1336
      %v1339 = vadd.f32 %v1331, %v1336
      %1340 = vrot.lane.b32.xlu0 %v1338, 68
      %v1341 = vpop.permute.xlu0 %1340
      %1342 = vrot.lane.b32.xlu0 %v1339, 68
      %v1343 = vpop.permute.xlu0 %1342
      %vm1344 = vcmp.lt.s32.totalorder %v995, 68
      %v1345 = vsel %vm1344, %v1341, %v1343
      %v1346 = vsel %vm1344, %v1343, %v1341
      %v1347 = vld [vmem:[%s10] sm:$0xff]
      %v1348 = vld [vmem:[%s10 + $0x8] sm:$0xff]
      %v1349 = vmul.f32 %v1346, %v1347
      %v1350 = vmul.f32 %v1345, %v1348
      %1351 = vrot.lane.b32.xlu0 %v1338, 66
      %v1352 = vpop.permute.xlu0 %1351
      %1353 = vrot.lane.b32.xlu0 %v1339, 66
      %v1354 = vpop.permute.xlu0 %1353
      %vm1355 = vcmp.lt.s32.totalorder %v995, 66
      %v1356 = vsel %vm1355, %v1352, %v1354
      %v1357 = vsel %vm1355, %v1354, %v1352
      %s1358 = scalar_lea.vmem %s10, 16
      %v1359 = vld [vmem:[%s1358] sm:$0xff]
      %v1360 = vld [vmem:[%s1358 + $0x8] sm:$0xff]
      %v1361 = vmul.f32 %v1357, %v1359
      %v1362 = vmul.f32 %v1356, %v1360
      %v1363 = vadd.f32 %v1349, %v1361
      %v1364 = vadd.f32 %v1350, %v1362
      %1365 = vrot.lane.b32.xlu0 %v1338, 64
      %v1366 = vpop.permute.xlu0 %1365
      %1367 = vrot.lane.b32.xlu0 %v1339, 64
      %v1368 = vpop.permute.xlu0 %1367
      %vm1369 = vcmp.lt.s32.totalorder %v995, 64
      %v1370 = vsel %vm1369, %v1366, %v1368
      %v1371 = vsel %vm1369, %v1368, %v1366
      %s1372 = scalar_lea.vmem %s10, 32
      %v1373 = vld [vmem:[%s1372] sm:$0xff]
      %v1374 = vld [vmem:[%s1372 + $0x8] sm:$0xff]
      %v1375 = vmul.f32 %v1371, %v1373
      %v1376 = vmul.f32 %v1370, %v1374
      %v1377 = vadd.f32 %v1363, %v1375
      %v1378 = vadd.f32 %v1364, %v1376
      %1379 = vrot.lane.b32.xlu0 %v1338, 62
      %v1380 = vpop.permute.xlu0 %1379
      %1381 = vrot.lane.b32.xlu0 %v1339, 62
      %v1382 = vpop.permute.xlu0 %1381
      %vm1383 = vcmp.lt.s32.totalorder %v995, 62
      %v1384 = vsel %vm1383, %v1380, %v1382
      %v1385 = vsel %vm1383, %v1382, %v1380
      %s1386 = scalar_lea.vmem %s10, 48
      %v1387 = vld [vmem:[%s1386] sm:$0xff]
      %v1388 = vld [vmem:[%s1386 + $0x8] sm:$0xff]
      %v1389 = vmul.f32 %v1385, %v1387
      %v1390 = vmul.f32 %v1384, %v1388
      %v1391 = vadd.f32 %v1377, %v1389
      %v1392 = vadd.f32 %v1378, %v1390
      %1393 = vrot.lane.b32.xlu0 %v1338, 60
      %v1394 = vpop.permute.xlu0 %1393
      %1395 = vrot.lane.b32.xlu0 %v1339, 60
      %v1396 = vpop.permute.xlu0 %1395
      %vm1397 = vcmp.lt.s32.totalorder %v995, 60
      %v1398 = vsel %vm1397, %v1394, %v1396
      %v1399 = vsel %vm1397, %v1396, %v1394
      %s1400 = scalar_lea.vmem %s10, 64
      %v1401 = vld [vmem:[%s1400] sm:$0xff]
      %v1402 = vld [vmem:[%s1400 + $0x8] sm:$0xff]
      %v1403 = vmul.f32 %v1399, %v1401
      %v1404 = vmul.f32 %v1398, %v1402
      %v1405 = vadd.f32 %v1391, %v1403
      %v1406 = vadd.f32 %v1392, %v1404
      %1407 = vrot.lane.b32.xlu0 %v1338, 36
      %v1408 = vpop.permute.xlu0 %1407
      %1409 = vrot.lane.b32.xlu0 %v1339, 36
      %v1410 = vpop.permute.xlu0 %1409
      %vm1411 = vcmp.lt.s32.totalorder %v995, 36
      %v1412 = vsel %vm1411, %v1408, %v1410
      %v1413 = vsel %vm1411, %v1410, %v1408
      %s1414 = scalar_lea.vmem %s10, 80
      %v1415 = vld [vmem:[%s1414] sm:$0xff]
      %v1416 = vld [vmem:[%s1414 + $0x8] sm:$0xff]
      %v1417 = vmul.f32 %v1413, %v1415
      %v1418 = vmul.f32 %v1412, %v1416
      %v1419 = vadd.f32 %v1405, %v1417
      %v1420 = vadd.f32 %v1406, %v1418
      %1421 = vrot.lane.b32.xlu0 %v1338, 34
      %v1422 = vpop.permute.xlu0 %1421
      %1423 = vrot.lane.b32.xlu0 %v1339, 34
      %v1424 = vpop.permute.xlu0 %1423
      %v1425 = vsel %vm996, %v1422, %v1424
      %v1426 = vsel %vm996, %v1424, %v1422
      %s1427 = scalar_lea.vmem %s10, 96
      %v1428 = vld [vmem:[%s1427] sm:$0xff]
      %v1429 = vld [vmem:[%s1427 + $0x8] sm:$0xff]
      %v1430 = vmul.f32 %v1426, %v1428
      %v1431 = vmul.f32 %v1425, %v1429
      %v1432 = vadd.f32 %v1419, %v1430
      %v1433 = vadd.f32 %v1420, %v1431
      %1434 = vrot.lane.b32.xlu0 %v1338, 32
      %v1435 = vpop.permute.xlu0 %1434
      %1436 = vrot.lane.b32.xlu0 %v1339, 32
      %v1437 = vpop.permute.xlu0 %1436
      %v1438 = vsel %vm1021, %v1435, %v1437
      %v1439 = vsel %vm1021, %v1437, %v1435
      %s1440 = scalar_lea.vmem %s10, 112
      %v1441 = vld [vmem:[%s1440] sm:$0xff]
      %v1442 = vld [vmem:[%s1440 + $0x8] sm:$0xff]
      %v1443 = vmul.f32 %v1439, %v1441
      %v1444 = vmul.f32 %v1438, %v1442
      %v1445 = vadd.f32 %v1432, %v1443
      %v1446 = vadd.f32 %v1433, %v1444
      %1447 = vrot.lane.b32.xlu0 %v1338, 30
      %v1448 = vpop.permute.xlu0 %1447
      %1449 = vrot.lane.b32.xlu0 %v1339, 30
      %v1450 = vpop.permute.xlu0 %1449
      %v1451 = vsel %vm1049, %v1448, %v1450
      %v1452 = vsel %vm1049, %v1450, %v1448
      %s1453 = scalar_lea.vmem %s10, 128
      %v1454 = vld [vmem:[%s1453] sm:$0xff]
      %v1455 = vld [vmem:[%s1453 + $0x8] sm:$0xff]
      %v1456 = vmul.f32 %v1452, %v1454
      %v1457 = vmul.f32 %v1451, %v1455
      %v1458 = vadd.f32 %v1445, %v1456
      %v1459 = vadd.f32 %v1446, %v1457
      %1460 = vrot.lane.b32.xlu0 %v1338, 28
      %v1461 = vpop.permute.xlu0 %1460
      %1462 = vrot.lane.b32.xlu0 %v1339, 28
      %v1463 = vpop.permute.xlu0 %1462
      %vm1464 = vcmp.lt.s32.totalorder %v995, 28
      %v1465 = vsel %vm1464, %v1461, %v1463
      %v1466 = vsel %vm1464, %v1463, %v1461
      %s1467 = scalar_lea.vmem %s10, 144
      %v1468 = vld [vmem:[%s1467] sm:$0xff]
      %v1469 = vld [vmem:[%s1467 + $0x8] sm:$0xff]
      %v1470 = vmul.f32 %v1466, %v1468
      %v1471 = vmul.f32 %v1465, %v1469
      %v1472 = vadd.f32 %v1458, %v1470
      %v1473 = vadd.f32 %v1459, %v1471
      %1474 = vrot.lane.b32.xlu0 %v1338, 4
      %v1475 = vpop.permute.xlu0 %1474
      %1476 = vrot.lane.b32.xlu0 %v1339, 4
      %v1477 = vpop.permute.xlu0 %1476
      %vm1478 = vcmp.lt.s32.totalorder %v995, 4
      %v1479 = vsel %vm1478, %v1475, %v1477
      %v1480 = vsel %vm1478, %v1477, %v1475
      %s1481 = scalar_lea.vmem %s10, 160
      %v1482 = vld [vmem:[%s1481] sm:$0xff]
      %v1483 = vld [vmem:[%s1481 + $0x8] sm:$0xff]
      %v1484 = vmul.f32 %v1480, %v1482
      %v1485 = vmul.f32 %v1479, %v1483
      %v1486 = vadd.f32 %v1472, %v1484
      %v1487 = vadd.f32 %v1473, %v1485
      %1488 = vrot.lane.b32.xlu0 %v1338, 2
      %v1489 = vpop.permute.xlu0 %1488
      %1490 = vrot.lane.b32.xlu0 %v1339, 2
      %v1491 = vpop.permute.xlu0 %1490
      %v1492 = vsel %vm1133, %v1489, %v1491
      %v1493 = vsel %vm1133, %v1491, %v1489
      %s1494 = scalar_lea.vmem %s10, 176
      %v1495 = vld [vmem:[%s1494] sm:$0xff]
      %v1496 = vld [vmem:[%s1494 + $0x8] sm:$0xff]
      %v1497 = vmul.f32 %v1493, %v1495
      %v1498 = vmul.f32 %v1492, %v1496
      %v1499 = vadd.f32 %v1486, %v1497
      %v1500 = vadd.f32 %v1487, %v1498
      %s1501 = scalar_lea.vmem %s10, 192
      %v1502 = vld [vmem:[%s1501] sm:$0xff]
      %v1503 = vld [vmem:[%s1501 + $0x8] sm:$0xff]
      %v1504 = vmul.f32 %v1338, %v1502
      %v1505 = vmul.f32 %v1339, %v1503
      %v1506 = vadd.f32 %v1499, %v1504
      %v1507 = vadd.f32 %v1500, %v1505
      %1508 = vrot.lane.b32.xlu0 %v1338, 126
      %v1509 = vpop.permute.xlu0 %1508
      %1510 = vrot.lane.b32.xlu0 %v1339, 126
      %v1511 = vpop.permute.xlu0 %1510
      %v1512 = vsel %vm1182, %v1509, %v1511
      %v1513 = vsel %vm1182, %v1511, %v1509
      %s1514 = scalar_lea.vmem %s10, 208
      %v1515 = vld [vmem:[%s1514] sm:$0xff]
      %v1516 = vld [vmem:[%s1514 + $0x8] sm:$0xff]
      %v1517 = vmul.f32 %v1512, %v1515
      %v1518 = vmul.f32 %v1513, %v1516
      %v1519 = vadd.f32 %v1506, %v1517
      %v1520 = vadd.f32 %v1507, %v1518
      %1521 = vrot.lane.b32.xlu0 %v1338, 124
      %v1522 = vpop.permute.xlu0 %1521
      %1523 = vrot.lane.b32.xlu0 %v1339, 124
      %v1524 = vpop.permute.xlu0 %1523
      %vm1525 = vcmp.lt.s32.totalorder %v995, 124
      %v1526 = vsel %vm1525, %v1522, %v1524
      %v1527 = vsel %vm1525, %v1524, %v1522
      %s1528 = scalar_lea.vmem %s10, 224
      %v1529 = vld [vmem:[%s1528] sm:$0xff]
      %v1530 = vld [vmem:[%s1528 + $0x8] sm:$0xff]
      %v1531 = vmul.f32 %v1526, %v1529
      %v1532 = vmul.f32 %v1527, %v1530
      %v1533 = vadd.f32 %v1519, %v1531
      %v1534 = vadd.f32 %v1520, %v1532
      %1535 = vrot.lane.b32.xlu0 %v1338, 100
      %v1536 = vpop.permute.xlu0 %1535
      %1537 = vrot.lane.b32.xlu0 %v1339, 100
      %v1538 = vpop.permute.xlu0 %1537
      %vm1539 = vcmp.lt.s32.totalorder %v995, 100
      %v1540 = vsel %vm1539, %v1536, %v1538
      %v1541 = vsel %vm1539, %v1538, %v1536
      %s1542 = scalar_lea.vmem %s10, 240
      %v1543 = vld [vmem:[%s1542] sm:$0xff]
      %v1544 = vld [vmem:[%s1542 + $0x8] sm:$0xff]
      %v1545 = vmul.f32 %v1540, %v1543
      %v1546 = vmul.f32 %v1541, %v1544
      %v1547 = vadd.f32 %v1533, %v1545
      %v1548 = vadd.f32 %v1534, %v1546
      %1549 = vrot.lane.b32.xlu0 %v1338, 98
      %v1550 = vpop.permute.xlu0 %1549
      %1551 = vrot.lane.b32.xlu0 %v1339, 98
      %v1552 = vpop.permute.xlu0 %1551
      %v1553 = vsel %vm1266, %v1550, %v1552
      %v1554 = vsel %vm1266, %v1552, %v1550
      %s1555 = scalar_lea.vmem %s10, 256
      %v1556 = vld [vmem:[%s1555] sm:$0xff]
      %v1557 = vld [vmem:[%s1555 + $0x8] sm:$0xff]
      %v1558 = vmul.f32 %v1553, %v1556
      %v1559 = vmul.f32 %v1554, %v1557
      %v1560 = vadd.f32 %v1547, %v1558
      %v1561 = vadd.f32 %v1548, %v1559
      %1562 = vrot.lane.b32.xlu0 %v1338, 96
      %v1563 = vpop.permute.xlu0 %1562
      %1564 = vrot.lane.b32.xlu0 %v1339, 96
      %v1565 = vpop.permute.xlu0 %1564
      %v1566 = vsel %vm1294, %v1563, %v1565
      %v1567 = vsel %vm1294, %v1565, %v1563
      %s1568 = scalar_lea.vmem %s10, 272
      %v1569 = vld [vmem:[%s1568] sm:$0xff]
      %v1570 = vld [vmem:[%s1568 + $0x8] sm:$0xff]
      %v1571 = vmul.f32 %v1566, %v1569
      %v1572 = vmul.f32 %v1567, %v1570
      %v1573 = vadd.f32 %v1560, %v1571
      %v1574 = vadd.f32 %v1561, %v1572
      %1575 = vrot.lane.b32.xlu0 %v1338, 94
      %v1576 = vpop.permute.xlu0 %1575
      %1577 = vrot.lane.b32.xlu0 %v1339, 94
      %v1578 = vpop.permute.xlu0 %1577
      %v1579 = vsel %vm1322, %v1576, %v1578
      %v1580 = vsel %vm1322, %v1578, %v1576
      %s1581 = scalar_lea.vmem %s10, 288
      %v1582 = vld [vmem:[%s1581] sm:$0xff]
      %v1583 = vld [vmem:[%s1581 + $0x8] sm:$0xff]
      %v1584 = vmul.f32 %v1579, %v1582
      %v1585 = vmul.f32 %v1580, %v1583
      %v1586 = vadd.f32 %v1573, %v1584
      %v1587 = vadd.f32 %v1574, %v1585
      %1588 = vrot.lane.b32.xlu0 %v1338, 92
      %v1589 = vpop.permute.xlu0 %1588
      %1590 = vrot.lane.b32.xlu0 %v1339, 92
      %v1591 = vpop.permute.xlu0 %1590
      %vm1592 = vcmp.lt.s32.totalorder %v995, 92
      %v1593 = vsel %vm1592, %v1589, %v1591
      %v1594 = vsel %vm1592, %v1591, %v1589
      %s1595 = scalar_lea.vmem %s10, 304
      %v1596 = vld [vmem:[%s1595] sm:$0xff]
      %v1597 = vld [vmem:[%s1595 + $0x8] sm:$0xff]
      %v1598 = vmul.f32 %v1593, %v1596
      %v1599 = vmul.f32 %v1594, %v1597
      %v1600 = vadd.f32 %v1586, %v1598
      %v1601 = vadd.f32 %v1587, %v1599
      %s1602 = scalar_lea.vmem %s10, 320
      %v1603 = vld [vmem:[%s1602] sm:$0xff]
      %v1604 = vld [vmem:[%s1602 + $0x8] sm:$0xff]
      %v1605 = vmul.f32 %v1345, %v1603
      %v1606 = vmul.f32 %v1346, %v1604
      %v1607 = vadd.f32 %v1600, %v1605
      %v1608 = vadd.f32 %v1601, %v1606
      %s1609 = scalar_lea.vmem %s10, 336
      %v1610 = vld [vmem:[%s1609] sm:$0xff]
      %v1611 = vld [vmem:[%s1609 + $0x8] sm:$0xff]
      %v1612 = vmul.f32 %v1356, %v1610
      %v1613 = vmul.f32 %v1357, %v1611
      %v1614 = vadd.f32 %v1607, %v1612
      %v1615 = vadd.f32 %v1608, %v1613
      %s1616 = scalar_lea.vmem %s10, 352
      %v1617 = vld [vmem:[%s1616] sm:$0xff]
      %v1618 = vld [vmem:[%s1616 + $0x8] sm:$0xff]
      %v1619 = vmul.f32 %v1370, %v1617
      %v1620 = vmul.f32 %v1371, %v1618
      %v1621 = vadd.f32 %v1614, %v1619
      %v1622 = vadd.f32 %v1615, %v1620
      %s1623 = scalar_lea.vmem %s10, 368
      %v1624 = vld [vmem:[%s1623] sm:$0xff]
      %v1625 = vld [vmem:[%s1623 + $0x8] sm:$0xff]
      %v1626 = vmul.f32 %v1384, %v1624
      %v1627 = vmul.f32 %v1385, %v1625
      %v1628 = vadd.f32 %v1621, %v1626
      %v1629 = vadd.f32 %v1622, %v1627
      %s1630 = scalar_lea.vmem %s10, 384
      %v1631 = vld [vmem:[%s1630] sm:$0xff]
      %v1632 = vld [vmem:[%s1630 + $0x8] sm:$0xff]
      %v1633 = vmul.f32 %v1398, %v1631
      %v1634 = vmul.f32 %v1399, %v1632
      %v1635 = vadd.f32 %v1628, %v1633
      %v1636 = vadd.f32 %v1629, %v1634
      %1637 = vrot.lane.b32.xlu0 %v1338, 102
      %v1638 = vpop.permute.xlu0 %1637
      %1639 = vrot.lane.b32.xlu0 %v1339, 102
      %v1640 = vpop.permute.xlu0 %1639
      %vm1641 = vcmp.lt.s32.totalorder %v995, 102
      %v1642 = vsel %vm1641, %v1638, %v1640
      %v1643 = vsel %vm1641, %v1640, %v1638
      %v1644 = vld [vmem:[%s11] sm:$0xff]
      %v1645 = vld [vmem:[%s11 + $0x8] sm:$0xff]
      %v1646 = vmul.f32 %v1643, %v1644
      %v1647 = vmul.f32 %v1642, %v1645
      %1648 = vrot.lane.b32.xlu0 %v1338, 99
      %v1649 = vpop.permute.xlu0 %1648
      %1650 = vrot.lane.b32.xlu0 %v1339, 99
      %v1651 = vpop.permute.xlu0 %1650
      %vm1652 = vcmp.lt.s32.totalorder %v995, 99
      %v1653 = vsel %vm1652, %v1649, %v1651
      %v1654 = vsel %vm1652, %v1651, %v1649
      %s1655 = scalar_lea.vmem %s11, 16
      %v1656 = vld [vmem:[%s1655] sm:$0xff]
      %v1657 = vld [vmem:[%s1655 + $0x8] sm:$0xff]
      %v1658 = vmul.f32 %v1654, %v1656
      %v1659 = vmul.f32 %v1653, %v1657
      %v1660 = vadd.f32 %v1646, %v1658
      %v1661 = vadd.f32 %v1647, %v1659
      %s1662 = scalar_lea.vmem %s11, 32
      %v1663 = vld [vmem:[%s1662] sm:$0xff]
      %v1664 = vld [vmem:[%s1662 + $0x8] sm:$0xff]
      %v1665 = vmul.f32 %v1567, %v1663
      %v1666 = vmul.f32 %v1566, %v1664
      %v1667 = vadd.f32 %v1660, %v1665
      %v1668 = vadd.f32 %v1661, %v1666
      %1669 = vrot.lane.b32.xlu0 %v1338, 93
      %v1670 = vpop.permute.xlu0 %1669
      %1671 = vrot.lane.b32.xlu0 %v1339, 93
      %v1672 = vpop.permute.xlu0 %1671
      %vm1673 = vcmp.lt.s32.totalorder %v995, 93
      %v1674 = vsel %vm1673, %v1670, %v1672
      %v1675 = vsel %vm1673, %v1672, %v1670
      %s1676 = scalar_lea.vmem %s11, 48
      %v1677 = vld [vmem:[%s1676] sm:$0xff]
      %v1678 = vld [vmem:[%s1676 + $0x8] sm:$0xff]
      %v1679 = vmul.f32 %v1675, %v1677
      %v1680 = vmul.f32 %v1674, %v1678
      %v1681 = vadd.f32 %v1667, %v1679
      %v1682 = vadd.f32 %v1668, %v1680
      %1683 = vrot.lane.b32.xlu0 %v1338, 90
      %v1684 = vpop.permute.xlu0 %1683
      %1685 = vrot.lane.b32.xlu0 %v1339, 90
      %v1686 = vpop.permute.xlu0 %1685
      %vm1687 = vcmp.lt.s32.totalorder %v995, 90
      %v1688 = vsel %vm1687, %v1684, %v1686
      %v1689 = vsel %vm1687, %v1686, %v1684
      %s1690 = scalar_lea.vmem %s11, 64
      %v1691 = vld [vmem:[%s1690] sm:$0xff]
      %v1692 = vld [vmem:[%s1690 + $0x8] sm:$0xff]
      %v1693 = vmul.f32 %v1689, %v1691
      %v1694 = vmul.f32 %v1688, %v1692
      %v1695 = vadd.f32 %v1681, %v1693
      %v1696 = vadd.f32 %v1682, %v1694
      %1697 = vrot.lane.b32.xlu0 %v1338, 54
      %v1698 = vpop.permute.xlu0 %1697
      %1699 = vrot.lane.b32.xlu0 %v1339, 54
      %v1700 = vpop.permute.xlu0 %1699
      %vm1701 = vcmp.lt.s32.totalorder %v995, 54
      %v1702 = vsel %vm1701, %v1698, %v1700
      %v1703 = vsel %vm1701, %v1700, %v1698
      %s1704 = scalar_lea.vmem %s11, 80
      %v1705 = vld [vmem:[%s1704] sm:$0xff]
      %v1706 = vld [vmem:[%s1704 + $0x8] sm:$0xff]
      %v1707 = vmul.f32 %v1703, %v1705
      %v1708 = vmul.f32 %v1702, %v1706
      %v1709 = vadd.f32 %v1695, %v1707
      %v1710 = vadd.f32 %v1696, %v1708
      %1711 = vrot.lane.b32.xlu0 %v1338, 51
      %v1712 = vpop.permute.xlu0 %1711
      %1713 = vrot.lane.b32.xlu0 %v1339, 51
      %v1714 = vpop.permute.xlu0 %1713
      %vm1715 = vcmp.lt.s32.totalorder %v995, 51
      %v1716 = vsel %vm1715, %v1712, %v1714
      %v1717 = vsel %vm1715, %v1714, %v1712
      %s1718 = scalar_lea.vmem %s11, 96
      %v1719 = vld [vmem:[%s1718] sm:$0xff]
      %v1720 = vld [vmem:[%s1718 + $0x8] sm:$0xff]
      %v1721 = vmul.f32 %v1717, %v1719
      %v1722 = vmul.f32 %v1716, %v1720
      %v1723 = vadd.f32 %v1709, %v1721
      %v1724 = vadd.f32 %v1710, %v1722
      %1725 = vrot.lane.b32.xlu0 %v1338, 48
      %v1726 = vpop.permute.xlu0 %1725
      %1727 = vrot.lane.b32.xlu0 %v1339, 48
      %v1728 = vpop.permute.xlu0 %1727
      %vm1729 = vcmp.lt.s32.totalorder %v995, 48
      %v1730 = vsel %vm1729, %v1726, %v1728
      %v1731 = vsel %vm1729, %v1728, %v1726
      %s1732 = scalar_lea.vmem %s11, 112
      %v1733 = vld [vmem:[%s1732] sm:$0xff]
      %v1734 = vld [vmem:[%s1732 + $0x8] sm:$0xff]
      %v1735 = vmul.f32 %v1731, %v1733
      %v1736 = vmul.f32 %v1730, %v1734
      %v1737 = vadd.f32 %v1723, %v1735
      %v1738 = vadd.f32 %v1724, %v1736
      %1739 = vrot.lane.b32.xlu0 %v1338, 45
      %v1740 = vpop.permute.xlu0 %1739
      %1741 = vrot.lane.b32.xlu0 %v1339, 45
      %v1742 = vpop.permute.xlu0 %1741
      %vm1743 = vcmp.lt.s32.totalorder %v995, 45
      %v1744 = vsel %vm1743, %v1740, %v1742
      %v1745 = vsel %vm1743, %v1742, %v1740
      %s1746 = scalar_lea.vmem %s11, 128
      %v1747 = vld [vmem:[%s1746] sm:$0xff]
      %v1748 = vld [vmem:[%s1746 + $0x8] sm:$0xff]
      %v1749 = vmul.f32 %v1745, %v1747
      %v1750 = vmul.f32 %v1744, %v1748
      %v1751 = vadd.f32 %v1737, %v1749
      %v1752 = vadd.f32 %v1738, %v1750
      %1753 = vrot.lane.b32.xlu0 %v1338, 42
      %v1754 = vpop.permute.xlu0 %1753
      %1755 = vrot.lane.b32.xlu0 %v1339, 42
      %v1756 = vpop.permute.xlu0 %1755
      %vm1757 = vcmp.lt.s32.totalorder %v995, 42
      %v1758 = vsel %vm1757, %v1754, %v1756
      %v1759 = vsel %vm1757, %v1756, %v1754
      %s1760 = scalar_lea.vmem %s11, 144
      %v1761 = vld [vmem:[%s1760] sm:$0xff]
      %v1762 = vld [vmem:[%s1760 + $0x8] sm:$0xff]
      %v1763 = vmul.f32 %v1759, %v1761
      %v1764 = vmul.f32 %v1758, %v1762
      %v1765 = vadd.f32 %v1751, %v1763
      %v1766 = vadd.f32 %v1752, %v1764
      %1767 = vrot.lane.b32.xlu0 %v1338, 6
      %v1768 = vpop.permute.xlu0 %1767
      %1769 = vrot.lane.b32.xlu0 %v1339, 6
      %v1770 = vpop.permute.xlu0 %1769
      %vm1771 = vcmp.lt.s32.totalorder %v995, 6
      %v1772 = vsel %vm1771, %v1768, %v1770
      %v1773 = vsel %vm1771, %v1770, %v1768
      %s1774 = scalar_lea.vmem %s11, 160
      %v1775 = vld [vmem:[%s1774] sm:$0xff]
      %v1776 = vld [vmem:[%s1774 + $0x8] sm:$0xff]
      %v1777 = vmul.f32 %v1773, %v1775
      %v1778 = vmul.f32 %v1772, %v1776
      %v1779 = vadd.f32 %v1765, %v1777
      %v1780 = vadd.f32 %v1766, %v1778
      %1781 = vrot.lane.b32.xlu0 %v1338, 3
      %v1782 = vpop.permute.xlu0 %1781
      %1783 = vrot.lane.b32.xlu0 %v1339, 3
      %v1784 = vpop.permute.xlu0 %1783
      %vm1785 = vcmp.lt.s32.totalorder %v995, 3
      %v1786 = vsel %vm1785, %v1782, %v1784
      %v1787 = vsel %vm1785, %v1784, %v1782
      %s1788 = scalar_lea.vmem %s11, 176
      %v1789 = vld [vmem:[%s1788] sm:$0xff]
      %v1790 = vld [vmem:[%s1788 + $0x8] sm:$0xff]
      %v1791 = vmul.f32 %v1787, %v1789
      %v1792 = vmul.f32 %v1786, %v1790
      %v1793 = vadd.f32 %v1779, %v1791
      %v1794 = vadd.f32 %v1780, %v1792
      %s1795 = scalar_lea.vmem %s11, 192
      %v1796 = vld [vmem:[%s1795] sm:$0xff]
      %v1797 = vld [vmem:[%s1795 + $0x8] sm:$0xff]
      %v1798 = vmul.f32 %v1338, %v1796
      %v1799 = vmul.f32 %v1339, %v1797
      %v1800 = vadd.f32 %v1793, %v1798
      %v1801 = vadd.f32 %v1794, %v1799
      %1802 = vrot.lane.b32.xlu0 %v1338, 125
      %v1803 = vpop.permute.xlu0 %1802
      %1804 = vrot.lane.b32.xlu0 %v1339, 125
      %v1805 = vpop.permute.xlu0 %1804
      %vm1806 = vcmp.lt.s32.totalorder %v995, 125
      %v1807 = vsel %vm1806, %v1803, %v1805
      %v1808 = vsel %vm1806, %v1805, %v1803
      %s1809 = scalar_lea.vmem %s11, 208
      %v1810 = vld [vmem:[%s1809] sm:$0xff]
      %v1811 = vld [vmem:[%s1809 + $0x8] sm:$0xff]
      %v1812 = vmul.f32 %v1807, %v1810
      %v1813 = vmul.f32 %v1808, %v1811
      %v1814 = vadd.f32 %v1800, %v1812
      %v1815 = vadd.f32 %v1801, %v1813
      %1816 = vrot.lane.b32.xlu0 %v1338, 122
      %v1817 = vpop.permute.xlu0 %1816
      %1818 = vrot.lane.b32.xlu0 %v1339, 122
      %v1819 = vpop.permute.xlu0 %1818
      %vm1820 = vcmp.lt.s32.totalorder %v995, 122
      %v1821 = vsel %vm1820, %v1817, %v1819
      %v1822 = vsel %vm1820, %v1819, %v1817
      %s1823 = scalar_lea.vmem %s11, 224
      %v1824 = vld [vmem:[%s1823] sm:$0xff]
      %v1825 = vld [vmem:[%s1823 + $0x8] sm:$0xff]
      %v1826 = vmul.f32 %v1821, %v1824
      %v1827 = vmul.f32 %v1822, %v1825
      %v1828 = vadd.f32 %v1814, %v1826
      %v1829 = vadd.f32 %v1815, %v1827
      %1830 = vrot.lane.b32.xlu0 %v1338, 86
      %v1831 = vpop.permute.xlu0 %1830
      %1832 = vrot.lane.b32.xlu0 %v1339, 86
      %v1833 = vpop.permute.xlu0 %1832
      %vm1834 = vcmp.lt.s32.totalorder %v995, 86
      %v1835 = vsel %vm1834, %v1831, %v1833
      %v1836 = vsel %vm1834, %v1833, %v1831
      %s1837 = scalar_lea.vmem %s11, 240
      %v1838 = vld [vmem:[%s1837] sm:$0xff]
      %v1839 = vld [vmem:[%s1837 + $0x8] sm:$0xff]
      %v1840 = vmul.f32 %v1835, %v1838
      %v1841 = vmul.f32 %v1836, %v1839
      %v1842 = vadd.f32 %v1828, %v1840
      %v1843 = vadd.f32 %v1829, %v1841
      %1844 = vrot.lane.b32.xlu0 %v1338, 83
      %v1845 = vpop.permute.xlu0 %1844
      %1846 = vrot.lane.b32.xlu0 %v1339, 83
      %v1847 = vpop.permute.xlu0 %1846
      %vm1848 = vcmp.lt.s32.totalorder %v995, 83
      %v1849 = vsel %vm1848, %v1845, %v1847
      %v1850 = vsel %vm1848, %v1847, %v1845
      %s1851 = scalar_lea.vmem %s11, 256
      %v1852 = vld [vmem:[%s1851] sm:$0xff]
      %v1853 = vld [vmem:[%s1851 + $0x8] sm:$0xff]
      %v1854 = vmul.f32 %v1849, %v1852
      %v1855 = vmul.f32 %v1850, %v1853
      %v1856 = vadd.f32 %v1842, %v1854
      %v1857 = vadd.f32 %v1843, %v1855
      %1858 = vrot.lane.b32.xlu0 %v1338, 80
      %v1859 = vpop.permute.xlu0 %1858
      %1860 = vrot.lane.b32.xlu0 %v1339, 80
      %v1861 = vpop.permute.xlu0 %1860
      %vm1862 = vcmp.lt.s32.totalorder %v995, 80
      %v1863 = vsel %vm1862, %v1859, %v1861
      %v1864 = vsel %vm1862, %v1861, %v1859
      %s1865 = scalar_lea.vmem %s11, 272
      %v1866 = vld [vmem:[%s1865] sm:$0xff]
      %v1867 = vld [vmem:[%s1865 + $0x8] sm:$0xff]
      %v1868 = vmul.f32 %v1863, %v1866
      %v1869 = vmul.f32 %v1864, %v1867
      %v1870 = vadd.f32 %v1856, %v1868
      %v1871 = vadd.f32 %v1857, %v1869
      %1872 = vrot.lane.b32.xlu0 %v1338, 77
      %v1873 = vpop.permute.xlu0 %1872
      %1874 = vrot.lane.b32.xlu0 %v1339, 77
      %v1875 = vpop.permute.xlu0 %1874
      %vm1876 = vcmp.lt.s32.totalorder %v995, 77
      %v1877 = vsel %vm1876, %v1873, %v1875
      %v1878 = vsel %vm1876, %v1875, %v1873
      %s1879 = scalar_lea.vmem %s11, 288
      %v1880 = vld [vmem:[%s1879] sm:$0xff]
      %v1881 = vld [vmem:[%s1879 + $0x8] sm:$0xff]
      %v1882 = vmul.f32 %v1877, %v1880
      %v1883 = vmul.f32 %v1878, %v1881
      %v1884 = vadd.f32 %v1870, %v1882
      %v1885 = vadd.f32 %v1871, %v1883
      %1886 = vrot.lane.b32.xlu0 %v1338, 74
      %v1887 = vpop.permute.xlu0 %1886
      %1888 = vrot.lane.b32.xlu0 %v1339, 74
      %v1889 = vpop.permute.xlu0 %1888
      %vm1890 = vcmp.lt.s32.totalorder %v995, 74
      %v1891 = vsel %vm1890, %v1887, %v1889
      %v1892 = vsel %vm1890, %v1889, %v1887
      %s1893 = scalar_lea.vmem %s11, 304
      %v1894 = vld [vmem:[%s1893] sm:$0xff]
      %v1895 = vld [vmem:[%s1893 + $0x8] sm:$0xff]
      %v1896 = vmul.f32 %v1891, %v1894
      %v1897 = vmul.f32 %v1892, %v1895
      %v1898 = vadd.f32 %v1884, %v1896
      %v1899 = vadd.f32 %v1885, %v1897
      %1900 = vrot.lane.b32.xlu0 %v1338, 38
      %v1901 = vpop.permute.xlu0 %1900
      %1902 = vrot.lane.b32.xlu0 %v1339, 38
      %v1903 = vpop.permute.xlu0 %1902
      %vm1904 = vcmp.lt.s32.totalorder %v995, 38
      %v1905 = vsel %vm1904, %v1901, %v1903
      %v1906 = vsel %vm1904, %v1903, %v1901
      %s1907 = scalar_lea.vmem %s11, 320
      %v1908 = vld [vmem:[%s1907] sm:$0xff]
      %v1909 = vld [vmem:[%s1907 + $0x8] sm:$0xff]
      %v1910 = vmul.f32 %v1905, %v1908
      %v1911 = vmul.f32 %v1906, %v1909
      %v1912 = vadd.f32 %v1898, %v1910
      %v1913 = vadd.f32 %v1899, %v1911
      %1914 = vrot.lane.b32.xlu0 %v1338, 35
      %v1915 = vpop.permute.xlu0 %1914
      %1916 = vrot.lane.b32.xlu0 %v1339, 35
      %v1917 = vpop.permute.xlu0 %1916
      %vm1918 = vcmp.lt.s32.totalorder %v995, 35
      %v1919 = vsel %vm1918, %v1915, %v1917
      %v1920 = vsel %vm1918, %v1917, %v1915
      %s1921 = scalar_lea.vmem %s11, 336
      %v1922 = vld [vmem:[%s1921] sm:$0xff]
      %v1923 = vld [vmem:[%s1921 + $0x8] sm:$0xff]
      %v1924 = vmul.f32 %v1919, %v1922
      %v1925 = vmul.f32 %v1920, %v1923
      %v1926 = vadd.f32 %v1912, %v1924
      %v1927 = vadd.f32 %v1913, %v1925
      %s1928 = scalar_lea.vmem %s11, 352
      %v1929 = vld [vmem:[%s1928] sm:$0xff]
      %v1930 = vld [vmem:[%s1928 + $0x8] sm:$0xff]
      %v1931 = vmul.f32 %v1438, %v1929
      %v1932 = vmul.f32 %v1439, %v1930
      %v1933 = vadd.f32 %v1926, %v1931
      %v1934 = vadd.f32 %v1927, %v1932
      %1935 = vrot.lane.b32.xlu0 %v1338, 29
      %v1936 = vpop.permute.xlu0 %1935
      %1937 = vrot.lane.b32.xlu0 %v1339, 29
      %v1938 = vpop.permute.xlu0 %1937
      %vm1939 = vcmp.lt.s32.totalorder %v995, 29
      %v1940 = vsel %vm1939, %v1936, %v1938
      %v1941 = vsel %vm1939, %v1938, %v1936
      %s1942 = scalar_lea.vmem %s11, 368
      %v1943 = vld [vmem:[%s1942] sm:$0xff]
      %v1944 = vld [vmem:[%s1942 + $0x8] sm:$0xff]
      %v1945 = vmul.f32 %v1940, %v1943
      %v1946 = vmul.f32 %v1941, %v1944
      %v1947 = vadd.f32 %v1933, %v1945
      %v1948 = vadd.f32 %v1934, %v1946
      %1949 = vrot.lane.b32.xlu0 %v1338, 26
      %v1950 = vpop.permute.xlu0 %1949
      %1951 = vrot.lane.b32.xlu0 %v1339, 26
      %v1952 = vpop.permute.xlu0 %1951
      %vm1953 = vcmp.lt.s32.totalorder %v995, 26
      %v1954 = vsel %vm1953, %v1950, %v1952
      %v1955 = vsel %vm1953, %v1952, %v1950
      %s1956 = scalar_lea.vmem %s11, 384
      %v1957 = vld [vmem:[%s1956] sm:$0xff]
      %v1958 = vld [vmem:[%s1956 + $0x8] sm:$0xff]
      %v1959 = vmul.f32 %v1954, %v1957
      %v1960 = vmul.f32 %v1955, %v1958
      %v1961 = vadd.f32 %v1947, %v1959
      %v1962 = vadd.f32 %v1948, %v1960
      %v1963 = vadd.f32 %v1635, %v1961
      %v1964 = vadd.f32 %v1636, %v1962
      %v1965 = vld [vmem:[%s12] sm:$0xff]
      %1967 = vset.pattern.permute.xlu0 0
      %1968 = vperm.xlu0 %1967, %v1965
      %v1969 = vpop.permute.xlu0 %1968
      %v1971 = vmul.f32 %v1338, %v1969
      %v1972 = vmul.f32 %v1339, %v1969
      %v1973 = vadd.f32 %v1971, %v1963
      %v1974 = vadd.f32 %v1972, %v1964
      %v1975 = vld [vmem:[%s13] sm:$0xff]
      %1977 = vset.pattern.permute.xlu0 0
      %1978 = vperm.xlu0 %1977, %v1975
      %v1979 = vpop.permute.xlu0 %1978
      %v1981 = vadd.f32 %v1973, %v1979
      %v1982 = vadd.f32 %v1974, %v1979
      %v1983 = vld [vmem:[%s14] sm:$0xff]
      %v1984 = vld [vmem:[%s15] sm:$0xff]
      %1986 = vset.pattern.permute.xlu0 0
      %1987 = vperm.xlu0 %1986, %v1984
      %v1988 = vpop.permute.xlu0 %1987
      %v1991 = vsel %vm803, %v1983, 0
      %1993 = vmatprep.subr.mxu0 %v1982
      %1994 = vmatpush1.msra.mxu0 %v1981
      %1995 = vmatprep.subr.mxu0 0.0
      %1996 = vmatpush1.msra.mxu0 0.0
      %1997 = vmatprep.subr.mxu0 0.0
      %1998 = vmatpush1.msra.mxu0 0.0
      %1999 = vmatprep.subr.mxu0 0.0
      %2000 = vmatpush1.msra.mxu0 0.0
      %2001 = vmatprep.subr.mxu0 0.0
      %2002 = vmatpush1.msra.mxu0 0.0
      %2003 = vmatprep.subr.mxu0 0.0
      %2004 = vmatpush1.msra.mxu0 0.0
      %2005 = vmatprep.subr.mxu0 0.0
      %2006 = vmatpush1.msra.mxu0 0.0
      %2007 = vmatprep.subr.mxu0 0.0
      %2008 = vmatpush1.msra.mxu0 0.0
      %2009 = vmatprep.subr.mxu0 0.0
      %2010 = vmatpush1.msra.mxu0 0.0
      %2011 = vmatprep.subr.mxu0 0.0
      %2012 = vmatpush1.msra.mxu0 0.0
      %2013 = vmatprep.subr.mxu0 0.0
      %2014 = vmatpush1.msra.mxu0 0.0
      %2015 = vmatprep.subr.mxu0 0.0
      %2016 = vmatpush1.msra.mxu0 0.0
      %2017 = vmatprep.subr.mxu0 0.0
      %2018 = vmatpush1.msra.mxu0 0.0
      %2019 = vmatprep.subr.mxu0 0.0
      %2020 = vmatpush1.msra.mxu0 0.0
      %2021 = vmatprep.subr.mxu0 0.0
      %2022 = vmatpush1.msra.mxu0 0.0
      %2023 = vmatprep.subr.mxu0 0.0
      %2024 = vmatpush1.msra.mxu0 0.0
      %2025 = vmatprep.subr.mxu0 0.0
      %2026 = vmatpush1.msra.mxu0 0.0
      %2027 = vmatprep.subr.mxu0 0.0
      %2028 = vmatpush1.msra.mxu0 0.0
      %2029 = vmatprep.subr.mxu0 0.0
      %2030 = vmatpush1.msra.mxu0 0.0
      %2031 = vmatprep.subr.mxu0 0.0
      %2032 = vmatpush1.msra.mxu0 0.0
      %2033 = vmatprep.subr.mxu0 0.0
      %2034 = vmatpush1.msra.mxu0 0.0
      %2035 = vmatprep.subr.mxu0 0.0
      %2036 = vmatpush1.msra.mxu0 0.0
      %2037 = vmatprep.subr.mxu0 0.0
      %2038 = vmatpush1.msra.mxu0 0.0
      %2039 = vmatprep.subr.mxu0 0.0
      %2040 = vmatpush1.msra.mxu0 0.0
      %2041 = vmatprep.subr.mxu0 0.0
      %2042 = vmatpush1.msra.mxu0 0.0
      %2043 = vmatprep.subr.mxu0 0.0
      %2044 = vmatpush1.msra.mxu0 0.0
      %2045 = vmatprep.subr.mxu0 0.0
      %2046 = vmatpush1.msra.mxu0 0.0
      %2047 = vmatprep.subr.mxu0 0.0
      %2048 = vmatpush1.msra.mxu0 0.0
      %2049 = vmatprep.subr.mxu0 0.0
      %2050 = vmatpush1.msra.mxu0 0.0
      %2051 = vmatprep.subr.mxu0 0.0
      %2052 = vmatpush1.msra.mxu0 0.0
      %2053 = vmatprep.subr.mxu0 0.0
      %2054 = vmatpush1.msra.mxu0 0.0
      %2055 = vmatprep.subr.mxu0 0.0
      %2056 = vmatpush1.msra.mxu0 0.0
      %2057 = vmatprep.mubr.f32.mxu0 0.0
      %2058 = vmatmul.mubr.f32.gmra.mrb[0].mxu0 %v1991
      %v2059 = vpop.f32.mrb[0].mxu0
      %v2060 = vadd.f32 %v1988, %v2059
      %v2061 = vpop.f32.mrb[0].mxu0
      %v2062 = vadd.f32 %v1988, %v2061
      %2063 = vdwg.mxu0
      %v2064 = vxor.u32 %v986, 2147483648
      %v2065 = vxor.u32 %v988, 2147483648
      %v2066 = vmul.f32 %v2064, 1.442695
      %v2067 = vpow.pop %v2066
      %v2068 = vmul.f32 %v2065, 1.442695
      %v2069 = vpow.pop %v2068
      %v2070 = vadd.f32 %v2067, 1.0
      %v2071 = vadd.f32 %v2069, 1.0
      %v2072 = vrcp.pop %v2070
      %v2073 = vmul.f32 1.0, %v2072
      %v2074 = vrcp.pop %v2071
      %v2075 = vmul.f32 1.0, %v2074
      %v2076 = vmul.f32 %v986, %v2073
      %v2077 = vmul.f32 %v988, %v2075
      %v2078 = vxor.u32 %v2060, 2147483648
      %v2079 = vxor.u32 %v2062, 2147483648
      %v2080 = vmul.f32 %v2078, 1.442695
      %v2081 = vpow.pop %v2080
      %v2082 = vmul.f32 %v2079, 1.442695
      %v2083 = vpow.pop %v2082
      %v2084 = vadd.f32 %v2081, 1.0
      %v2085 = vadd.f32 %v2083, 1.0
      %v2086 = vrcp.pop %v2084
      %v2087 = vmul.f32 1.0, %v2086
      %v2088 = vrcp.pop %v2085
      %v2089 = vmul.f32 1.0, %v2088
      %v2090 = vmul.f32 %v2060, %v2087
      %v2091 = vmul.f32 %v2062, %v2089
      %v2092 = vmul.f32 %v2076, %v2090
      %v2093 = vmul.f32 %v2077, %v2091
      %v2094 = vld [vmem:[%s1] sm:$0xff]
      %2096 = vset.pattern.permute.xlu0 0
      %2097 = vperm.xlu0 %2096, %v2094
      %v2098 = vpop.permute.xlu0 %2097
      %v2100 = vmul.f32 %v794, %v2098
      %v2101 = vmul.f32 %v795, %v2098
      %v2102 = vld [vmem:[%s2] sm:$0xff]
      %2104 = vset.pattern.permute.xlu0 0
      %2105 = vperm.xlu0 %2104, %v2102
      %v2106 = vpop.permute.xlu0 %2105
      %v2108 = vadd.f32 %v2100, %v2106
      %v2109 = vadd.f32 %v2101, %v2106
      %v2110 = vld [vmem:[%s16] sm:$0xff]
      %v2112 = vsel %vm803, %v2110, 0
      %2114 = vmatprep.subr.mxu0 %v2093
      %2115 = vmatpush1.msra.mxu0 %v2092
      %2116 = vmatprep.subr.mxu0 0.0
      %2117 = vmatpush1.msra.mxu0 0.0
      %2118 = vmatprep.subr.mxu0 0.0
      %2119 = vmatpush1.msra.mxu0 0.0
      %2120 = vmatprep.subr.mxu0 0.0
      %2121 = vmatpush1.msra.mxu0 0.0
      %2122 = vmatprep.subr.mxu0 0.0
      %2123 = vmatpush1.msra.mxu0 0.0
      %2124 = vmatprep.subr.mxu0 0.0
      %2125 = vmatpush1.msra.mxu0 0.0
      %2126 = vmatprep.subr.mxu0 0.0
      %2127 = vmatpush1.msra.mxu0 0.0
      %2128 = vmatprep.subr.mxu0 0.0
      %2129 = vmatpush1.msra.mxu0 0.0
      %2130 = vmatprep.subr.mxu0 0.0
      %2131 = vmatpush1.msra.mxu0 0.0
      %2132 = vmatprep.subr.mxu0 0.0
      %2133 = vmatpush1.msra.mxu0 0.0
      %2134 = vmatprep.subr.mxu0 0.0
      %2135 = vmatpush1.msra.mxu0 0.0
      %2136 = vmatprep.subr.mxu0 0.0
      %2137 = vmatpush1.msra.mxu0 0.0
      %2138 = vmatprep.subr.mxu0 0.0
      %2139 = vmatpush1.msra.mxu0 0.0
      %2140 = vmatprep.subr.mxu0 0.0
      %2141 = vmatpush1.msra.mxu0 0.0
      %2142 = vmatprep.subr.mxu0 0.0
      %2143 = vmatpush1.msra.mxu0 0.0
      %2144 = vmatprep.subr.mxu0 0.0
      %2145 = vmatpush1.msra.mxu0 0.0
      %2146 = vmatprep.subr.mxu0 0.0
      %2147 = vmatpush1.msra.mxu0 0.0
      %2148 = vmatprep.subr.mxu0 0.0
      %2149 = vmatpush1.msra.mxu0 0.0
      %2150 = vmatprep.subr.mxu0 0.0
      %2151 = vmatpush1.msra.mxu0 0.0
      %2152 = vmatprep.subr.mxu0 0.0
      %2153 = vmatpush1.msra.mxu0 0.0
      %2154 = vmatprep.subr.mxu0 0.0
      %2155 = vmatpush1.msra.mxu0 0.0
      %2156 = vmatprep.subr.mxu0 0.0
      %2157 = vmatpush1.msra.mxu0 0.0
      %2158 = vmatprep.subr.mxu0 0.0
      %2159 = vmatpush1.msra.mxu0 0.0
      %2160 = vmatprep.subr.mxu0 0.0
      %2161 = vmatpush1.msra.mxu0 0.0
      %2162 = vmatprep.subr.mxu0 0.0
      %2163 = vmatpush1.msra.mxu0 0.0
      %2164 = vmatprep.subr.mxu0 0.0
      %2165 = vmatpush1.msra.mxu0 0.0
      %2166 = vmatprep.subr.mxu0 0.0
      %2167 = vmatpush1.msra.mxu0 0.0
      %2168 = vmatprep.subr.mxu0 0.0
      %2169 = vmatpush1.msra.mxu0 0.0
      %2170 = vmatprep.subr.mxu0 0.0
      %2171 = vmatpush1.msra.mxu0 0.0
      %2172 = vmatprep.subr.mxu0 0.0
      %2173 = vmatpush1.msra.mxu0 0.0
      %2174 = vmatprep.subr.mxu0 0.0
      %2175 = vmatpush1.msra.mxu0 0.0
      %2176 = vmatprep.subr.mxu0 0.0
      %2177 = vmatpush1.msra.mxu0 0.0
      %2178 = vmatprep.mubr.f32.mxu0 0.0
      %2179 = vmatmul.mubr.f32.gmra.mrb[0].mxu0 %v2112
      %v2180 = vpop.f32.mrb[0].mxu0
      %v2181 = vadd.f32 0.0, %v2180
      %v2182 = vpop.f32.mrb[0].mxu0
      %v2183 = vadd.f32 0.0, %v2182
      %2184 = vdwg.mxu0
      %v2185 = vadd.f32 %v2108, %v2181
      %v2186 = vadd.f32 %v2109, %v2183
      %v2187 = vld [vmem:[%s17] sm:$0xff]
      %v2188 = vld [vmem:[%s17 + $0x8] sm:$0xff]
      %v2189 = vld [vmem:[%s17 + $0x10] sm:$0xff]
      %v2190 = vld [vmem:[%s17 + $0x18] sm:$0xff]
      %v2191 = vld [vmem:[%s18] sm:$0xff]
      %v2192 = vld [vmem:[%s18 + $0x8] sm:$0xff]
      %v2193 = vld [vmem:[%s18 + $0x10] sm:$0xff]
      %v2194 = vld [vmem:[%s18 + $0x18] sm:$0xff]
      %2196 = vset.pattern.permute.xlu0 0
      %2197 = vperm.xlu0 %2196, %v2191
      %v2198 = vpop.permute.xlu0 %2197
      %2201 = vset.pattern.permute.xlu0 0
      %2202 = vperm.xlu0 %2201, %v2192
      %v2203 = vpop.permute.xlu0 %2202
      %2206 = vset.pattern.permute.xlu0 0
      %2207 = vperm.xlu0 %2206, %v2193
      %v2208 = vpop.permute.xlu0 %2207
      %2211 = vset.pattern.permute.xlu0 0
      %2212 = vperm.xlu0 %2211, %v2194
      %v2213 = vpop.permute.xlu0 %2212
      %v2216 = vsel %vm803, %v2187, 0
      %v2219 = vsel %vm803, %v2188, 0
      %v2222 = vsel %vm803, %v2189, 0
      %v2225 = vsel %vm803, %v2190, 0
      %2227 = vmatprep.subr.mxu0 %v2186
      %2228 = vmatpush1.msra.mxu0 %v2185
      %2229 = vmatprep.subr.mxu0 0.0
      %2230 = vmatpush1.msra.mxu0 0.0
      %2231 = vmatprep.subr.mxu0 0.0
      %2232 = vmatpush1.msra.mxu0 0.0
      %2233 = vmatprep.subr.mxu0 0.0
      %2234 = vmatpush1.msra.mxu0 0.0
      %2235 = vmatprep.subr.mxu0 0.0
      %2236 = vmatpush1.msra.mxu0 0.0
      %2237 = vmatprep.subr.mxu0 0.0
      %2238 = vmatpush1.msra.mxu0 0.0
      %2239 = vmatprep.subr.mxu0 0.0
      %2240 = vmatpush1.msra.mxu0 0.0
      %2241 = vmatprep.subr.mxu0 0.0
      %2242 = vmatpush1.msra.mxu0 0.0
      %2243 = vmatprep.subr.mxu0 0.0
      %2244 = vmatpush1.msra.mxu0 0.0
      %2245 = vmatprep.subr.mxu0 0.0
      %2246 = vmatpush1.msra.mxu0 0.0
      %2247 = vmatprep.subr.mxu0 0.0
      %2248 = vmatpush1.msra.mxu0 0.0
      %2249 = vmatprep.subr.mxu0 0.0
      %2250 = vmatpush1.msra.mxu0 0.0
      %2251 = vmatprep.subr.mxu0 0.0
      %2252 = vmatpush1.msra.mxu0 0.0
      %2253 = vmatprep.subr.mxu0 0.0
      %2254 = vmatpush1.msra.mxu0 0.0
      %2255 = vmatprep.subr.mxu0 0.0
      %2256 = vmatpush1.msra.mxu0 0.0
      %2257 = vmatprep.subr.mxu0 0.0
      %2258 = vmatpush1.msra.mxu0 0.0
      %2259 = vmatprep.subr.mxu0 0.0
      %2260 = vmatpush1.msra.mxu0 0.0
      %2261 = vmatprep.subr.mxu0 0.0
      %2262 = vmatpush1.msra.mxu0 0.0
      %2263 = vmatprep.subr.mxu0 0.0
      %2264 = vmatpush1.msra.mxu0 0.0
      %2265 = vmatprep.subr.mxu0 0.0
      %2266 = vmatpush1.msra.mxu0 0.0
      %2267 = vmatprep.subr.mxu0 0.0
      %2268 = vmatpush1.msra.mxu0 0.0
      %2269 = vmatprep.subr.mxu0 0.0
      %2270 = vmatpush1.msra.mxu0 0.0
      %2271 = vmatprep.subr.mxu0 0.0
      %2272 = vmatpush1.msra.mxu0 0.0
      %2273 = vmatprep.subr.mxu0 0.0
      %2274 = vmatpush1.msra.mxu0 0.0
      %2275 = vmatprep.subr.mxu0 0.0
      %2276 = vmatpush1.msra.mxu0 0.0
      %2277 = vmatprep.subr.mxu0 0.0
      %2278 = vmatpush1.msra.mxu0 0.0
      %2279 = vmatprep.subr.mxu0 0.0
      %2280 = vmatpush1.msra.mxu0 0.0
      %2281 = vmatprep.subr.mxu0 0.0
      %2282 = vmatpush1.msra.mxu0 0.0
      %2283 = vmatprep.subr.mxu0 0.0
      %2284 = vmatpush1.msra.mxu0 0.0
      %2285 = vmatprep.subr.mxu0 0.0
      %2286 = vmatpush1.msra.mxu0 0.0
      %2287 = vmatprep.subr.mxu0 0.0
      %2288 = vmatpush1.msra.mxu0 0.0
      %2289 = vmatprep.subr.mxu0 0.0
      %2290 = vmatpush1.msra.mxu0 0.0
      %2291 = vmatprep.mubr.f32.mxu0 0.0
      %2292 = vmatmul.mubr.f32.gmra.mrb[0].mxu0 %v2216
      %v2293 = vpop.f32.mrb[0].mxu0
      %v2294 = vadd.f32 %v2198, %v2293
      %v2295 = vpop.f32.mrb[0].mxu0
      %v2296 = vadd.f32 %v2198, %v2295
      %2297 = vmatprep.mubr.f32.mxu0 0.0
      %2298 = vmatmul.mubr.f32.gmra.mrb[0].mxu0 %v2219
      %v2299 = vpop.f32.mrb[0].mxu0
      %v2300 = vadd.f32 %v2203, %v2299
      %v2301 = vpop.f32.mrb[0].mxu0
      %v2302 = vadd.f32 %v2203, %v2301
      %2303 = vmatprep.mubr.f32.mxu0 0.0
      %2304 = vmatmul.mubr.f32.gmra.mrb[0].mxu0 %v2222
      %v2305 = vpop.f32.mrb[0].mxu0
      %v2306 = vadd.f32 %v2208, %v2305
      %v2307 = vpop.f32.mrb[0].mxu0
      %v2308 = vadd.f32 %v2208, %v2307
      %2309 = vmatprep.mubr.f32.mxu0 0.0
      %2310 = vmatmul.mubr.f32.gmra.mrb[0].mxu0 %v2225
      %v2311 = vpop.f32.mrb[0].mxu0
      %v2312 = vadd.f32 %v2213, %v2311
      %v2313 = vpop.f32.mrb[0].mxu0
      %v2314 = vadd.f32 %v2213, %v2313
      %2315 = vdwg.mxu0
      %2316 = vrot.lane.b32.xlu0 %v2294, 17
      %v2317 = vpop.permute.xlu0 %2316
      %2318 = vrot.lane.b32.xlu0 %v2300, 17
      %v2319 = vpop.permute.xlu0 %2318
      %2320 = vrot.lane.b32.xlu0 %v2306, 17
      %v2321 = vpop.permute.xlu0 %2320
      %2322 = vrot.lane.b32.xlu0 %v2312, 17
      %v2323 = vpop.permute.xlu0 %2322
      %2324 = vrot.lane.b32.xlu0 %v2296, 17
      %v2325 = vpop.permute.xlu0 %2324
      %2326 = vrot.lane.b32.xlu0 %v2302, 17
      %v2327 = vpop.permute.xlu0 %2326
      %2328 = vrot.lane.b32.xlu0 %v2308, 17
      %v2329 = vpop.permute.xlu0 %2328
      %2330 = vrot.lane.b32.xlu0 %v2314, 17
      %v2331 = vpop.permute.xlu0 %2330
      %v2332 = vsel %vm1077, %v2317, %v2325
      %v2333 = vsel %vm1077, %v2319, %v2327
      %v2334 = vsel %vm1077, %v2321, %v2329
      %v2335 = vsel %vm1077, %v2323, %v2331
      %v2336 = vsel %vm1077, %v2325, %v2317
      %v2337 = vsel %vm1077, %v2327, %v2319
      %v2338 = vsel %vm1077, %v2329, %v2321
      %v2339 = vsel %vm1077, %v2331, %v2323
      %v2340 = vld [vmem:[%s19] sm:$0xff]
      %v2341 = vld [vmem:[%s19 + $0x8] sm:$0xff]
      %v2342 = vld [vmem:[%s19 + $0x10] sm:$0xff]
      %v2343 = vld [vmem:[%s19 + $0x18] sm:$0xff]
      %v2344 = vld [vmem:[%s19 + $0x20] sm:$0xff]
      %v2345 = vld [vmem:[%s19 + $0x28] sm:$0xff]
      %v2346 = vld [vmem:[%s19 + $0x30] sm:$0xff]
      %v2347 = vld [vmem:[%s19 + $0x38] sm:$0xff]
      %v2348 = vmul.f32 %v2336, %v2340
      %v2349 = vmul.f32 %v2332, %v2341
      %v2350 = vmul.f32 %v2337, %v2342
      %v2351 = vmul.f32 %v2333, %v2343
      %v2352 = vmul.f32 %v2338, %v2344
      %v2353 = vmul.f32 %v2334, %v2345
      %v2354 = vmul.f32 %v2339, %v2346
      %v2355 = vmul.f32 %v2335, %v2347
      %2356 = vrot.lane.b32.xlu0 %v2294, 16
      %v2357 = vpop.permute.xlu0 %2356
      %2358 = vrot.lane.b32.xlu0 %v2300, 16
      %v2359 = vpop.permute.xlu0 %2358
      %2360 = vrot.lane.b32.xlu0 %v2306, 16
      %v2361 = vpop.permute.xlu0 %2360
      %2362 = vrot.lane.b32.xlu0 %v2312, 16
      %v2363 = vpop.permute.xlu0 %2362
      %2364 = vrot.lane.b32.xlu0 %v2296, 16
      %v2365 = vpop.permute.xlu0 %2364
      %2366 = vrot.lane.b32.xlu0 %v2302, 16
      %v2367 = vpop.permute.xlu0 %2366
      %2368 = vrot.lane.b32.xlu0 %v2308, 16
      %v2369 = vpop.permute.xlu0 %2368
      %2370 = vrot.lane.b32.xlu0 %v2314, 16
      %v2371 = vpop.permute.xlu0 %2370
      %v2372 = vsel %vm1091, %v2357, %v2365
      %v2373 = vsel %vm1091, %v2359, %v2367
      %v2374 = vsel %vm1091, %v2361, %v2369
      %v2375 = vsel %vm1091, %v2363, %v2371
      %v2376 = vsel %vm1091, %v2365, %v2357
      %v2377 = vsel %vm1091, %v2367, %v2359
      %v2378 = vsel %vm1091, %v2369, %v2361
      %v2379 = vsel %vm1091, %v2371, %v2363
      %s2380 = scalar_lea.vmem %s19, 64
      %v2381 = vld [vmem:[%s2380] sm:$0xff]
      %v2382 = vld [vmem:[%s2380 + $0x8] sm:$0xff]
      %v2383 = vld [vmem:[%s2380 + $0x10] sm:$0xff]
      %v2384 = vld [vmem:[%s2380 + $0x18] sm:$0xff]
      %v2385 = vld [vmem:[%s2380 + $0x20] sm:$0xff]
      %v2386 = vld [vmem:[%s2380 + $0x28] sm:$0xff]
      %v2387 = vld [vmem:[%s2380 + $0x30] sm:$0xff]
      %v2388 = vld [vmem:[%s2380 + $0x38] sm:$0xff]
      %v2389 = vmul.f32 %v2376, %v2381
      %v2390 = vmul.f32 %v2372, %v2382
      %v2391 = vmul.f32 %v2377, %v2383
      %v2392 = vmul.f32 %v2373, %v2384
      %v2393 = vmul.f32 %v2378, %v2385
      %v2394 = vmul.f32 %v2374, %v2386
      %v2395 = vmul.f32 %v2379, %v2387
      %v2396 = vmul.f32 %v2375, %v2388
      %v2397 = vadd.f32 %v2348, %v2389
      %v2398 = vadd.f32 %v2349, %v2390
      %v2399 = vadd.f32 %v2350, %v2391
      %v2400 = vadd.f32 %v2351, %v2392
      %v2401 = vadd.f32 %v2352, %v2393
      %v2402 = vadd.f32 %v2353, %v2394
      %v2403 = vadd.f32 %v2354, %v2395
      %v2404 = vadd.f32 %v2355, %v2396
      %2405 = vrot.lane.b32.xlu0 %v2294, 15
      %v2406 = vpop.permute.xlu0 %2405
      %2407 = vrot.lane.b32.xlu0 %v2300, 15
      %v2408 = vpop.permute.xlu0 %2407
      %2409 = vrot.lane.b32.xlu0 %v2306, 15
      %v2410 = vpop.permute.xlu0 %2409
      %2411 = vrot.lane.b32.xlu0 %v2312, 15
      %v2412 = vpop.permute.xlu0 %2411
      %2413 = vrot.lane.b32.xlu0 %v2296, 15
      %v2414 = vpop.permute.xlu0 %2413
      %2415 = vrot.lane.b32.xlu0 %v2302, 15
      %v2416 = vpop.permute.xlu0 %2415
      %2417 = vrot.lane.b32.xlu0 %v2308, 15
      %v2418 = vpop.permute.xlu0 %2417
      %2419 = vrot.lane.b32.xlu0 %v2314, 15
      %v2420 = vpop.permute.xlu0 %2419
      %v2421 = vsel %vm1105, %v2406, %v2414
      %v2422 = vsel %vm1105, %v2408, %v2416
      %v2423 = vsel %vm1105, %v2410, %v2418
      %v2424 = vsel %vm1105, %v2412, %v2420
      %v2425 = vsel %vm1105, %v2414, %v2406
      %v2426 = vsel %vm1105, %v2416, %v2408
      %v2427 = vsel %vm1105, %v2418, %v2410
      %v2428 = vsel %vm1105, %v2420, %v2412
      %s2429 = scalar_lea.vmem %s19, 128
      %v2430 = vld [vmem:[%s2429] sm:$0xff]
      %v2431 = vld [vmem:[%s2429 + $0x8] sm:$0xff]
      %v2432 = vld [vmem:[%s2429 + $0x10] sm:$0xff]
      %v2433 = vld [vmem:[%s2429 + $0x18] sm:$0xff]
      %v2434 = vld [vmem:[%s2429 + $0x20] sm:$0xff]
      %v2435 = vld [vmem:[%s2429 + $0x28] sm:$0xff]
      %v2436 = vld [vmem:[%s2429 + $0x30] sm:$0xff]
      %v2437 = vld [vmem:[%s2429 + $0x38] sm:$0xff]
      %v2438 = vmul.f32 %v2425, %v2430
      %v2439 = vmul.f32 %v2421, %v2431
      %v2440 = vmul.f32 %v2426, %v2432
      %v2441 = vmul.f32 %v2422, %v2433
      %v2442 = vmul.f32 %v2427, %v2434
      %v2443 = vmul.f32 %v2423, %v2435
      %v2444 = vmul.f32 %v2428, %v2436
      %v2445 = vmul.f32 %v2424, %v2437
      %v2446 = vadd.f32 %v2397, %v2438
      %v2447 = vadd.f32 %v2398, %v2439
      %v2448 = vadd.f32 %v2399, %v2440
      %v2449 = vadd.f32 %v2400, %v2441
      %v2450 = vadd.f32 %v2401, %v2442
      %v2451 = vadd.f32 %v2402, %v2443
      %v2452 = vadd.f32 %v2403, %v2444
      %v2453 = vadd.f32 %v2404, %v2445
      %2454 = vrot.lane.b32.xlu0 %v2294, 1
      %v2455 = vpop.permute.xlu0 %2454
      %2456 = vrot.lane.b32.xlu0 %v2300, 1
      %v2457 = vpop.permute.xlu0 %2456
      %2458 = vrot.lane.b32.xlu0 %v2306, 1
      %v2459 = vpop.permute.xlu0 %2458
      %2460 = vrot.lane.b32.xlu0 %v2312, 1
      %v2461 = vpop.permute.xlu0 %2460
      %2462 = vrot.lane.b32.xlu0 %v2296, 1
      %v2463 = vpop.permute.xlu0 %2462
      %2464 = vrot.lane.b32.xlu0 %v2302, 1
      %v2465 = vpop.permute.xlu0 %2464
      %2466 = vrot.lane.b32.xlu0 %v2308, 1
      %v2467 = vpop.permute.xlu0 %2466
      %2468 = vrot.lane.b32.xlu0 %v2314, 1
      %v2469 = vpop.permute.xlu0 %2468
      %v2470 = vsel %vm1147, %v2455, %v2463
      %v2471 = vsel %vm1147, %v2457, %v2465
      %v2472 = vsel %vm1147, %v2459, %v2467
      %v2473 = vsel %vm1147, %v2461, %v2469
      %v2474 = vsel %vm1147, %v2463, %v2455
      %v2475 = vsel %vm1147, %v2465, %v2457
      %v2476 = vsel %vm1147, %v2467, %v2459
      %v2477 = vsel %vm1147, %v2469, %v2461
      %s2478 = scalar_lea.vmem %s19, 192
      %v2479 = vld [vmem:[%s2478] sm:$0xff]
      %v2480 = vld [vmem:[%s2478 + $0x8] sm:$0xff]
      %v2481 = vld [vmem:[%s2478 + $0x10] sm:$0xff]
      %v2482 = vld [vmem:[%s2478 + $0x18] sm:$0xff]
      %v2483 = vld [vmem:[%s2478 + $0x20] sm:$0xff]
      %v2484 = vld [vmem:[%s2478 + $0x28] sm:$0xff]
      %v2485 = vld [vmem:[%s2478 + $0x30] sm:$0xff]
      %v2486 = vld [vmem:[%s2478 + $0x38] sm:$0xff]
      %v2487 = vmul.f32 %v2474, %v2479
      %v2488 = vmul.f32 %v2470, %v2480
      %v2489 = vmul.f32 %v2475, %v2481
      %v2490 = vmul.f32 %v2471, %v2482
      %v2491 = vmul.f32 %v2476, %v2483
      %v2492 = vmul.f32 %v2472, %v2484
      %v2493 = vmul.f32 %v2477, %v2485
      %v2494 = vmul.f32 %v2473, %v2486
      %v2495 = vadd.f32 %v2446, %v2487
      %v2496 = vadd.f32 %v2447, %v2488
      %v2497 = vadd.f32 %v2448, %v2489
      %v2498 = vadd.f32 %v2449, %v2490
      %v2499 = vadd.f32 %v2450, %v2491
      %v2500 = vadd.f32 %v2451, %v2492
      %v2501 = vadd.f32 %v2452, %v2493
      %v2502 = vadd.f32 %v2453, %v2494
      %s2503 = scalar_lea.vmem %s19, 256
      %v2504 = vld [vmem:[%s2503] sm:$0xff]
      %v2505 = vld [vmem:[%s2503 + $0x8] sm:$0xff]
      %v2506 = vld [vmem:[%s2503 + $0x10] sm:$0xff]
      %v2507 = vld [vmem:[%s2503 + $0x18] sm:$0xff]
      %v2508 = vld [vmem:[%s2503 + $0x20] sm:$0xff]
      %v2509 = vld [vmem:[%s2503 + $0x28] sm:$0xff]
      %v2510 = vld [vmem:[%s2503 + $0x30] sm:$0xff]
      %v2511 = vld [vmem:[%s2503 + $0x38] sm:$0xff]
      %v2512 = vmul.f32 %v2294, %v2504
      %v2513 = vmul.f32 %v2296, %v2505
      %v2514 = vmul.f32 %v2300, %v2506
      %v2515 = vmul.f32 %v2302, %v2507
      %v2516 = vmul.f32 %v2306, %v2508
      %v2517 = vmul.f32 %v2308, %v2509
      %v2518 = vmul.f32 %v2312, %v2510
      %v2519 = vmul.f32 %v2314, %v2511
      %v2520 = vadd.f32 %v2495, %v2512
      %v2521 = vadd.f32 %v2496, %v2513
      %v2522 = vadd.f32 %v2497, %v2514
      %v2523 = vadd.f32 %v2498, %v2515
      %v2524 = vadd.f32 %v2499, %v2516
      %v2525 = vadd.f32 %v2500, %v2517
      %v2526 = vadd.f32 %v2501, %v2518
      %v2527 = vadd.f32 %v2502, %v2519
      %2528 = vrot.lane.b32.xlu0 %v2294, 127
      %v2529 = vpop.permute.xlu0 %2528
      %2530 = vrot.lane.b32.xlu0 %v2300, 127
      %v2531 = vpop.permute.xlu0 %2530
      %2532 = vrot.lane.b32.xlu0 %v2306, 127
      %v2533 = vpop.permute.xlu0 %2532
      %2534 = vrot.lane.b32.xlu0 %v2312, 127
      %v2535 = vpop.permute.xlu0 %2534
      %2536 = vrot.lane.b32.xlu0 %v2296, 127
      %v2537 = vpop.permute.xlu0 %2536
      %2538 = vrot.lane.b32.xlu0 %v2302, 127
      %v2539 = vpop.permute.xlu0 %2538
      %2540 = vrot.lane.b32.xlu0 %v2308, 127
      %v2541 = vpop.permute.xlu0 %2540
      %2542 = vrot.lane.b32.xlu0 %v2314, 127
      %v2543 = vpop.permute.xlu0 %2542
      %v2544 = vsel %vm1168, %v2529, %v2537
      %v2545 = vsel %vm1168, %v2531, %v2539
      %v2546 = vsel %vm1168, %v2533, %v2541
      %v2547 = vsel %vm1168, %v2535, %v2543
      %v2548 = vsel %vm1168, %v2537, %v2529
      %v2549 = vsel %vm1168, %v2539, %v2531
      %v2550 = vsel %vm1168, %v2541, %v2533
      %v2551 = vsel %vm1168, %v2543, %v2535
      %s2552 = scalar_lea.vmem %s19, 320
      %v2553 = vld [vmem:[%s2552] sm:$0xff]
      %v2554 = vld [vmem:[%s2552 + $0x8] sm:$0xff]
      %v2555 = vld [vmem:[%s2552 + $0x10] sm:$0xff]
      %v2556 = vld [vmem:[%s2552 + $0x18] sm:$0xff]
      %v2557 = vld [vmem:[%s2552 + $0x20] sm:$0xff]
      %v2558 = vld [vmem:[%s2552 + $0x28] sm:$0xff]
      %v2559 = vld [vmem:[%s2552 + $0x30] sm:$0xff]
      %v2560 = vld [vmem:[%s2552 + $0x38] sm:$0xff]
      %v2561 = vmul.f32 %v2544, %v2553
      %v2562 = vmul.f32 %v2548, %v2554
      %v2563 = vmul.f32 %v2545, %v2555
      %v2564 = vmul.f32 %v2549, %v2556
      %v2565 = vmul.f32 %v2546, %v2557
      %v2566 = vmul.f32 %v2550, %v2558
      %v2567 = vmul.f32 %v2547, %v2559
      %v2568 = vmul.f32 %v2551, %v2560
      %v2569 = vadd.f32 %v2520, %v2561
      %v2570 = vadd.f32 %v2521, %v2562
      %v2571 = vadd.f32 %v2522, %v2563
      %v2572 = vadd.f32 %v2523, %v2564
      %v2573 = vadd.f32 %v2524, %v2565
      %v2574 = vadd.f32 %v2525, %v2566
      %v2575 = vadd.f32 %v2526, %v2567
      %v2576 = vadd.f32 %v2527, %v2568
      %2577 = vrot.lane.b32.xlu0 %v2294, 113
      %v2578 = vpop.permute.xlu0 %2577
      %2579 = vrot.lane.b32.xlu0 %v2300, 113
      %v2580 = vpop.permute.xlu0 %2579
      %2581 = vrot.lane.b32.xlu0 %v2306, 113
      %v2582 = vpop.permute.xlu0 %2581
      %2583 = vrot.lane.b32.xlu0 %v2312, 113
      %v2584 = vpop.permute.xlu0 %2583
      %2585 = vrot.lane.b32.xlu0 %v2296, 113
      %v2586 = vpop.permute.xlu0 %2585
      %2587 = vrot.lane.b32.xlu0 %v2302, 113
      %v2588 = vpop.permute.xlu0 %2587
      %2589 = vrot.lane.b32.xlu0 %v2308, 113
      %v2590 = vpop.permute.xlu0 %2589
      %2591 = vrot.lane.b32.xlu0 %v2314, 113
      %v2592 = vpop.permute.xlu0 %2591
      %v2593 = vsel %vm1210, %v2578, %v2586
      %v2594 = vsel %vm1210, %v2580, %v2588
      %v2595 = vsel %vm1210, %v2582, %v2590
      %v2596 = vsel %vm1210, %v2584, %v2592
      %v2597 = vsel %vm1210, %v2586, %v2578
      %v2598 = vsel %vm1210, %v2588, %v2580
      %v2599 = vsel %vm1210, %v2590, %v2582
      %v2600 = vsel %vm1210, %v2592, %v2584
      %s2601 = scalar_lea.vmem %s19, 384
      %v2602 = vld [vmem:[%s2601] sm:$0xff]
      %v2603 = vld [vmem:[%s2601 + $0x8] sm:$0xff]
      %v2604 = vld [vmem:[%s2601 + $0x10] sm:$0xff]
      %v2605 = vld [vmem:[%s2601 + $0x18] sm:$0xff]
      %v2606 = vld [vmem:[%s2601 + $0x20] sm:$0xff]
      %v2607 = vld [vmem:[%s2601 + $0x28] sm:$0xff]
      %v2608 = vld [vmem:[%s2601 + $0x30] sm:$0xff]
      %v2609 = vld [vmem:[%s2601 + $0x38] sm:$0xff]
      %v2610 = vmul.f32 %v2593, %v2602
      %v2611 = vmul.f32 %v2597, %v2603
      %v2612 = vmul.f32 %v2594, %v2604
      %v2613 = vmul.f32 %v2598, %v2605
      %v2614 = vmul.f32 %v2595, %v2606
      %v2615 = vmul.f32 %v2599, %v2607
      %v2616 = vmul.f32 %v2596, %v2608
      %v2617 = vmul.f32 %v2600, %v2609
      %v2618 = vadd.f32 %v2569, %v2610
      %v2619 = vadd.f32 %v2570, %v2611
      %v2620 = vadd.f32 %v2571, %v2612
      %v2621 = vadd.f32 %v2572, %v2613
      %v2622 = vadd.f32 %v2573, %v2614
      %v2623 = vadd.f32 %v2574, %v2615
      %v2624 = vadd.f32 %v2575, %v2616
      %v2625 = vadd.f32 %v2576, %v2617
      %2626 = vrot.lane.b32.xlu0 %v2294, 112
      %v2627 = vpop.permute.xlu0 %2626
      %2628 = vrot.lane.b32.xlu0 %v2300, 112
      %v2629 = vpop.permute.xlu0 %2628
      %2630 = vrot.lane.b32.xlu0 %v2306, 112
      %v2631 = vpop.permute.xlu0 %2630
      %2632 = vrot.lane.b32.xlu0 %v2312, 112
      %v2633 = vpop.permute.xlu0 %2632
      %2634 = vrot.lane.b32.xlu0 %v2296, 112
      %v2635 = vpop.permute.xlu0 %2634
      %2636 = vrot.lane.b32.xlu0 %v2302, 112
      %v2637 = vpop.permute.xlu0 %2636
      %2638 = vrot.lane.b32.xlu0 %v2308, 112
      %v2639 = vpop.permute.xlu0 %2638
      %2640 = vrot.lane.b32.xlu0 %v2314, 112
      %v2641 = vpop.permute.xlu0 %2640
      %v2642 = vsel %vm1224, %v2627, %v2635
      %v2643 = vsel %vm1224, %v2629, %v2637
      %v2644 = vsel %vm1224, %v2631, %v2639
      %v2645 = vsel %vm1224, %v2633, %v2641
      %v2646 = vsel %vm1224, %v2635, %v2627
      %v2647 = vsel %vm1224, %v2637, %v2629
      %v2648 = vsel %vm1224, %v2639, %v2631
      %v2649 = vsel %vm1224, %v2641, %v2633
      %s2650 = scalar_lea.vmem %s19, 448
      %v2651 = vld [vmem:[%s2650] sm:$0xff]
      %v2652 = vld [vmem:[%s2650 + $0x8] sm:$0xff]
      %v2653 = vld [vmem:[%s2650 + $0x10] sm:$0xff]
      %v2654 = vld [vmem:[%s2650 + $0x18] sm:$0xff]
      %v2655 = vld [vmem:[%s2650 + $0x20] sm:$0xff]
      %v2656 = vld [vmem:[%s2650 + $0x28] sm:$0xff]
      %v2657 = vld [vmem:[%s2650 + $0x30] sm:$0xff]
      %v2658 = vld [vmem:[%s2650 + $0x38] sm:$0xff]
      %v2659 = vmul.f32 %v2642, %v2651
      %v2660 = vmul.f32 %v2646, %v2652
      %v2661 = vmul.f32 %v2643, %v2653
      %v2662 = vmul.f32 %v2647, %v2654
      %v2663 = vmul.f32 %v2644, %v2655
      %v2664 = vmul.f32 %v2648, %v2656
      %v2665 = vmul.f32 %v2645, %v2657
      %v2666 = vmul.f32 %v2649, %v2658
      %v2667 = vadd.f32 %v2618, %v2659
      %v2668 = vadd.f32 %v2619, %v2660
      %v2669 = vadd.f32 %v2620, %v2661
      %v2670 = vadd.f32 %v2621, %v2662
      %v2671 = vadd.f32 %v2622, %v2663
      %v2672 = vadd.f32 %v2623, %v2664
      %v2673 = vadd.f32 %v2624, %v2665
      %v2674 = vadd.f32 %v2625, %v2666
      %2675 = vrot.lane.b32.xlu0 %v2294, 111
      %v2676 = vpop.permute.xlu0 %2675
      %2677 = vrot.lane.b32.xlu0 %v2300, 111
      %v2678 = vpop.permute.xlu0 %2677
      %2679 = vrot.lane.b32.xlu0 %v2306, 111
      %v2680 = vpop.permute.xlu0 %2679
      %2681 = vrot.lane.b32.xlu0 %v2312, 111
      %v2682 = vpop.permute.xlu0 %2681
      %2683 = vrot.lane.b32.xlu0 %v2296, 111
      %v2684 = vpop.permute.xlu0 %2683
      %2685 = vrot.lane.b32.xlu0 %v2302, 111
      %v2686 = vpop.permute.xlu0 %2685
      %2687 = vrot.lane.b32.xlu0 %v2308, 111
      %v2688 = vpop.permute.xlu0 %2687
      %2689 = vrot.lane.b32.xlu0 %v2314, 111
      %v2690 = vpop.permute.xlu0 %2689
      %v2691 = vsel %vm1238, %v2676, %v2684
      %v2692 = vsel %vm1238, %v2678, %v2686
      %v2693 = vsel %vm1238, %v2680, %v2688
      %v2694 = vsel %vm1238, %v2682, %v2690
      %v2695 = vsel %vm1238, %v2684, %v2676
      %v2696 = vsel %vm1238, %v2686, %v2678
      %v2697 = vsel %vm1238, %v2688, %v2680
      %v2698 = vsel %vm1238, %v2690, %v2682
      %s2699 = scalar_lea.vmem %s19, 512
      %v2700 = vld [vmem:[%s2699] sm:$0xff]
      %v2701 = vld [vmem:[%s2699 + $0x8] sm:$0xff]
      %v2702 = vld [vmem:[%s2699 + $0x10] sm:$0xff]
      %v2703 = vld [vmem:[%s2699 + $0x18] sm:$0xff]
      %v2704 = vld [vmem:[%s2699 + $0x20] sm:$0xff]
      %v2705 = vld [vmem:[%s2699 + $0x28] sm:$0xff]
      %v2706 = vld [vmem:[%s2699 + $0x30] sm:$0xff]
      %v2707 = vld [vmem:[%s2699 + $0x38] sm:$0xff]
      %v2708 = vmul.f32 %v2691, %v2700
      %v2709 = vmul.f32 %v2695, %v2701
      %v2710 = vmul.f32 %v2692, %v2702
      %v2711 = vmul.f32 %v2696, %v2703
      %v2712 = vmul.f32 %v2693, %v2704
      %v2713 = vmul.f32 %v2697, %v2705
      %v2714 = vmul.f32 %v2694, %v2706
      %v2715 = vmul.f32 %v2698, %v2707
      %v2716 = vadd.f32 %v2667, %v2708
      %v2717 = vadd.f32 %v2668, %v2709
      %v2718 = vadd.f32 %v2669, %v2710
      %v2719 = vadd.f32 %v2670, %v2711
      %v2720 = vadd.f32 %v2671, %v2712
      %v2721 = vadd.f32 %v2672, %v2713
      %v2722 = vadd.f32 %v2673, %v2714
      %v2723 = vadd.f32 %v2674, %v2715
      %v2724 = vld [vmem:[%s20] sm:$0xff]
      %v2725 = vld [vmem:[%s20 + $0x8] sm:$0xff]
      %v2726 = vld [vmem:[%s20 + $0x10] sm:$0xff]
      %v2727 = vld [vmem:[%s20 + $0x18] sm:$0xff]
      %2729 = vset.pattern.permute.xlu0 0
      %2730 = vperm.xlu0 %2729, %v2724
      %v2731 = vpop.permute.xlu0 %2730
      %2734 = vset.pattern.permute.xlu0 0
      %2735 = vperm.xlu0 %2734, %v2725
      %v2736 = vpop.permute.xlu0 %2735
      %2739 = vset.pattern.permute.xlu0 0
      %2740 = vperm.xlu0 %2739, %v2726
      %v2741 = vpop.permute.xlu0 %2740
      %2744 = vset.pattern.permute.xlu0 0
      %2745 = vperm.xlu0 %2744, %v2727
      %v2746 = vpop.permute.xlu0 %2745
      %v2748 = vadd.f32 %v2716, %v2731
      %v2749 = vadd.f32 %v2717, %v2731
      %v2750 = vadd.f32 %v2718, %v2736
      %v2751 = vadd.f32 %v2719, %v2736
      %v2752 = vadd.f32 %v2720, %v2741
      %v2753 = vadd.f32 %v2721, %v2741
      %v2754 = vadd.f32 %v2722, %v2746
      %v2755 = vadd.f32 %v2723, %v2746
      %v2756 = vmul.f32 %v2748, 0.5
      %v2757 = vmul.f32 %v2749, 0.5
      %v2758 = vmul.f32 %v2750, 0.5
      %v2759 = vmul.f32 %v2751, 0.5
      %v2760 = vmul.f32 %v2752, 0.5
      %v2761 = vmul.f32 %v2753, 0.5
      %v2762 = vmul.f32 %v2754, 0.5
      %v2763 = vmul.f32 %v2755, 0.5
      %v2764 = vmul.f32 %v2748, 0.70710677
      %v2765 = vmul.f32 %v2749, 0.70710677
      %v2766 = vmul.f32 %v2750, 0.70710677
      %v2767 = vmul.f32 %v2751, 0.70710677
      %v2768 = vmul.f32 %v2752, 0.70710677
      %v2769 = vmul.f32 %v2753, 0.70710677
      %v2770 = vmul.f32 %v2754, 0.70710677
      %v2771 = vmul.f32 %v2755, 0.70710677
      %vm2772 = vcmp.ge.f32.partialorder %v2764, 0.0
      %vm2773 = vcmp.ge.f32.partialorder %v2765, 0.0
      %vm2774 = vcmp.ge.f32.partialorder %v2766, 0.0
      %vm2775 = vcmp.ge.f32.partialorder %v2767, 0.0
      %vm2776 = vcmp.ge.f32.partialorder %v2768, 0.0
      %vm2777 = vcmp.ge.f32.partialorder %v2769, 0.0
      %vm2778 = vcmp.ge.f32.partialorder %v2770, 0.0
      %vm2779 = vcmp.ge.f32.partialorder %v2771, 0.0
      %v2780 = vsel %vm2772, 1.0, -1.0
      %v2781 = vsel %vm2773, 1.0, -1.0
      %v2782 = vsel %vm2774, 1.0, -1.0
      %v2783 = vsel %vm2775, 1.0, -1.0
      %v2784 = vsel %vm2776, 1.0, -1.0
      %v2785 = vsel %vm2777, 1.0, -1.0
      %v2786 = vsel %vm2778, 1.0, -1.0
      %v2787 = vsel %vm2779, 1.0, -1.0
      %v2788 = vand.u32 2147483647, %v2764
      %v2789 = vand.u32 2147483647, %v2765
      %v2790 = vand.u32 2147483647, %v2766
      %v2791 = vand.u32 2147483647, %v2767
      %v2792 = vand.u32 2147483647, %v2768
      %v2793 = vand.u32 2147483647, %v2769
      %v2794 = vand.u32 2147483647, %v2770
      %v2795 = vand.u32 2147483647, %v2771
      %v2796 = vmul.f32 %v2788, 0.3275911
      %v2797 = vmul.f32 %v2789, 0.3275911
      %v2798 = vmul.f32 %v2790, 0.3275911
      %v2799 = vmul.f32 %v2791, 0.3275911
      %v2800 = vmul.f32 %v2792, 0.3275911
      %v2801 = vmul.f32 %v2793, 0.3275911
      %v2802 = vmul.f32 %v2794, 0.3275911
      %v2803 = vmul.f32 %v2795, 0.3275911
      %v2804 = vadd.f32 %v2796, 1.0
      %v2805 = vadd.f32 %v2797, 1.0
      %v2806 = vadd.f32 %v2798, 1.0
      %v2807 = vadd.f32 %v2799, 1.0
      %v2808 = vadd.f32 %v2800, 1.0
      %v2809 = vadd.f32 %v2801, 1.0
      %v2810 = vadd.f32 %v2802, 1.0
      %v2811 = vadd.f32 %v2803, 1.0
      %v2812 = vrcp.pop %v2804
      %v2813 = vmul.f32 1.0, %v2812
      %v2814 = vrcp.pop %v2805
      %v2815 = vmul.f32 1.0, %v2814
      %v2816 = vrcp.pop %v2806
      %v2817 = vmul.f32 1.0, %v2816
      %v2818 = vrcp.pop %v2807
      %v2819 = vmul.f32 1.0, %v2818
      %v2820 = vrcp.pop %v2808
      %v2821 = vmul.f32 1.0, %v2820
      %v2822 = vrcp.pop %v2809
      %v2823 = vmul.f32 1.0, %v2822
      %v2824 = vrcp.pop %v2810
      %v2825 = vmul.f32 1.0, %v2824
      %v2826 = vrcp.pop %v2811
      %v2827 = vmul.f32 1.0, %v2826
      %v2828 = vmul.f32 %v2813, 1.0614054
      %v2829 = vmul.f32 %v2815, 1.0614054
      %v2830 = vmul.f32 %v2817, 1.0614054
      %v2831 = vmul.f32 %v2819, 1.0614054
      %v2832 = vmul.f32 %v2821, 1.0614054
      %v2833 = vmul.f32 %v2823, 1.0614054
      %v2834 = vmul.f32 %v2825, 1.0614054
      %v2835 = vmul.f32 %v2827, 1.0614054
      %v2836 = vadd.f32 %v2828, -1.4531521
      %v2837 = vadd.f32 %v2829, -1.4531521
      %v2838 = vadd.f32 %v2830, -1.4531521
      %v2839 = vadd.f32 %v2831, -1.4531521
      %v2840 = vadd.f32 %v2832, -1.4531521
      %v2841 = vadd.f32 %v2833, -1.4531521
      %v2842 = vadd.f32 %v2834, -1.4531521
      %v2843 = vadd.f32 %v2835, -1.4531521
      %v2844 = vmul.f32 %v2836, %v2813
      %v2845 = vmul.f32 %v2837, %v2815
      %v2846 = vmul.f32 %v2838, %v2817
      %v2847 = vmul.f32 %v2839, %v2819
      %v2848 = vmul.f32 %v2840, %v2821
      %v2849 = vmul.f32 %v2841, %v2823
      %v2850 = vmul.f32 %v2842, %v2825
      %v2851 = vmul.f32 %v2843, %v2827
      %v2852 = vadd.f32 %v2844, 1.4214138
      %v2853 = vadd.f32 %v2845, 1.4214138
      %v2854 = vadd.f32 %v2846, 1.4214138
      %v2855 = vadd.f32 %v2847, 1.4214138
      %v2856 = vadd.f32 %v2848, 1.4214138
      %v2857 = vadd.f32 %v2849, 1.4214138
      %v2858 = vadd.f32 %v2850, 1.4214138
      %v2859 = vadd.f32 %v2851, 1.4214138
      %v2860 = vmul.f32 %v2852, %v2813
      %v2861 = vmul.f32 %v2853, %v2815
      %v2862 = vmul.f32 %v2854, %v2817
      %v2863 = vmul.f32 %v2855, %v2819
      %v2864 = vmul.f32 %v2856, %v2821
      %v2865 = vmul.f32 %v2857, %v2823
      %v2866 = vmul.f32 %v2858, %v2825
      %v2867 = vmul.f32 %v2859, %v2827
      %v2868 = vadd.f32 %v2860, -0.28449672
      %v2869 = vadd.f32 %v2861, -0.28449672
      %v2870 = vadd.f32 %v2862, -0.28449672
      %v2871 = vadd.f32 %v2863, -0.28449672
      %v2872 = vadd.f32 %v2864, -0.28449672
      %v2873 = vadd.f32 %v2865, -0.28449672
      %v2874 = vadd.f32 %v2866, -0.28449672
      %v2875 = vadd.f32 %v2867, -0.28449672
      %v2876 = vmul.f32 %v2868, %v2813
      %v2877 = vmul.f32 %v2869, %v2815
      %v2878 = vmul.f32 %v2870, %v2817
      %v2879 = vmul.f32 %v2871, %v2819
      %v2880 = vmul.f32 %v2872, %v2821
      %v2881 = vmul.f32 %v2873, %v2823
      %v2882 = vmul.f32 %v2874, %v2825
      %v2883 = vmul.f32 %v2875, %v2827
      %v2884 = vadd.f32 %v2876, 0.2548296
      %v2885 = vadd.f32 %v2877, 0.2548296
      %v2886 = vadd.f32 %v2878, 0.2548296
      %v2887 = vadd.f32 %v2879, 0.2548296
      %v2888 = vadd.f32 %v2880, 0.2548296
      %v2889 = vadd.f32 %v2881, 0.2548296
      %v2890 = vadd.f32 %v2882, 0.2548296
      %v2891 = vadd.f32 %v2883, 0.2548296
      %v2892 = vmul.f32 %v2884, %v2813
      %v2893 = vmul.f32 %v2885, %v2815
      %v2894 = vmul.f32 %v2886, %v2817
      %v2895 = vmul.f32 %v2887, %v2819
      %v2896 = vmul.f32 %v2888, %v2821
      %v2897 = vmul.f32 %v2889, %v2823
      %v2898 = vmul.f32 %v2890, %v2825
      %v2899 = vmul.f32 %v2891, %v2827
      %v2900 = vsub.f32 0.0, %v2788
      %v2901 = vsub.f32 0.0, %v2789
      %v2902 = vsub.f32 0.0, %v2790
      %v2903 = vsub.f32 0.0, %v2791
      %v2904 = vsub.f32 0.0, %v2792
      %v2905 = vsub.f32 0.0, %v2793
      %v2906 = vsub.f32 0.0, %v2794
      %v2907 = vsub.f32 0.0, %v2795
      %v2908 = vmul.f32 %v2900, %v2788
      %v2909 = vmul.f32 %v2901, %v2789
      %v2910 = vmul.f32 %v2902, %v2790
      %v2911 = vmul.f32 %v2903, %v2791
      %v2912 = vmul.f32 %v2904, %v2792
      %v2913 = vmul.f32 %v2905, %v2793
      %v2914 = vmul.f32 %v2906, %v2794
      %v2915 = vmul.f32 %v2907, %v2795
      %v2916 = vmul.f32 %v2908, 1.442695
      %v2917 = vpow.pop %v2916
      %v2918 = vmul.f32 %v2909, 1.442695
      %v2919 = vpow.pop %v2918
      %v2920 = vmul.f32 %v2910, 1.442695
      %v2921 = vpow.pop %v2920
      %v2922 = vmul.f32 %v2911, 1.442695
      %v2923 = vpow.pop %v2922
      %v2924 = vmul.f32 %v2912, 1.442695
      %v2925 = vpow.pop %v2924
      %v2926 = vmul.f32 %v2913, 1.442695
      %v2927 = vpow.pop %v2926
      %v2928 = vmul.f32 %v2914, 1.442695
      %v2929 = vpow.pop %v2928
      %v2930 = vmul.f32 %v2915, 1.442695
      %v2931 = vpow.pop %v2930
      %v2932 = vmul.f32 %v2892, %v2917
      %v2933 = vmul.f32 %v2893, %v2919
      %v2934 = vmul.f32 %v2894, %v2921
      %v2935 = vmul.f32 %v2895, %v2923
      %v2936 = vmul.f32 %v2896, %v2925
      %v2937 = vmul.f32 %v2897, %v2927
      %v2938 = vmul.f32 %v2898, %v2929
      %v2939 = vmul.f32 %v2899, %v2931
      %v2940 = vsub.f32 1.0, %v2932
      %v2941 = vsub.f32 1.0, %v2933
      %v2942 = vsub.f32 1.0, %v2934
      %v2943 = vsub.f32 1.0, %v2935
      %v2944 = vsub.f32 1.0, %v2936
      %v2945 = vsub.f32 1.0, %v2937
      %v2946 = vsub.f32 1.0, %v2938
      %v2947 = vsub.f32 1.0, %v2939
      %v2948 = vmul.f32 %v2780, %v2940
      %v2949 = vmul.f32 %v2781, %v2941
      %v2950 = vmul.f32 %v2782, %v2942
      %v2951 = vmul.f32 %v2783, %v2943
      %v2952 = vmul.f32 %v2784, %v2944
      %v2953 = vmul.f32 %v2785, %v2945
      %v2954 = vmul.f32 %v2786, %v2946
      %v2955 = vmul.f32 %v2787, %v2947
      %v2956 = vadd.f32 %v2948, 1.0
      %v2957 = vadd.f32 %v2949, 1.0
      %v2958 = vadd.f32 %v2950, 1.0
      %v2959 = vadd.f32 %v2951, 1.0
      %v2960 = vadd.f32 %v2952, 1.0
      %v2961 = vadd.f32 %v2953, 1.0
      %v2962 = vadd.f32 %v2954, 1.0
      %v2963 = vadd.f32 %v2955, 1.0
      %v2964 = vmul.f32 %v2756, %v2956
      %v2965 = vmul.f32 %v2757, %v2957
      %v2966 = vmul.f32 %v2758, %v2958
      %v2967 = vmul.f32 %v2759, %v2959
      %v2968 = vmul.f32 %v2760, %v2960
      %v2969 = vmul.f32 %v2761, %v2961
      %v2970 = vmul.f32 %v2762, %v2962
      %v2971 = vmul.f32 %v2763, %v2963
      %v2972 = vld [vmem:[%s21] sm:$0xff]
      %v2973 = vld [vmem:[%s21 + $0x8] sm:$0xff]
      %v2974 = vld [vmem:[%s21 + $0x10] sm:$0xff]
      %v2975 = vld [vmem:[%s21 + $0x18] sm:$0xff]
      %2977 = vset.pattern.permute.xlu0 0
      %2978 = vperm.xlu0 %2977, %v2972
      %v2979 = vpop.permute.xlu0 %2978
      %2982 = vset.pattern.permute.xlu0 0
      %2983 = vperm.xlu0 %2982, %v2973
      %v2984 = vpop.permute.xlu0 %2983
      %2987 = vset.pattern.permute.xlu0 0
      %2988 = vperm.xlu0 %2987, %v2974
      %v2989 = vpop.permute.xlu0 %2988
      %2992 = vset.pattern.permute.xlu0 0
      %2993 = vperm.xlu0 %2992, %v2975
      %v2994 = vpop.permute.xlu0 %2993
      %v2996 = vmul.f32 %v2964, %v2979
      %v2997 = vmul.f32 %v2965, %v2979
      %v2998 = vmul.f32 %v2966, %v2984
      %v2999 = vmul.f32 %v2967, %v2984
      %v3000 = vmul.f32 %v2968, %v2989
      %v3001 = vmul.f32 %v2969, %v2989
      %v3002 = vmul.f32 %v2970, %v2994
      %v3003 = vmul.f32 %v2971, %v2994
      %v3004 = vadd.f32 %v2996, %v2998
      %v3005 = vadd.f32 %v3004, %v3000
      %v3006 = vadd.f32 %v3005, %v3002
      %v3007 = vrot.slane %v3006, 4
      %v3008 = vadd.f32 %v3006, %v3007
      %v3009 = vrot.slane %v3008, 2
      %v3010 = vadd.f32 %v3008, %v3009
      %v3011 = vrot.slane %v3010, 1
      %v3012 = vadd.f32 %v3010, %v3011
      %v3013 = vadd.f32 %v2997, %v2999
      %v3014 = vadd.f32 %v3013, %v3001
      %v3015 = vadd.f32 %v3014, %v3003
      %v3016 = vrot.slane %v3015, 4
      %v3017 = vadd.f32 %v3015, %v3016
      %v3018 = vrot.slane %v3017, 2
      %v3019 = vadd.f32 %v3017, %v3018
      %v3020 = vrot.slane %v3019, 1
      %v3021 = vadd.f32 %v3019, %v3020
      %v3022 = vld [vmem:[#allocation2] sm:$0x1]
      %3024 = vset.pattern.permute.xlu0 0
      %3025 = vperm.xlu0 %3024, %v3022
      %v3026 = vpop.permute.xlu0 %3025
      %v3028 = vlaneseq
      %v3029 = vshrl.u32 %v3028, 7
      %v3030 = vsub.s32 0, %v3029
      %v3031 = vrot.slane %v3026, %v3030
      %v3032 = vadd.f32 %v3012, %v3031
      %v3033 = vadd.f32 %v3021, %v3031
      %v3034 = vld [vmem:[%s23] sm:$0xff]
      %v3035 = vld [vmem:[%s23 + $0x8] sm:$0xff]
      %v3036 = vld [vmem:[%s23 + $0x10] sm:$0xff]
      %v3037 = vld [vmem:[%s23 + $0x18] sm:$0xff]
      %v3038 = vmul.f32 %v3032, 0.5
      %v3039 = vmul.f32 %v3033, 0.5
      %v3040 = vmul.f32 %v3032, 0.70710677
      %v3041 = vmul.f32 %v3033, 0.70710677
      %vm3042 = vcmp.ge.f32.partialorder %v3040, 0.0
      %vm3043 = vcmp.ge.f32.partialorder %v3041, 0.0
      %v3044 = vsel %vm3042, 1.0, -1.0
      %v3045 = vsel %vm3043, 1.0, -1.0
      %v3046 = vand.u32 2147483647, %v3040
      %v3047 = vand.u32 2147483647, %v3041
      %v3048 = vmul.f32 %v3046, 0.3275911
      %v3049 = vmul.f32 %v3047, 0.3275911
      %v3050 = vadd.f32 %v3048, 1.0
      %v3051 = vadd.f32 %v3049, 1.0
      %v3052 = vrcp.pop %v3050
      %v3053 = vmul.f32 1.0, %v3052
      %v3054 = vrcp.pop %v3051
      %v3055 = vmul.f32 1.0, %v3054
      %v3056 = vmul.f32 %v3053, 1.0614054
      %v3057 = vmul.f32 %v3055, 1.0614054
      %v3058 = vadd.f32 %v3056, -1.4531521
      %v3059 = vadd.f32 %v3057, -1.4531521
      %v3060 = vmul.f32 %v3058, %v3053
      %v3061 = vmul.f32 %v3059, %v3055
      %v3062 = vadd.f32 %v3060, 1.4214138
      %v3063 = vadd.f32 %v3061, 1.4214138
      %v3064 = vmul.f32 %v3062, %v3053
      %v3065 = vmul.f32 %v3063, %v3055
      %v3066 = vadd.f32 %v3064, -0.28449672
      %v3067 = vadd.f32 %v3065, -0.28449672
      %v3068 = vmul.f32 %v3066, %v3053
      %v3069 = vmul.f32 %v3067, %v3055
      %v3070 = vadd.f32 %v3068, 0.2548296
      %v3071 = vadd.f32 %v3069, 0.2548296
      %v3072 = vmul.f32 %v3070, %v3053
      %v3073 = vmul.f32 %v3071, %v3055
      %v3074 = vsub.f32 0.0, %v3046
      %v3075 = vsub.f32 0.0, %v3047
      %v3076 = vmul.f32 %v3074, %v3046
      %v3077 = vmul.f32 %v3075, %v3047
      %v3078 = vmul.f32 %v3076, 1.442695
      %v3079 = vpow.pop %v3078
      %v3080 = vmul.f32 %v3077, 1.442695
      %v3081 = vpow.pop %v3080
      %v3082 = vmul.f32 %v3072, %v3079
      %v3083 = vmul.f32 %v3073, %v3081
      %v3084 = vsub.f32 1.0, %v3082
      %v3085 = vsub.f32 1.0, %v3083
      %v3086 = vmul.f32 %v3044, %v3084
      %v3087 = vmul.f32 %v3045, %v3085
      %v3088 = vadd.f32 %v3086, 1.0
      %v3089 = vadd.f32 %v3087, 1.0
      %v3090 = vmul.f32 %v3038, %v3088
      %v3091 = vmul.f32 %v3039, %v3089
      %v3092 = vsub.f32 %v2964, %v3090
      %v3093 = vsub.f32 %v2965, %v3091
      %v3094 = vsub.f32 %v2966, %v3090
      %v3095 = vsub.f32 %v2967, %v3091
      %v3096 = vsub.f32 %v2968, %v3090
      %v3097 = vsub.f32 %v2969, %v3091
      %v3098 = vsub.f32 %v2970, %v3090
      %v3099 = vsub.f32 %v2971, %v3091
      %3101 = vset.pattern.permute.xlu0 0
      %3102 = vperm.xlu0 %3101, %v3034
      %v3103 = vpop.permute.xlu0 %3102
      %3106 = vset.pattern.permute.xlu0 0
      %3107 = vperm.xlu0 %3106, %v3035
      %v3108 = vpop.permute.xlu0 %3107
      %3111 = vset.pattern.permute.xlu0 0
      %3112 = vperm.xlu0 %3111, %v3036
      %v3113 = vpop.permute.xlu0 %3112
      %3116 = vset.pattern.permute.xlu0 0
      %3117 = vperm.xlu0 %3116, %v3037
      %v3118 = vpop.permute.xlu0 %3117
      %v3120 = vmul.f32 %v3103, %v3092
      %v3121 = vmul.f32 %v3103, %v3093
      %v3122 = vmul.f32 %v3108, %v3094
      %v3123 = vmul.f32 %v3108, %v3095
      %v3124 = vmul.f32 %v3113, %v3096
      %v3125 = vmul.f32 %v3113, %v3097
      %v3126 = vmul.f32 %v3118, %v3098
      %v3127 = vmul.f32 %v3118, %v3099
      %v3128 = vadd.f32 %v2964, %v3120
      %v3129 = vadd.f32 %v2965, %v3121
      %v3130 = vadd.f32 %v2966, %v3122
      %v3131 = vadd.f32 %v2967, %v3123
      %v3132 = vadd.f32 %v2968, %v3124
      %v3133 = vadd.f32 %v2969, %v3125
      %v3134 = vadd.f32 %v2970, %v3126
      %v3135 = vadd.f32 %v2971, %v3127
      %v3136 = vld [vmem:[%s24] sm:$0xff]
      %v3137 = vld [vmem:[%s25] sm:$0xff]
      %3139 = vset.pattern.permute.xlu0 0
      %3140 = vperm.xlu0 %3139, %v3137
      %v3141 = vpop.permute.xlu0 %3140
      %vm3143 = vcmask 261120
      %v3145 = vsel %vm3143, %v3136, 0
      %3147 = vmatprep.subr.mxu0 %v3129
      %3148 = vmatpush1.msra.mxu0 %v3128
      %3149 = vmatprep.subr.mxu0 %v3131
      %3150 = vmatpush1.msra.mxu0 %v3130
      %3151 = vmatprep.subr.mxu0 %v3133
      %3152 = vmatpush1.msra.mxu0 %v3132
      %3153 = vmatprep.subr.mxu0 %v3135
      %3154 = vmatpush1.msra.mxu0 %v3134
      %3155 = vmatprep.subr.mxu0 0.0
      %3156 = vmatpush1.msra.mxu0 0.0
      %3157 = vmatprep.subr.mxu0 0.0
      %3158 = vmatpush1.msra.mxu0 0.0
      %3159 = vmatprep.subr.mxu0 0.0
      %3160 = vmatpush1.msra.mxu0 0.0
      %3161 = vmatprep.subr.mxu0 0.0
      %3162 = vmatpush1.msra.mxu0 0.0
      %3163 = vmatprep.subr.mxu0 0.0
      %3164 = vmatpush1.msra.mxu0 0.0
      %3165 = vmatprep.subr.mxu0 0.0
      %3166 = vmatpush1.msra.mxu0 0.0
      %3167 = vmatprep.subr.mxu0 0.0
      %3168 = vmatpush1.msra.mxu0 0.0
      %3169 = vmatprep.subr.mxu0 0.0
      %3170 = vmatpush1.msra.mxu0 0.0
      %3171 = vmatprep.subr.mxu0 0.0
      %3172 = vmatpush1.msra.mxu0 0.0
      %3173 = vmatprep.subr.mxu0 0.0
      %3174 = vmatpush1.msra.mxu0 0.0
      %3175 = vmatprep.subr.mxu0 0.0
      %3176 = vmatpush1.msra.mxu0 0.0
      %3177 = vmatprep.subr.mxu0 0.0
      %3178 = vmatpush1.msra.mxu0 0.0
      %3179 = vmatprep.subr.mxu0 0.0
      %3180 = vmatpush1.msra.mxu0 0.0
      %3181 = vmatprep.subr.mxu0 0.0
      %3182 = vmatpush1.msra.mxu0 0.0
      %3183 = vmatprep.subr.mxu0 0.0
      %3184 = vmatpush1.msra.mxu0 0.0
      %3185 = vmatprep.subr.mxu0 0.0
      %3186 = vmatpush1.msra.mxu0 0.0
      %3187 = vmatprep.subr.mxu0 0.0
      %3188 = vmatpush1.msra.mxu0 0.0
      %3189 = vmatprep.subr.mxu0 0.0
      %3190 = vmatpush1.msra.mxu0 0.0
      %3191 = vmatprep.subr.mxu0 0.0
      %3192 = vmatpush1.msra.mxu0 0.0
      %3193 = vmatprep.subr.mxu0 0.0
      %3194 = vmatpush1.msra.mxu0 0.0
      %3195 = vmatprep.subr.mxu0 0.0
      %3196 = vmatpush1.msra.mxu0 0.0
      %3197 = vmatprep.subr.mxu0 0.0
      %3198 = vmatpush1.msra.mxu0 0.0
      %3199 = vmatprep.subr.mxu0 0.0
      %3200 = vmatpush1.msra.mxu0 0.0
      %3201 = vmatprep.subr.mxu0 0.0
      %3202 = vmatpush1.msra.mxu0 0.0
      %3203 = vmatprep.subr.mxu0 0.0
      %3204 = vmatpush1.msra.mxu0 0.0
      %3205 = vmatprep.subr.mxu0 0.0
      %3206 = vmatpush1.msra.mxu0 0.0
      %3207 = vmatprep.subr.mxu0 0.0
      %3208 = vmatpush1.msra.mxu0 0.0
      %3209 = vmatprep.subr.mxu0 0.0
      %3210 = vmatpush1.msra.mxu0 0.0
      %3211 = vmatprep.mubr.f32.mxu0 0.0
      %3212 = vmatmul.mubr.f32.gmra.mrb[0].mxu0 %v3145
      %v3213 = vpop.f32.mrb[0].mxu0
      %v3214 = vadd.f32 %v3141, %v3213
      %v3215 = vpop.f32.mrb[0].mxu0
      %v3216 = vadd.f32 %v3141, %v3215
      %3217 = vdwg.mxu0
      %v3218 = vadd.f32 %v2185, %v3214
      %v3219 = vadd.f32 %v2186, %v3216
      %3220 = vst [vmem:[%s793] sm:$0xff] %v3218
      %3221 = vst [vmem:[%s793 + $0x8] sm:$0xff] %v3219
      %p3222 = scmp.lt.s32.totalorder %s39, 1
      %s3223 = scalar_select %p3222, %s39, 1
      %s3224 = smul.addr %s3223, 2
      %s3225 = smul.addr %s3224, 8
      %s3226 = scalar_lea.vmem %s26, %s3225
      // Predicated region
      $region125: #{moga_sub_block.1} parent=123 // pred_check
        %p3227 = pneg %p608
      $region126: #{moga_sub_block.1} parent=123 // pred_check_branch
        %3229 = sbr.rel (%p3227) target = $region128
      $region127: #{moga_sub_block.1} parent=123 // pred_region
        _
      $region128: #{moga_sub_block.1} parent=123 // pred_fallthru
        _
    $region124: #{moga_sub_block.1} parent=5 // pred_fallthru
      _
    %p3230 = scmp.le.s32.totalorder 2, %s34
    // Predicated region
    $region129: #{moga_sub_block.1} parent=5 // pred_check
      %p3231 = pneg %p3230
    $region130: #{moga_sub_block.1} parent=5 // pred_check_branch
      %3233 = sbr.rel (%p3231) target = $region132
    $region131: #{moga_sub_block.1} parent=5 // pred_region
      %s3234 = ssub.s32 %s34, 2
      // Predicated region
      $region133: #{moga_sub_block.1} parent=131 // pred_check
        %p3235 = pneg %p614
      $region134: #{moga_sub_block.1} parent=131 // pred_check_branch
        %3237 = sbr.rel (%p3235) target = $region136
      $region135: #{moga_sub_block.1} parent=131 // pred_region
        %p3238 = scmp.lt.s32.totalorder %s40, 1
        %s3239 = scalar_select %p3238, %s40, 1
        %s3240 = smul.addr %s3239, 2
        %s3241 = smul.addr %s3240, 8
        %s3242 = scalar_lea.vmem %s26, %s3241
      $region136: #{moga_sub_block.1} parent=131 // pred_fallthru
        _
    $region132: #{moga_sub_block.1} parent=5 // pred_fallthru
      _
  $region6: #{moga_sub_block.1} parent=0 // loop_footer
    %s38 = sadd.s32 1, %s34
  $region7: #{moga_sub_block.1} parent=0 // loop_footer_branch
    %33 = sbr.rel target = $region3
  $region8: #{moga_sub_block.1} parent=0 // loop_exit
    _

</llo_original>
